<compile_context>
chip_gen: v6e
topology: v6e:2x2x1
jax: 0.10.0
libtpu: 0.0.40
codegen_flags: <defaults>
</compile_context>

<pallas_src>
import functools
import math

import jax
import jax.numpy as jnp
from jax.experimental import pallas as pl
from jax.experimental.pallas import tpu as pltpu

HORIZON = 48
OUT_PAD = 128                    # lane-dense padded head-output width
D2, D3 = 4, 8                    # dilations of conv2 / conv3
_ROWS_PER_STEP = 8192            # target TB*L rows per grid step
_VMEM_FLOOR = 32 * 1024 * 1024
_VMEM_CAP = 48 * 1024 * 1024     # headroom under v7x's 64 MiB/TC


def price_cnn_kernel(x_ref,
                     w2_ref, b2_ref,
                     w3_ref, b3_ref,
                     hw1_ref, hb1_ref,
                     hw2_ref, hb2_ref,
                     out_ref, *, seq_len):
    TB = x_ref.shape[0]
    L = seq_len
    N = TB * L

    def dot32(a_bf, w_bf):                      # bf16 x bf16 -> f32 on the MXU
        return jnp.dot(a_bf, w_bf, preferred_element_type=jnp.float32)

    def flat_bf16(a):                           # (TB, L, C) -> (N, C) bf16
        return a.reshape(N, a.shape[-1]).astype(jnp.bfloat16)

    # --- conv2: Conv1d(64->64, k=3, dilation=4, padding=4) + SiLU ----------
    # The input block is zero-padded by 4 rows on both sides of L (done in
    # the wrapper), so the three dilated taps (t-4, t, t+4) are just shifted
    # window slices -- the "shift" comes for free with the slice.  Slices are
    # taken on the f32 upcast (32-bit sublane offsets are the well-supported
    # path); bf16 casts happen right before the dots.
    x32 = x_ref[...].astype(jnp.float32)        # (TB, L+8, 64)
    t_m = x32[:, 0:L, :]                        # h1[t-4]
    t_c = x32[:, D2:D2 + L, :]                  # h1[t]
    t_p = x32[:, 2 * D2:2 * D2 + L, :]          # h1[t+4]
    y2 = (dot32(flat_bf16(t_m), w2_ref[0])
          + dot32(flat_bf16(t_c), w2_ref[1])
          + dot32(flat_bf16(t_p), w2_ref[2]))
    h2 = jax.nn.silu(y2 + b2_ref[...])          # (N, 64) f32

    # --- conv3: Conv1d(64->128, k=3, dilation=8, padding=8) + SiLU ---------
    # Shifted taps via 8-row-aligned zero concat + slices along the sublane
    # axis of the (TB, L, 64) f32 view: exact Conv1d zero padding, everything
    # aligned to the (8, 128) f32 tile.
    h2_3d = h2.reshape(TB, L, 64)
    zpad = jnp.zeros((TB, D3, 64), jnp.float32)
    u_m = jnp.concatenate([zpad, h2_3d[:, :L - D3, :]], axis=1)   # h2[t-8]
    u_p = jnp.concatenate([h2_3d[:, D3:, :], zpad], axis=1)       # h2[t+8]
    y3 = (dot32(flat_bf16(u_m), w3_ref[0])
          + dot32(h2.astype(jnp.bfloat16), w3_ref[1])
          + dot32(flat_bf16(u_p), w3_ref[2]))
    h3 = jax.nn.silu(y3 + b3_ref[...])          # (N, 128) f32

    # --- BatchNorm (eval running stats) + AdaptiveAvgPool1d -----------------
    # Both are folded into hw1/hb1 wrapper-side, so only a per-sequence f32
    # sum over L remains here.
    # TODO(synk): training-mode (batch-statistics) BatchNorm is not reproduced.
    pooled = jnp.sum(h3.reshape(TB, L, h3.shape[-1]), axis=1)     # (TB, 128)

    # --- MLP head: bf16 weights, f32 accumulation, lane-dense padded store --
    z = dot32(pooled.astype(jnp.bfloat16), hw1_ref[...]) + hb1_ref[...]
    z = jax.nn.silu(z)
    out = dot32(z.astype(jnp.bfloat16), hw2_ref[...]) + hb2_ref[...]
    out_ref[...] = out.astype(out_ref.dtype)    # (TB, OUT_PAD)


def _pick_batch_tile(batch, tb):
    """Largest divisor of `batch` <= tb whose output block stays sublane
    aligned (multiple of 8, or the whole batch); then shrink so the grid is
    >= 2 when possible (lets ("parallel",) use both TensorCores on v7x)."""
    tb = max(1, min(tb, batch))
    best = batch
    for d in range(tb, 0, -1):
        if batch % d == 0 and (d % 8 == 0 or d == batch):
            best = d
            break
    if batch // best < 2:
        for d in range(batch // 2, 0, -1):
            if batch % d == 0 and d % 8 == 0:
                best = d
                break
    return best


@functools.partial(jax.jit, static_argnames=("tb",))
def price_cnn_forward(x_ncl, conv1_params, kernel_params, *, tb=None):
    """x_ncl: (B, 1, L) float32 (PyTorch Conv1d layout).  Returns (B, HORIZON)."""
    w1, b1 = conv1_params
    x = x_ncl[:, 0, :].astype(jnp.float32)                    # (B, L)
    B, L = x.shape
    if L <= D3:
        raise ValueError(f"sequence length {L} must exceed conv3 dilation {D3}")

    # --- conv1 (Cin=1, dilation=2, padding=2) + SiLU, hoisted to the wrapper.
    # The Cin=1 contraction is a broadcast multiply; hoisting it removes the
    # trailing-dim-1 input block from the kernel.  The result is zero-padded
    # by D2 along L so conv2's dilated taps become plain window slices, and
    # shipped as bf16 (halves input DMA / VMEM).
    x_m = jnp.pad(x, ((0, 0), (2, 0)))[:, :L]                 # x[t-2]
    x_p = jnp.pad(x, ((0, 0), (0, 2)))[:, 2:]                 # x[t+2]
    h1 = (x_m[..., None] * w1[0] + x[..., None] * w1[1]
          + x_p[..., None] * w1[2] + b1)
    h1 = jax.nn.silu(h1)                                      # (B, L, 64) f32
    h1 = jnp.pad(h1, ((0, 0), (D2, D2), (0, 0))).astype(jnp.bfloat16)
    Lp = L + 2 * D2

    # --- batch tile: TB*L in the several-thousand-row range ------------------
    if tb is None:
        tb = max(1, _ROWS_PER_STEP // L)
    tb_ = _pick_batch_tile(B, tb)
    grid = (B // tb_,)

    # Weights stay VMEM-resident; constant index maps -> not re-DMA'd per step.
    param_specs = [pl.BlockSpec(p.shape, lambda i, nd=p.ndim: (0,) * nd)
                   for p in kernel_params]

    weight_bytes = sum(int(p.size) * p.dtype.itemsize for p in kernel_params)
    # Per-row VMEM live-set estimate (dbl-buffered bf16 input + f32 upcast +
    # bf16 dot operands + f32 conv activations / concat temporaries).
    per_row_bytes = (2 * Lp * 64 * 2 // L     # double-buffered bf16 input block
                     + Lp * 64 * 4 // L       # f32 upcast of the input block
                     + 3 * 64 * 2             # conv2 bf16 tap operands
                     + 4 * 64 * 4             # h2 f32 + conv3 f32 tap temps
                     + 3 * 64 * 2             # conv3 bf16 dot operands
                     + 2 * 128 * 4)           # y3 / h3 f32
    vmem_est = tb_ * L * per_row_bytes + 2 * weight_bytes + 2 * tb_ * OUT_PAD * 4
    vmem_limit = int(min(max(3 * vmem_est // 2, _VMEM_FLOOR), _VMEM_CAP))

    flops = int(B * L * (2 * 3 * 64 * 64 + 2 * 3 * 64 * 128)
                + B * (2 * 128 * 256 + 2 * 256 * OUT_PAD))
    transcendentals = int(B * L * (64 + 128) + B * 256)
    bytes_accessed = int(h1.size * h1.dtype.itemsize + weight_bytes
                         + B * OUT_PAD * 4)

    out_full = pl.pallas_call(
        functools.partial(price_cnn_kernel, seq_len=L),
        out_shape=jax.ShapeDtypeStruct((B, OUT_PAD), jnp.float32),
        grid=grid,
        in_specs=[pl.BlockSpec((tb_, Lp, 64), lambda i: (i, 0, 0))] + param_specs,
        out_specs=pl.BlockSpec((tb_, OUT_PAD), lambda i: (i, 0)),
        compiler_params=pltpu.CompilerParams(
            dimension_semantics=("parallel",),
            vmem_limit_bytes=vmem_limit),
        cost_estimate=pl.CostEstimate(flops=flops,
                                      transcendentals=transcendentals,
                                      bytes_accessed=bytes_accessed),
    )(h1, *kernel_params)
    return out_full[:, :HORIZON]


def init_params(key):
    """Raw parameters in PyTorch-equivalent shapes/init."""
    ks = jax.random.split(key, 10)

    def u(k, shape, fan_in):
        bound = 1.0 / math.sqrt(fan_in)
        return jax.random.uniform(k, shape, jnp.float32, -bound, bound)

    # Conv1d weights stored (tap=3, Cin, Cout); torch layout is (Cout, Cin, 3).
    w1 = u(ks[0], (3, 1, 64), 1 * 3);    b1 = u(ks[1], (64,), 1 * 3)
    w2 = u(ks[2], (3, 64, 64), 64 * 3);  b2 = u(ks[3], (64,), 64 * 3)
    w3 = u(ks[4], (3, 64, 128), 64 * 3); b3 = u(ks[5], (128,), 64 * 3)
    # BatchNorm1d(128) defaults (eval-mode running stats).
    bn_g = jnp.ones((128,), jnp.float32)
    bn_b = jnp.zeros((128,), jnp.float32)
    bn_m = jnp.zeros((128,), jnp.float32)
    bn_v = jnp.ones((128,), jnp.float32)
    # Linear weights stored (in, out); torch layout is (out, in).
    hw1 = u(ks[6], (128, 256), 128);     hb1 = u(ks[7], (256,), 128)
    hw2 = u(ks[8], (256, HORIZON), 256); hb2 = u(ks[9], (HORIZON,), 256)
    return dict(w1=w1, b1=b1, w2=w2, b2=b2, w3=w3, b3=b3,
                bn_g=bn_g, bn_b=bn_b, bn_m=bn_m, bn_v=bn_v,
                hw1=hw1, hb1=hb1, hw2=hw2, hb2=hb2)


def prepare_params(raw, seq_len, eps=1e-5):
    """Wrapper-side constant folding into kernel-friendly tensors."""
    # conv1 stays wrapper-side: taps (3, 64) + bias (64,).
    conv1 = (raw["w1"].reshape(3, 64), raw["b1"])
    # Per-tap conv weights (3, Cin, Cout), bf16 for the MXU; biases f32.
    w2 = raw["w2"].astype(jnp.bfloat16)
    b2 = raw["b2"].reshape(1, 64)
    w3 = raw["w3"].astype(jnp.bfloat16)
    b3 = raw["b3"].reshape(1, 128)
    # Fold eval BatchNorm and the avg-pool 1/L into the first head Linear:
    #   BN(mean_L(h)) @ hw1 + hb1 == sum_L(h) @ ((scale/L)[:,None]*hw1)
    #                                 + (shift @ hw1 + hb1)
    scale = raw["bn_g"] * jax.lax.rsqrt(raw["bn_v"] + eps)
    shift = raw["bn_b"] - raw["bn_m"] * scale
    hw1 = ((scale / seq_len)[:, None] * raw["hw1"]).astype(jnp.bfloat16)
    hb1 = (raw["hb1"] + shift @ raw["hw1"]).reshape(1, 256)
    # Zero-pad the final Linear to 128 output lanes (unmasked lane-dense store).
    hw2 = (jnp.zeros((256, OUT_PAD), jnp.float32)
           .at[:, :HORIZON].set(raw["hw2"]).astype(jnp.bfloat16))
    hb2 = jnp.zeros((1, OUT_PAD), jnp.float32).at[0, :HORIZON].set(raw["hb2"])
    kernel_params = (w2, b2, w3, b3, hw1, hb1, hw2, hb2)
    return conv1, kernel_params


def reference_forward(x_ncl, raw, eps=1e-5):
    """Pure-JAX f32 reference of the PyTorch PriceCNN forward (eval-mode BN)."""
    x = x_ncl[:, 0, :].astype(jnp.float32)
    L = x.shape[1]
    h = x[..., None]                                    # (B, L, 1)

    def dconv_silu(h, w, b, d):                         # w: (3, Cin, Cout)
        hm = jnp.pad(h, ((0, 0), (d, 0), (0, 0)))[:, :L]
        hp = jnp.pad(h, ((0, 0), (0, d), (0, 0)))[:, d:]
        y = (jnp.einsum("blc,co->blo", hm, w[0])
             + jnp.einsum("blc,co->blo", h, w[1])
             + jnp.einsum("blc,co->blo", hp, w[2]) + b)
        return jax.nn.silu(y)

    h = dconv_silu(h, raw["w1"], raw["b1"], 2)
    h = dconv_silu(h, raw["w2"], raw["b2"], 4)
    h = dconv_silu(h, raw["w3"], raw["b3"], 8)          # (B, L, 128)
    scale = raw["bn_g"] * jax.lax.rsqrt(raw["bn_v"] + eps)
    shift = raw["bn_b"] - raw["bn_m"] * scale
    h = h * scale + shift                               # eval BatchNorm1d
    pooled = jnp.mean(h, axis=1)                        # AdaptiveAvgPool1d(1)
    z = jax.nn.silu(pooled @ raw["hw1"] + raw["hb1"])
    return z @ raw["hw2"] + raw["hb2"]                  # (B, HORIZON)


if __name__ == "__main__":
    key = jax.random.PRNGKey(0)
    k_x, k_p = jax.random.split(key)

    B, L = 16, 64
    x = jax.random.normal(k_x, (B, 1, L), jnp.float32)  # (batch, channels=1, seq)
    raw = init_params(k_p)
    conv1_params, kernel_params = prepare_params(raw, seq_len=L)

    out = price_cnn_forward(x, conv1_params, kernel_params)
    jax.block_until_ready(out)
    assert out.shape == (B, HORIZON) and out.dtype == jnp.float32

    # Numerical check vs. a pure-JAX f32 reference of the PyTorch forward
    # (eval-mode BatchNorm).  bf16 matmul operands/weights in the kernel give
    # ~1e-2 relative deviation; 5e-2 relative-to-max is a comfortable bound.
    ref = reference_forward(x, raw)
    err = float(jnp.max(jnp.abs(out - ref)) / (jnp.max(jnp.abs(ref)) + 1e-6))
    assert err < 5e-2, f"kernel deviates from reference: rel-to-max err {err:.3e}"
    print("KERNEL_OK")
</pallas_src>

<mosaic_0001>
module attributes {stable_mosaic.version = 11 : i64} {
  func.func @price_cnn_kernel(%arg0: i32, %arg1: memref<8x72x64xbf16, #tpu.memory_space<vmem>>, %arg2: memref<3x64x64xbf16, #tpu.memory_space<vmem>>, %arg3: memref<1x64xf32, #tpu.memory_space<vmem>>, %arg4: memref<3x64x128xbf16, #tpu.memory_space<vmem>>, %arg5: memref<1x128xf32, #tpu.memory_space<vmem>>, %arg6: memref<128x256xbf16, #tpu.memory_space<vmem>>, %arg7: memref<1x256xf32, #tpu.memory_space<vmem>>, %arg8: memref<256x128xbf16, #tpu.memory_space<vmem>>, %arg9: memref<1x128xf32, #tpu.memory_space<vmem>>, %arg10: memref<8x128xf32, #tpu.memory_space<vmem>>) attributes {dimension_semantics = [#tpu.dimension_semantics<parallel>], iteration_bounds = array<i64: 2>, scalar_prefetch = 0 : i64, scratch_operands = 0 : i64, tpu.core_type = #tpu.core_type<tc>, window_params = [{transform_indices = @transform_0, window_bounds = array<i64: 8, 72, 64>}, {pipeline_mode = #tpu.pipeline_mode<synchronous>, transform_indices = @transform_1, window_bounds = array<i64: 3, 64, 64>}, {pipeline_mode = #tpu.pipeline_mode<synchronous>, transform_indices = @transform_2, window_bounds = array<i64: 1, 64>}, {pipeline_mode = #tpu.pipeline_mode<synchronous>, transform_indices = @transform_3, window_bounds = array<i64: 3, 64, 128>}, {pipeline_mode = #tpu.pipeline_mode<synchronous>, transform_indices = @transform_4, window_bounds = array<i64: 1, 128>}, {pipeline_mode = #tpu.pipeline_mode<synchronous>, transform_indices = @transform_5, window_bounds = array<i64: 128, 256>}, {pipeline_mode = #tpu.pipeline_mode<synchronous>, transform_indices = @transform_6, window_bounds = array<i64: 1, 256>}, {pipeline_mode = #tpu.pipeline_mode<synchronous>, transform_indices = @transform_7, window_bounds = array<i64: 256, 128>}, {pipeline_mode = #tpu.pipeline_mode<synchronous>, transform_indices = @transform_8, window_bounds = array<i64: 1, 128>}, {transform_indices = @transform_9, window_bounds = array<i64: 8, 128>}]} {
    %c0 = arith.constant 0 : index
    %c0_0 = arith.constant 0 : index
    %c0_1 = arith.constant 0 : index
    %0 = vector.load %arg1[%c0, %c0_0, %c0_1] : memref<8x72x64xbf16, #tpu.memory_space<vmem>>, vector<8x72x64xbf16>
    %1 = arith.extf %0 : vector<8x72x64xbf16> to vector<8x72x64xf32>
    %2 = vector.extract_strided_slice %1 {offsets = [0, 0, 0], sizes = [8, 64, 64], strides = [1, 1, 1]} : vector<8x72x64xf32> to vector<8x64x64xf32>
    %3 = vector.extract_strided_slice %1 {offsets = [0, 4, 0], sizes = [8, 64, 64], strides = [1, 1, 1]} : vector<8x72x64xf32> to vector<8x64x64xf32>
    %4 = vector.extract_strided_slice %1 {offsets = [0, 8, 0], sizes = [8, 64, 64], strides = [1, 1, 1]} : vector<8x72x64xf32> to vector<8x64x64xf32>
    %5 = vector.shape_cast %2 : vector<8x64x64xf32> to vector<512x64xf32>
    %6 = arith.truncf %5 : vector<512x64xf32> to vector<512x64xbf16>
    %c0_2 = arith.constant 0 : index
    %c0_3 = arith.constant 0 : index
    %c0_4 = arith.constant 0 : index
    %7 = vector.load %arg2[%c0_2, %c0_3, %c0_4] : memref<3x64x64xbf16, #tpu.memory_space<vmem>>, vector<1x64x64xbf16>
    %8 = vector.shape_cast %7 : vector<1x64x64xbf16> to vector<64x64xbf16>
    %cst = arith.constant dense<0.000000e+00> : vector<512x64xf32>
    %9 = tpu.matmul %6, %8, %cst {dimension_numbers = #tpu.dot_dimension_numbers<[1], [0], [0], [1], [0, 0, 1, 1], [], []>} : vector<512x64xbf16>, vector<64x64xbf16>, vector<512x64xf32> -> vector<512x64xf32>
    %10 = vector.shape_cast %3 : vector<8x64x64xf32> to vector<512x64xf32>
    %11 = arith.truncf %10 : vector<512x64xf32> to vector<512x64xbf16>
    %c1 = arith.constant 1 : index
    %c0_5 = arith.constant 0 : index
    %c0_6 = arith.constant 0 : index
    %12 = vector.load %arg2[%c1, %c0_5, %c0_6] : memref<3x64x64xbf16, #tpu.memory_space<vmem>>, vector<1x64x64xbf16>
    %13 = vector.shape_cast %12 : vector<1x64x64xbf16> to vector<64x64xbf16>
    %cst_7 = arith.constant dense<0.000000e+00> : vector<512x64xf32>
    %14 = tpu.matmul %11, %13, %cst_7 {dimension_numbers = #tpu.dot_dimension_numbers<[1], [0], [0], [1], [0, 0, 1, 1], [], []>} : vector<512x64xbf16>, vector<64x64xbf16>, vector<512x64xf32> -> vector<512x64xf32>
    %15 = arith.addf %9, %14 : vector<512x64xf32>
    %16 = vector.shape_cast %4 : vector<8x64x64xf32> to vector<512x64xf32>
    %17 = arith.truncf %16 : vector<512x64xf32> to vector<512x64xbf16>
    %c2 = arith.constant 2 : index
    %c0_8 = arith.constant 0 : index
    %c0_9 = arith.constant 0 : index
    %18 = vector.load %arg2[%c2, %c0_8, %c0_9] : memref<3x64x64xbf16, #tpu.memory_space<vmem>>, vector<1x64x64xbf16>
    %19 = vector.shape_cast %18 : vector<1x64x64xbf16> to vector<64x64xbf16>
    %cst_10 = arith.constant dense<0.000000e+00> : vector<512x64xf32>
    %20 = tpu.matmul %17, %19, %cst_10 {dimension_numbers = #tpu.dot_dimension_numbers<[1], [0], [0], [1], [0, 0, 1, 1], [], []>} : vector<512x64xbf16>, vector<64x64xbf16>, vector<512x64xf32> -> vector<512x64xf32>
    %21 = arith.addf %15, %20 : vector<512x64xf32>
    %c0_11 = arith.constant 0 : index
    %c0_12 = arith.constant 0 : index
    %22 = vector.load %arg3[%c0_11, %c0_12] : memref<1x64xf32, #tpu.memory_space<vmem>>, vector<1x64xf32>
    %23 = vector.broadcast %22 : vector<1x64xf32> to vector<512x64xf32>
    %24 = arith.addf %21, %23 : vector<512x64xf32>
    %25 = arith.negf %24 : vector<512x64xf32>
    %26 = math.exp %25 : vector<512x64xf32>
    %cst_13 = arith.constant 1.000000e+00 : f32
    %27 = vector.broadcast %cst_13 : f32 to vector<512x64xf32>
    %28 = arith.addf %27, %26 : vector<512x64xf32>
    %29 = arith.divf %27, %28 : vector<512x64xf32>
    %30 = arith.mulf %24, %29 : vector<512x64xf32>
    %31 = vector.shape_cast %30 : vector<512x64xf32> to vector<8x64x64xf32>
    %cst_14 = arith.constant 0.000000e+00 : f32
    %32 = vector.broadcast %cst_14 : f32 to vector<8x8x64xf32>
    %33 = vector.extract_strided_slice %31 {offsets = [0, 0, 0], sizes = [8, 56, 64], strides = [1, 1, 1]} : vector<8x64x64xf32> to vector<8x56x64xf32>
    %34 = tpu.concatenate %32, %33 in 1 : vector<8x8x64xf32>, vector<8x56x64xf32> -> vector<8x64x64xf32>
    %35 = vector.extract_strided_slice %31 {offsets = [0, 8, 0], sizes = [8, 56, 64], strides = [1, 1, 1]} : vector<8x64x64xf32> to vector<8x56x64xf32>
    %36 = tpu.concatenate %35, %32 in 1 : vector<8x56x64xf32>, vector<8x8x64xf32> -> vector<8x64x64xf32>
    %37 = vector.shape_cast %34 : vector<8x64x64xf32> to vector<512x64xf32>
    %38 = arith.truncf %37 : vector<512x64xf32> to vector<512x64xbf16>
    %c0_15 = arith.constant 0 : index
    %c0_16 = arith.constant 0 : index
    %c0_17 = arith.constant 0 : index
    %39 = vector.load %arg4[%c0_15, %c0_16, %c0_17] : memref<3x64x128xbf16, #tpu.memory_space<vmem>>, vector<1x64x128xbf16>
    %40 = vector.shape_cast %39 : vector<1x64x128xbf16> to vector<64x128xbf16>
    %cst_18 = arith.constant dense<0.000000e+00> : vector<512x128xf32>
    %41 = tpu.matmul %38, %40, %cst_18 {dimension_numbers = #tpu.dot_dimension_numbers<[1], [0], [0], [1], [0, 0, 1, 1], [], []>} : vector<512x64xbf16>, vector<64x128xbf16>, vector<512x128xf32> -> vector<512x128xf32>
    %42 = arith.truncf %30 : vector<512x64xf32> to vector<512x64xbf16>
    %c1_19 = arith.constant 1 : index
    %c0_20 = arith.constant 0 : index
    %c0_21 = arith.constant 0 : index
    %43 = vector.load %arg4[%c1_19, %c0_20, %c0_21] : memref<3x64x128xbf16, #tpu.memory_space<vmem>>, vector<1x64x128xbf16>
    %44 = vector.shape_cast %43 : vector<1x64x128xbf16> to vector<64x128xbf16>
    %cst_22 = arith.constant dense<0.000000e+00> : vector<512x128xf32>
    %45 = tpu.matmul %42, %44, %cst_22 {dimension_numbers = #tpu.dot_dimension_numbers<[1], [0], [0], [1], [0, 0, 1, 1], [], []>} : vector<512x64xbf16>, vector<64x128xbf16>, vector<512x128xf32> -> vector<512x128xf32>
    %46 = arith.addf %41, %45 : vector<512x128xf32>
    %47 = vector.shape_cast %36 : vector<8x64x64xf32> to vector<512x64xf32>
    %48 = arith.truncf %47 : vector<512x64xf32> to vector<512x64xbf16>
    %c2_23 = arith.constant 2 : index
    %c0_24 = arith.constant 0 : index
    %c0_25 = arith.constant 0 : index
    %49 = vector.load %arg4[%c2_23, %c0_24, %c0_25] : memref<3x64x128xbf16, #tpu.memory_space<vmem>>, vector<1x64x128xbf16>
    %50 = vector.shape_cast %49 : vector<1x64x128xbf16> to vector<64x128xbf16>
    %cst_26 = arith.constant dense<0.000000e+00> : vector<512x128xf32>
    %51 = tpu.matmul %48, %50, %cst_26 {dimension_numbers = #tpu.dot_dimension_numbers<[1], [0], [0], [1], [0, 0, 1, 1], [], []>} : vector<512x64xbf16>, vector<64x128xbf16>, vector<512x128xf32> -> vector<512x128xf32>
    %52 = arith.addf %46, %51 : vector<512x128xf32>
    %c0_27 = arith.constant 0 : index
    %c0_28 = arith.constant 0 : index
    %53 = vector.load %arg5[%c0_27, %c0_28] : memref<1x128xf32, #tpu.memory_space<vmem>>, vector<1x128xf32>
    %54 = vector.broadcast %53 : vector<1x128xf32> to vector<512x128xf32>
    %55 = arith.addf %52, %54 : vector<512x128xf32>
    %56 = arith.negf %55 : vector<512x128xf32>
    %57 = math.exp %56 : vector<512x128xf32>
    %cst_29 = arith.constant 1.000000e+00 : f32
    %58 = vector.broadcast %cst_29 : f32 to vector<512x128xf32>
    %59 = arith.addf %58, %57 : vector<512x128xf32>
    %60 = arith.divf %58, %59 : vector<512x128xf32>
    %61 = arith.mulf %55, %60 : vector<512x128xf32>
    %62 = vector.shape_cast %61 : vector<512x128xf32> to vector<8x64x128xf32>
    %cst_30 = arith.constant dense<0.000000e+00> : vector<8x128xf32>
    %63 = vector.multi_reduction <add>, %62, %cst_30 [1] : vector<8x64x128xf32> to vector<8x128xf32>
    %64 = arith.truncf %63 : vector<8x128xf32> to vector<8x128xbf16>
    %c0_31 = arith.constant 0 : index
    %c0_32 = arith.constant 0 : index
    %65 = vector.load %arg6[%c0_31, %c0_32] : memref<128x256xbf16, #tpu.memory_space<vmem>>, vector<128x256xbf16>
    %cst_33 = arith.constant dense<0.000000e+00> : vector<8x256xf32>
    %66 = tpu.matmul %64, %65, %cst_33 {dimension_numbers = #tpu.dot_dimension_numbers<[1], [0], [0], [1], [0, 0, 1, 1], [], []>} : vector<8x128xbf16>, vector<128x256xbf16>, vector<8x256xf32> -> vector<8x256xf32>
    %c0_34 = arith.constant 0 : index
    %c0_35 = arith.constant 0 : index
    %67 = vector.load %arg7[%c0_34, %c0_35] : memref<1x256xf32, #tpu.memory_space<vmem>>, vector<1x256xf32>
    %68 = vector.broadcast %67 : vector<1x256xf32> to vector<8x256xf32>
    %69 = arith.addf %66, %68 : vector<8x256xf32>
    %70 = arith.negf %69 : vector<8x256xf32>
    %71 = math.exp %70 : vector<8x256xf32>
    %cst_36 = arith.constant 1.000000e+00 : f32
    %72 = vector.broadcast %cst_36 : f32 to vector<8x256xf32>
    %73 = arith.addf %72, %71 : vector<8x256xf32>
    %74 = arith.divf %72, %73 : vector<8x256xf32>
    %75 = arith.mulf %69, %74 : vector<8x256xf32>
    %76 = arith.truncf %75 : vector<8x256xf32> to vector<8x256xbf16>
    %c0_37 = arith.constant 0 : index
    %c0_38 = arith.constant 0 : index
    %77 = vector.load %arg8[%c0_37, %c0_38] : memref<256x128xbf16, #tpu.memory_space<vmem>>, vector<256x128xbf16>
    %cst_39 = arith.constant dense<0.000000e+00> : vector<8x128xf32>
    %78 = tpu.matmul %76, %77, %cst_39 {dimension_numbers = #tpu.dot_dimension_numbers<[1], [0], [0], [1], [0, 0, 1, 1], [], []>} : vector<8x256xbf16>, vector<256x128xbf16>, vector<8x128xf32> -> vector<8x128xf32>
    %c0_40 = arith.constant 0 : index
    %c0_41 = arith.constant 0 : index
    %79 = vector.load %arg9[%c0_40, %c0_41] : memref<1x128xf32, #tpu.memory_space<vmem>>, vector<1x128xf32>
    %80 = vector.broadcast %79 : vector<1x128xf32> to vector<8x128xf32>
    %81 = arith.addf %78, %80 : vector<8x128xf32>
    %c0_42 = arith.constant 0 : index
    %c0_43 = arith.constant 0 : index
    %82 = vector.load %arg10[%c0_42, %c0_43] : memref<8x128xf32, #tpu.memory_space<vmem>>, vector<8x128xf32>
    tpu.vector_store %arg10[%c0_42, %c0_43], %81 {strides = array<i32>} : memref<8x128xf32, #tpu.memory_space<vmem>>, vector<8x128xf32>,
    return
  }
  func.func @transform_0(%arg0: i32) -> (i32, i32, i32) {
    %c0_i32 = arith.constant 0 : i32
    %c0_i32_0 = arith.constant 0 : i32
    %c0_i32_1 = arith.constant 0 : i32
    return %arg0, %c0_i32, %c0_i32_0 : i32, i32, i32
  }
  func.func @transform_1(%arg0: i32) -> (i32, i32, i32) {
    %c0_i32 = arith.constant 0 : i32
    %c0_i32_0 = arith.constant 0 : i32
    %c0_i32_1 = arith.constant 0 : i32
    %c0_i32_2 = arith.constant 0 : i32
    return %c0_i32, %c0_i32_0, %c0_i32_1 : i32, i32, i32
  }
  func.func @transform_2(%arg0: i32) -> (i32, i32) {
    %c0_i32 = arith.constant 0 : i32
    %c0_i32_0 = arith.constant 0 : i32
    %c0_i32_1 = arith.constant 0 : i32
    return %c0_i32, %c0_i32_0 : i32, i32
  }
  func.func @transform_3(%arg0: i32) -> (i32, i32, i32) {
    %c0_i32 = arith.constant 0 : i32
    %c0_i32_0 = arith.constant 0 : i32
    %c0_i32_1 = arith.constant 0 : i32
    %c0_i32_2 = arith.constant 0 : i32
    return %c0_i32, %c0_i32_0, %c0_i32_1 : i32, i32, i32
  }
  func.func @transform_4(%arg0: i32) -> (i32, i32) {
    %c0_i32 = arith.constant 0 : i32
    %c0_i32_0 = arith.constant 0 : i32
    %c0_i32_1 = arith.constant 0 : i32
    return %c0_i32, %c0_i32_0 : i32, i32
  }
  func.func @transform_5(%arg0: i32) -> (i32, i32) {
    %c0_i32 = arith.constant 0 : i32
    %c0_i32_0 = arith.constant 0 : i32
    %c0_i32_1 = arith.constant 0 : i32
    return %c0_i32, %c0_i32_0 : i32, i32
  }
  func.func @transform_6(%arg0: i32) -> (i32, i32) {
    %c0_i32 = arith.constant 0 : i32
    %c0_i32_0 = arith.constant 0 : i32
    %c0_i32_1 = arith.constant 0 : i32
    return %c0_i32, %c0_i32_0 : i32, i32
  }
  func.func @transform_7(%arg0: i32) -> (i32, i32) {
    %c0_i32 = arith.constant 0 : i32
    %c0_i32_0 = arith.constant 0 : i32
    %c0_i32_1 = arith.constant 0 : i32
    return %c0_i32, %c0_i32_0 : i32, i32
  }
  func.func @transform_8(%arg0: i32) -> (i32, i32) {
    %c0_i32 = arith.constant 0 : i32
    %c0_i32_0 = arith.constant 0 : i32
    %c0_i32_1 = arith.constant 0 : i32
    return %c0_i32, %c0_i32_0 : i32, i32
  }
  func.func @transform_9(%arg0: i32) -> (i32, i32) {
    %c0_i32 = arith.constant 0 : i32
    %c0_i32_0 = arith.constant 0 : i32
    return %arg0, %c0_i32 : i32, i32
  }
}

</mosaic_0001>

<llo_original>
// kernel: price_cnn_forward.1
$region0: #{price_cnn_forward.1}
  #allocation0 [shape = 'u32[]', space=smem, size = 0x4, offset = 0x4, fixed_abs, tag = 'smem constant byte address 0x4 - core index']
  #allocation1 [shape = 'u32[144,128]{1,0:T(1,128)}', space=vmem, size = 0x12000, scoped, tag = 'internal scratch']
  %s0 = inlined_call_operand.vmem [shape: bf16[16,72,64], index: 0, kind: input, shape index: {}]
  %s1 = inlined_call_operand.vmem [shape: bf16[3,64,64], index: 1, kind: input, shape index: {}]
  %s2 = inlined_call_operand.vmem [shape: f32[1,64], index: 2, kind: input, shape index: {}]
  %s3 = inlined_call_operand.vmem [shape: bf16[3,64,128], index: 3, kind: input, shape index: {}]
  %s4 = inlined_call_operand.vmem [shape: f32[1,128], index: 4, kind: input, shape index: {}]
  %s5 = inlined_call_operand.vmem [shape: bf16[128,256], index: 5, kind: input, shape index: {}]
  %s6 = inlined_call_operand.vmem [shape: f32[1,256], index: 6, kind: input, shape index: {}]
  %s7 = inlined_call_operand.vmem [shape: bf16[256,128], index: 7, kind: input, shape index: {}]
  %s8 = inlined_call_operand.vmem [shape: f32[1,128], index: 8, kind: input, shape index: {}]
  %s9 = inlined_call_operand.hbm [shape: f32[16,128], index: 9, kind: output, shape index: {}]
  %s10 = sld [smem:[#allocation0]]
  $region69: #{price_cnn_forward.1} parent=0
    _
  %s12 = ssub.s32 1, %s10
  %s13 = scalar_select 0, %s12, %s10
  $region1: #{price_cnn_forward.1} parent=0
    #allocation2 [shape = 'u8[8192]{0}', space=vmem, size = 0x2000, scoped, tag = 'output window, operand 0']
    #allocation3 [shape = 's32[2]{0}', space=sflag, size = 0x8, scoped, tag = 'scoped memory for price_cnn_forward.1']
    %14 = vsyncpa [#allocation3], 0
    %s15 = scalar_lea.sflag [#allocation3], 1
    %16 = vsyncpa %s15, 0
    loop: start=0, step=1, limit=4
    $region2: #{price_cnn_forward.1} parent=1 // loop_pre_header
      _
    $region3: #{price_cnn_forward.1} parent=1 // loop_header
      %s18 = sphi 0, %s22
      %p19 = scmp.ge.s32.totalorder %s18, 4
      %s28 = sphi 0, %s30
      %s31 = sphi 0, %s28
      %s32 = sphi 0, %s31
      %s48 = sphi 0, %s32
      %s52 = sphi 0, %s52
      %s54 = sphi 0, %s52
      %s55 = sphi 0, %s54
      %s69 = sphi 0, %s55
      %s73 = sphi 0, %s73
      %s75 = sphi 0, %s73
      %s76 = sphi 0, %s75
      %s90 = sphi 0, %s76
      %s94 = sphi 0, %s94
      %s96 = sphi 0, %s94
      %s97 = sphi 0, %s96
      %s111 = sphi 0, %s97
      %s115 = sphi 0, %s115
      %s117 = sphi 0, %s115
      %s118 = sphi 0, %s117
      %s132 = sphi 0, %s118
      %s136 = sphi 0, %s136
      %s138 = sphi 0, %s136
      %s139 = sphi 0, %s138
      %s153 = sphi 0, %s139
      %s157 = sphi 0, %s157
      %s159 = sphi 0, %s157
      %s160 = sphi 0, %s159
      %s174 = sphi 0, %s160
      %s178 = sphi 0, %s178
      %s180 = sphi 0, %s178
      %s181 = sphi 0, %s180
      %s195 = sphi 0, %s181
      %s199 = sphi 0, %s199
      %s201 = sphi 0, %s199
      %s202 = sphi 0, %s201
      %s216 = sphi 0, %s202
      %s222 = sphi 0, %s224
      %s225 = sphi 0, %s222
      %s226 = sphi 0, %s225
      %s242 = sphi 0, %s226
    $region4: #{price_cnn_forward.1} parent=1 // loop_header_branch
      %21 = sbr.rel (%p19) target = $region8
    $region5: #{price_cnn_forward.1} parent=1 // loop_body
      %s23 = ssub.s32 %s18, 1
      %s24 = ssub.s32 %s18, 2
      %s25 = sadd.s32 %s18, 1
      %s26 = ssub.s32 %s18, %s25
      %p27 = scmp.eq.s32.totalorder %s26, 0
      %s29 = sadd.s32 %s28, 1
      %s30 = scalar_select %p27, %s28, %s29
      %p33 = pneg %p27
      %p34 = scmp.eq.s32.totalorder %s18, 1
      %p35 = por %p33, %p34
      %p36 = scmp.ne.s32.totalorder %s28, %s31
      %p37 = scmp.eq.s32.totalorder %s18, 0
      %p38 = por %p36, %p37
      %p39 = scmp.ne.s32.totalorder %s28, %s31
      %p40 = scmp.eq.s32.totalorder %s23, 1
      %p41 = por %p39, %p40
      %p42 = scmp.ne.s32.totalorder %s31, %s32
      %p43 = scmp.eq.s32.totalorder %s23, 0
      %p44 = por %p42, %p43
      %p45 = scmp.ne.s32.totalorder %s31, %s32
      %p46 = scmp.eq.s32.totalorder %s24, 1
      %p47 = por %p45, %p46
      %p49 = scmp.ne.s32.totalorder %s32, %s48
      %p50 = scmp.eq.s32.totalorder %s24, 0
      %p51 = por %p49, %p50
      %s53 = sadd.s32 %s52, 1
      %p56 = scmp.eq.s32.totalorder %s18, 1
      %p57 = scmp.ne.s32.totalorder %s52, %s54
      %p58 = scmp.eq.s32.totalorder %s18, 0
      %p59 = por %p57, %p58
      %p60 = scmp.ne.s32.totalorder %s52, %s54
      %p61 = scmp.eq.s32.totalorder %s23, 1
      %p62 = por %p60, %p61
      %p63 = scmp.ne.s32.totalorder %s54, %s55
      %p64 = scmp.eq.s32.totalorder %s23, 0
      %p65 = por %p63, %p64
      %p66 = scmp.ne.s32.totalorder %s54, %s55
      %p67 = scmp.eq.s32.totalorder %s24, 1
      %p68 = por %p66, %p67
      %p70 = scmp.ne.s32.totalorder %s55, %s69
      %p71 = scmp.eq.s32.totalorder %s24, 0
      %p72 = por %p70, %p71
      %s74 = sadd.s32 %s73, 1
      %p77 = scmp.eq.s32.totalorder %s18, 1
      %p78 = scmp.ne.s32.totalorder %s73, %s75
      %p79 = scmp.eq.s32.totalorder %s18, 0
      %p80 = por %p78, %p79
      %p81 = scmp.ne.s32.totalorder %s73, %s75
      %p82 = scmp.eq.s32.totalorder %s23, 1
      %p83 = por %p81, %p82
      %p84 = scmp.ne.s32.totalorder %s75, %s76
      %p85 = scmp.eq.s32.totalorder %s23, 0
      %p86 = por %p84, %p85
      %p87 = scmp.ne.s32.totalorder %s75, %s76
      %p88 = scmp.eq.s32.totalorder %s24, 1
      %p89 = por %p87, %p88
      %p91 = scmp.ne.s32.totalorder %s76, %s90
      %p92 = scmp.eq.s32.totalorder %s24, 0
      %p93 = por %p91, %p92
      %s95 = sadd.s32 %s94, 1
      %p98 = scmp.eq.s32.totalorder %s18, 1
      %p99 = scmp.ne.s32.totalorder %s94, %s96
      %p100 = scmp.eq.s32.totalorder %s18, 0
      %p101 = por %p99, %p100
      %p102 = scmp.ne.s32.totalorder %s94, %s96
      %p103 = scmp.eq.s32.totalorder %s23, 1
      %p104 = por %p102, %p103
      %p105 = scmp.ne.s32.totalorder %s96, %s97
      %p106 = scmp.eq.s32.totalorder %s23, 0
      %p107 = por %p105, %p106
      %p108 = scmp.ne.s32.totalorder %s96, %s97
      %p109 = scmp.eq.s32.totalorder %s24, 1
      %p110 = por %p108, %p109
      %p112 = scmp.ne.s32.totalorder %s97, %s111
      %p113 = scmp.eq.s32.totalorder %s24, 0
      %p114 = por %p112, %p113
      %s116 = sadd.s32 %s115, 1
      %p119 = scmp.eq.s32.totalorder %s18, 1
      %p120 = scmp.ne.s32.totalorder %s115, %s117
      %p121 = scmp.eq.s32.totalorder %s18, 0
      %p122 = por %p120, %p121
      %p123 = scmp.ne.s32.totalorder %s115, %s117
      %p124 = scmp.eq.s32.totalorder %s23, 1
      %p125 = por %p123, %p124
      %p126 = scmp.ne.s32.totalorder %s117, %s118
      %p127 = scmp.eq.s32.totalorder %s23, 0
      %p128 = por %p126, %p127
      %p129 = scmp.ne.s32.totalorder %s117, %s118
      %p130 = scmp.eq.s32.totalorder %s24, 1
      %p131 = por %p129, %p130
      %p133 = scmp.ne.s32.totalorder %s118, %s132
      %p134 = scmp.eq.s32.totalorder %s24, 0
      %p135 = por %p133, %p134
      %s137 = sadd.s32 %s136, 1
      %p140 = scmp.eq.s32.totalorder %s18, 1
      %p141 = scmp.ne.s32.totalorder %s136, %s138
      %p142 = scmp.eq.s32.totalorder %s18, 0
      %p143 = por %p141, %p142
      %p144 = scmp.ne.s32.totalorder %s136, %s138
      %p145 = scmp.eq.s32.totalorder %s23, 1
      %p146 = por %p144, %p145
      %p147 = scmp.ne.s32.totalorder %s138, %s139
      %p148 = scmp.eq.s32.totalorder %s23, 0
      %p149 = por %p147, %p148
      %p150 = scmp.ne.s32.totalorder %s138, %s139
      %p151 = scmp.eq.s32.totalorder %s24, 1
      %p152 = por %p150, %p151
      %p154 = scmp.ne.s32.totalorder %s139, %s153
      %p155 = scmp.eq.s32.totalorder %s24, 0
      %p156 = por %p154, %p155
      %s158 = sadd.s32 %s157, 1
      %p161 = scmp.eq.s32.totalorder %s18, 1
      %p162 = scmp.ne.s32.totalorder %s157, %s159
      %p163 = scmp.eq.s32.totalorder %s18, 0
      %p164 = por %p162, %p163
      %p165 = scmp.ne.s32.totalorder %s157, %s159
      %p166 = scmp.eq.s32.totalorder %s23, 1
      %p167 = por %p165, %p166
      %p168 = scmp.ne.s32.totalorder %s159, %s160
      %p169 = scmp.eq.s32.totalorder %s23, 0
      %p170 = por %p168, %p169
      %p171 = scmp.ne.s32.totalorder %s159, %s160
      %p172 = scmp.eq.s32.totalorder %s24, 1
      %p173 = por %p171, %p172
      %p175 = scmp.ne.s32.totalorder %s160, %s174
      %p176 = scmp.eq.s32.totalorder %s24, 0
      %p177 = por %p175, %p176
      %s179 = sadd.s32 %s178, 1
      %p182 = scmp.eq.s32.totalorder %s18, 1
      %p183 = scmp.ne.s32.totalorder %s178, %s180
      %p184 = scmp.eq.s32.totalorder %s18, 0
      %p185 = por %p183, %p184
      %p186 = scmp.ne.s32.totalorder %s178, %s180
      %p187 = scmp.eq.s32.totalorder %s23, 1
      %p188 = por %p186, %p187
      %p189 = scmp.ne.s32.totalorder %s180, %s181
      %p190 = scmp.eq.s32.totalorder %s23, 0
      %p191 = por %p189, %p190
      %p192 = scmp.ne.s32.totalorder %s180, %s181
      %p193 = scmp.eq.s32.totalorder %s24, 1
      %p194 = por %p192, %p193
      %p196 = scmp.ne.s32.totalorder %s181, %s195
      %p197 = scmp.eq.s32.totalorder %s24, 0
      %p198 = por %p196, %p197
      %s200 = sadd.s32 %s199, 1
      %p203 = scmp.eq.s32.totalorder %s18, 1
      %p204 = scmp.ne.s32.totalorder %s199, %s201
      %p205 = scmp.eq.s32.totalorder %s18, 0
      %p206 = por %p204, %p205
      %p207 = scmp.ne.s32.totalorder %s199, %s201
      %p208 = scmp.eq.s32.totalorder %s23, 1
      %p209 = por %p207, %p208
      %p210 = scmp.ne.s32.totalorder %s201, %s202
      %p211 = scmp.eq.s32.totalorder %s23, 0
      %p212 = por %p210, %p211
      %p213 = scmp.ne.s32.totalorder %s201, %s202
      %p214 = scmp.eq.s32.totalorder %s24, 1
      %p215 = por %p213, %p214
      %p217 = scmp.ne.s32.totalorder %s202, %s216
      %p218 = scmp.eq.s32.totalorder %s24, 0
      %p219 = por %p217, %p218
      %s220 = ssub.s32 %s18, %s25
      %p221 = scmp.eq.s32.totalorder %s220, 0
      %s223 = sadd.s32 %s222, 1
      %s224 = scalar_select %p221, %s222, %s223
      %p227 = pneg %p221
      %p228 = scmp.eq.s32.totalorder %s18, 1
      %p229 = por %p227, %p228
      %p230 = scmp.ne.s32.totalorder %s222, %s225
      %p231 = scmp.eq.s32.totalorder %s18, 0
      %p232 = por %p230, %p231
      %p233 = scmp.ne.s32.totalorder %s222, %s225
      %p234 = scmp.eq.s32.totalorder %s23, 1
      %p235 = por %p233, %p234
      %p236 = scmp.ne.s32.totalorder %s225, %s226
      %p237 = scmp.eq.s32.totalorder %s23, 0
      %p238 = por %p236, %p237
      %p239 = scmp.ne.s32.totalorder %s225, %s226
      %p240 = scmp.eq.s32.totalorder %s24, 1
      %p241 = por %p239, %p240
      %p243 = scmp.ne.s32.totalorder %s226, %s242
      %p244 = scmp.eq.s32.totalorder %s24, 0
      %p245 = por %p243, %p244
      %p246 = scmp.le.s32.totalorder 1, %s18
      %p247 = scmp.lt.s32.totalorder %s18, 3
      %p248 = pnand %p246, %p247
      %p249 = pneg %p248
      // Predicated region
      $region9: #{price_cnn_forward.1} parent=5 // pred_check
        _
      $region10: #{price_cnn_forward.1} parent=5 // pred_check_branch
        %251 = sbr.rel (%p248) target = $region12
      $region11: #{price_cnn_forward.1} parent=5 // pred_region
        %s252 = ssub.s32 %s18, 1
        // Predicated region
        $region13: #{price_cnn_forward.1} parent=11 // pred_check
          %p253 = pneg %p65
        $region14: #{price_cnn_forward.1} parent=11 // pred_check_branch
          %255 = sbr.rel (%p253) target = $region16
        $region15: #{price_cnn_forward.1} parent=11 // pred_region
          _
        $region16: #{price_cnn_forward.1} parent=11 // pred_fallthru
          _
        // Predicated region
        $region17: #{price_cnn_forward.1} parent=11 // pred_check
          %p256 = pneg %p86
        $region18: #{price_cnn_forward.1} parent=11 // pred_check_branch
          %258 = sbr.rel (%p256) target = $region20
        $region19: #{price_cnn_forward.1} parent=11 // pred_region
          _
        $region20: #{price_cnn_forward.1} parent=11 // pred_fallthru
          _
        // Predicated region
        $region21: #{price_cnn_forward.1} parent=11 // pred_check
          %p259 = pneg %p107
        $region22: #{price_cnn_forward.1} parent=11 // pred_check_branch
          %261 = sbr.rel (%p259) target = $region24
        $region23: #{price_cnn_forward.1} parent=11 // pred_region
          _
        $region24: #{price_cnn_forward.1} parent=11 // pred_fallthru
          _
        // Predicated region
        $region25: #{price_cnn_forward.1} parent=11 // pred_check
          %p262 = pneg %p128
        $region26: #{price_cnn_forward.1} parent=11 // pred_check_branch
          %264 = sbr.rel (%p262) target = $region28
        $region27: #{price_cnn_forward.1} parent=11 // pred_region
          _
        $region28: #{price_cnn_forward.1} parent=11 // pred_fallthru
          _
        // Predicated region
        $region29: #{price_cnn_forward.1} parent=11 // pred_check
          %p265 = pneg %p149
        $region30: #{price_cnn_forward.1} parent=11 // pred_check_branch
          %267 = sbr.rel (%p265) target = $region32
        $region31: #{price_cnn_forward.1} parent=11 // pred_region
          _
        $region32: #{price_cnn_forward.1} parent=11 // pred_fallthru
          _
        // Predicated region
        $region33: #{price_cnn_forward.1} parent=11 // pred_check
          %p268 = pneg %p170
        $region34: #{price_cnn_forward.1} parent=11 // pred_check_branch
          %270 = sbr.rel (%p268) target = $region36
        $region35: #{price_cnn_forward.1} parent=11 // pred_region
          _
        $region36: #{price_cnn_forward.1} parent=11 // pred_fallthru
          _
        // Predicated region
        $region37: #{price_cnn_forward.1} parent=11 // pred_check
          %p271 = pneg %p191
        $region38: #{price_cnn_forward.1} parent=11 // pred_check_branch
          %273 = sbr.rel (%p271) target = $region40
        $region39: #{price_cnn_forward.1} parent=11 // pred_region
          _
        $region40: #{price_cnn_forward.1} parent=11 // pred_fallthru
          _
        // Predicated region
        $region41: #{price_cnn_forward.1} parent=11 // pred_check
          %p274 = pneg %p212
        $region42: #{price_cnn_forward.1} parent=11 // pred_check_branch
          %276 = sbr.rel (%p274) target = $region44
        $region43: #{price_cnn_forward.1} parent=11 // pred_region
          _
        $region44: #{price_cnn_forward.1} parent=11 // pred_fallthru
          _
      $region12: #{price_cnn_forward.1} parent=5 // pred_fallthru
        _
      %p277 = scmp.lt.s32.totalorder %s18, 2
      // Predicated region
      $region45: #{price_cnn_forward.1} parent=5 // pred_check
        %p278 = pneg %p277
      $region46: #{price_cnn_forward.1} parent=5 // pred_check_branch
        %280 = sbr.rel (%p278) target = $region48
      $region47: #{price_cnn_forward.1} parent=5 // pred_region
        // Predicated region
        $region49: #{price_cnn_forward.1} parent=47 // pred_check
          %p281 = pneg %p38
        $region50: #{price_cnn_forward.1} parent=47 // pred_check_branch
          %283 = sbr.rel (%p281) target = $region52
        $region51: #{price_cnn_forward.1} parent=47 // pred_region
          %s284 = smul.u32 8, %s18
          %p285 = scmp.lt.s32.totalorder %s284, 15
          %s286 = scalar_select %p285, %s284, 15
          %s287 = smul.addr %s286, 9
          %s288 = smul.addr %s287, 4
          %s289 = scalar_lea.vmem %s0, %s288
          %s290 = smul.u32 8, %s18
        $region52: #{price_cnn_forward.1} parent=47 // pred_fallthru
          _
      $region48: #{price_cnn_forward.1} parent=5 // pred_fallthru
        _
      %p291 = scmp.le.s32.totalorder 1, %s18
      %p292 = scmp.lt.s32.totalorder %s18, 3
      %p293 = pnand %p291, %p292
      %p294 = pneg %p293
      // Predicated region
      $region53: #{price_cnn_forward.1} parent=5 // pred_check
        _
      $region54: #{price_cnn_forward.1} parent=5 // pred_check_branch
        %296 = sbr.rel (%p293) target = $region56
      $region55: #{price_cnn_forward.1} parent=5 // pred_region
        %s297 = ssub.s32 %s18, 1
        %s298 = smul.u32 8, %s23
        %p299 = scmp.lt.s32.totalorder %s298, 15
        %s300 = scalar_select %p299, %s298, 15
        %s301 = smul.addr %s300, 9
        %s302 = smul.addr %s301, 4
        %s303 = scalar_lea.vmem %s0, %s302
        %p304 = pneg %p44
        %p305 = pneg %p41
        %p306 = pneg %p65
        %p307 = pneg %p62
        %p308 = pneg %p86
        %p309 = pneg %p83
        %p310 = pneg %p107
        %p311 = pneg %p104
        %p312 = pneg %p128
        %p313 = pneg %p125
        %p314 = pneg %p149
        %p315 = pneg %p146
        %p316 = pneg %p170
        %p317 = pneg %p167
        %p318 = pneg %p191
        %p319 = pneg %p188
        %p320 = pneg %p212
        %p321 = pneg %p209
        %p322 = pneg %p238
        %p323 = pneg %p235
        %s324 = sand.u32 %s225, 1
        %s325 = scalar_lea.sflag [#allocation3], %s324
        %s326 = sand.u32 %s225, 1
        %s327 = smul.addr %s326, 8
        %s328 = scalar_lea.vmem [#allocation2], %s327
        %s329 = smul.u32 8, %s23
        %p330 = scmp.lt.s32.totalorder %s329, 15
        %s331 = scalar_select %p330, %s329, 15
        %s332 = smul.addr %s331, 9
        %s333 = smul.addr %s332, 4
        %s334 = scalar_lea.vmem %s0, %s333
        %s335 = smul.u32 8, %s23
        %v337 = vld [vmem:[%s334] sm:$0xf]
        %v338 = vld [vmem:[%s334 + $0x4] sm:$0xf]
        %v339 = vld [vmem:[%s334 + $0x8] sm:$0xf]
        %v340 = vld [vmem:[%s334 + $0xc] sm:$0xf]
        %v341 = vld [vmem:[%s334 + $0x10] sm:$0xf]
        %v342 = vld [vmem:[%s334 + $0x14] sm:$0xf]
        %v343 = vld [vmem:[%s334 + $0x18] sm:$0xf]
        %v344 = vld [vmem:[%s334 + $0x1c] sm:$0xf]
        %v345 = vld [vmem:[%s334 + $0x20] sm:$0xf]
        %v346 = vld [vmem:[%s334 + $0x24] sm:$0xf]
        %v347 = vld [vmem:[%s334 + $0x28] sm:$0xf]
        %v348 = vld [vmem:[%s334 + $0x2c] sm:$0xf]
        %v349 = vld [vmem:[%s334 + $0x30] sm:$0xf]
        %v350 = vld [vmem:[%s334 + $0x34] sm:$0xf]
        %v351 = vld [vmem:[%s334 + $0x38] sm:$0xf]
        %v352 = vld [vmem:[%s334 + $0x3c] sm:$0xf]
        %v353 = vld [vmem:[%s334 + $0x40] sm:$0xf]
        %v354 = vld [vmem:[%s334 + $0x44] sm:$0xf]
        %v355 = vld [vmem:[%s334 + $0x48] sm:$0xf]
        %v356 = vld [vmem:[%s334 + $0x4c] sm:$0xf]
        %v357 = vld [vmem:[%s334 + $0x50] sm:$0xf]
        %v358 = vld [vmem:[%s334 + $0x54] sm:$0xf]
        %v359 = vld [vmem:[%s334 + $0x58] sm:$0xf]
        %v360 = vld [vmem:[%s334 + $0x5c] sm:$0xf]
        %v361 = vld [vmem:[%s334 + $0x60] sm:$0xf]
        %v362 = vld [vmem:[%s334 + $0x64] sm:$0xf]
        %v363 = vld [vmem:[%s334 + $0x68] sm:$0xf]
        %v364 = vld [vmem:[%s334 + $0x6c] sm:$0xf]
        %v365 = vld [vmem:[%s334 + $0x70] sm:$0xf]
        %v366 = vld [vmem:[%s334 + $0x74] sm:$0xf]
        %v367 = vld [vmem:[%s334 + $0x78] sm:$0xf]
        %v368 = vld [vmem:[%s334 + $0x7c] sm:$0xf]
        %v369 = vld [vmem:[%s334 + $0x80] sm:$0xf]
        %v370 = vld [vmem:[%s334 + $0x84] sm:$0xf]
        %v371 = vld [vmem:[%s334 + $0x88] sm:$0xf]
        %v372 = vld [vmem:[%s334 + $0x8c] sm:$0xf]
        %v373 = vld [vmem:[%s334 + $0x90] sm:$0xf]
        %v374 = vld [vmem:[%s334 + $0x94] sm:$0xf]
        %v375 = vld [vmem:[%s334 + $0x98] sm:$0xf]
        %v376 = vld [vmem:[%s334 + $0x9c] sm:$0xf]
        %v377 = vld [vmem:[%s334 + $0xa0] sm:$0xf]
        %v378 = vld [vmem:[%s334 + $0xa4] sm:$0xf]
        %v379 = vld [vmem:[%s334 + $0xa8] sm:$0xf]
        %v380 = vld [vmem:[%s334 + $0xac] sm:$0xf]
        %v381 = vld [vmem:[%s334 + $0xb0] sm:$0xf]
        %v382 = vld [vmem:[%s334 + $0xb4] sm:$0xf]
        %v383 = vld [vmem:[%s334 + $0xb8] sm:$0xf]
        %v384 = vld [vmem:[%s334 + $0xbc] sm:$0xf]
        %v385 = vld [vmem:[%s334 + $0xc0] sm:$0xf]
        %v386 = vld [vmem:[%s334 + $0xc4] sm:$0xf]
        %v387 = vld [vmem:[%s334 + $0xc8] sm:$0xf]
        %v388 = vld [vmem:[%s334 + $0xcc] sm:$0xf]
        %v389 = vld [vmem:[%s334 + $0xd0] sm:$0xf]
        %v390 = vld [vmem:[%s334 + $0xd4] sm:$0xf]
        %v391 = vld [vmem:[%s334 + $0xd8] sm:$0xf]
        %v392 = vld [vmem:[%s334 + $0xdc] sm:$0xf]
        %v393 = vld [vmem:[%s334 + $0xe0] sm:$0xf]
        %v394 = vld [vmem:[%s334 + $0xe4] sm:$0xf]
        %v395 = vld [vmem:[%s334 + $0xe8] sm:$0xf]
        %v396 = vld [vmem:[%s334 + $0xec] sm:$0xf]
        %v397 = vld [vmem:[%s334 + $0xf0] sm:$0xf]
        %v398 = vld [vmem:[%s334 + $0xf4] sm:$0xf]
        %v399 = vld [vmem:[%s334 + $0xf8] sm:$0xf]
        %v400 = vld [vmem:[%s334 + $0xfc] sm:$0xf]
        %v401 = vld [vmem:[%s334 + $0x100] sm:$0xf]
        %v402 = vld [vmem:[%s334 + $0x104] sm:$0xf]
        %v403 = vld [vmem:[%s334 + $0x108] sm:$0xf]
        %v404 = vld [vmem:[%s334 + $0x10c] sm:$0xf]
        %v405 = vld [vmem:[%s334 + $0x110] sm:$0xf]
        %v406 = vld [vmem:[%s334 + $0x114] sm:$0xf]
        %v407 = vld [vmem:[%s334 + $0x118] sm:$0xf]
        %v408 = vld [vmem:[%s334 + $0x11c] sm:$0xf]
        %v409 = vunpack.c.l.bf16 %v337
        %v410 = vunpack.c.l.bf16 %v338
        %v411 = vunpack.c.l.bf16 %v339
        %v412 = vunpack.c.l.bf16 %v340
        %v413 = vunpack.c.l.bf16 %v341
        %v414 = vunpack.c.l.bf16 %v342
        %v415 = vunpack.c.l.bf16 %v343
        %v416 = vunpack.c.l.bf16 %v344
        %v417 = vunpack.c.l.bf16 %v345
        %v418 = vunpack.c.l.bf16 %v346
        %v419 = vunpack.c.l.bf16 %v347
        %v420 = vunpack.c.l.bf16 %v348
        %v421 = vunpack.c.l.bf16 %v349
        %v422 = vunpack.c.l.bf16 %v350
        %v423 = vunpack.c.l.bf16 %v351
        %v424 = vunpack.c.l.bf16 %v352
        %v425 = vunpack.c.l.bf16 %v353
        %v426 = vunpack.c.l.bf16 %v354
        %v427 = vunpack.c.l.bf16 %v355
        %v428 = vunpack.c.l.bf16 %v356
        %v429 = vunpack.c.l.bf16 %v357
        %v430 = vunpack.c.l.bf16 %v358
        %v431 = vunpack.c.l.bf16 %v359
        %v432 = vunpack.c.l.bf16 %v360
        %v433 = vunpack.c.l.bf16 %v361
        %v434 = vunpack.c.l.bf16 %v362
        %v435 = vunpack.c.l.bf16 %v363
        %v436 = vunpack.c.l.bf16 %v364
        %v437 = vunpack.c.l.bf16 %v365
        %v438 = vunpack.c.l.bf16 %v366
        %v439 = vunpack.c.l.bf16 %v367
        %v440 = vunpack.c.l.bf16 %v368
        %v441 = vunpack.c.l.bf16 %v369
        %v442 = vunpack.c.l.bf16 %v370
        %v443 = vunpack.c.l.bf16 %v371
        %v444 = vunpack.c.l.bf16 %v372
        %v445 = vunpack.c.l.bf16 %v373
        %v446 = vunpack.c.l.bf16 %v374
        %v447 = vunpack.c.l.bf16 %v375
        %v448 = vunpack.c.l.bf16 %v376
        %v449 = vunpack.c.l.bf16 %v377
        %v450 = vunpack.c.l.bf16 %v378
        %v451 = vunpack.c.l.bf16 %v379
        %v452 = vunpack.c.l.bf16 %v380
        %v453 = vunpack.c.l.bf16 %v381
        %v454 = vunpack.c.l.bf16 %v382
        %v455 = vunpack.c.l.bf16 %v383
        %v456 = vunpack.c.l.bf16 %v384
        %v457 = vunpack.c.l.bf16 %v385
        %v458 = vunpack.c.l.bf16 %v386
        %v459 = vunpack.c.l.bf16 %v387
        %v460 = vunpack.c.l.bf16 %v388
        %v461 = vunpack.c.l.bf16 %v389
        %v462 = vunpack.c.l.bf16 %v390
        %v463 = vunpack.c.l.bf16 %v391
        %v464 = vunpack.c.l.bf16 %v392
        %v465 = vunpack.c.l.bf16 %v393
        %v466 = vunpack.c.l.bf16 %v394
        %v467 = vunpack.c.l.bf16 %v395
        %v468 = vunpack.c.l.bf16 %v396
        %v469 = vunpack.c.l.bf16 %v397
        %v470 = vunpack.c.l.bf16 %v398
        %v471 = vunpack.c.l.bf16 %v399
        %v472 = vunpack.c.l.bf16 %v400
        %v473 = vunpack.c.l.bf16 %v401
        %v474 = vunpack.c.l.bf16 %v402
        %v475 = vunpack.c.l.bf16 %v403
        %v476 = vunpack.c.l.bf16 %v404
        %v477 = vunpack.c.l.bf16 %v405
        %v478 = vunpack.c.l.bf16 %v406
        %v479 = vunpack.c.l.bf16 %v407
        %v480 = vunpack.c.l.bf16 %v408
        %v481 = vpack.c.bf16 %v410, %v409
        %v482 = vpack.c.bf16 %v412, %v411
        %v483 = vpack.c.bf16 %v414, %v413
        %v484 = vpack.c.bf16 %v416, %v415
        %v485 = vpack.c.bf16 %v419, %v418
        %v486 = vpack.c.bf16 %v421, %v420
        %v487 = vpack.c.bf16 %v423, %v422
        %v488 = vpack.c.bf16 %v425, %v424
        %v489 = vpack.c.bf16 %v428, %v427
        %v490 = vpack.c.bf16 %v430, %v429
        %v491 = vpack.c.bf16 %v432, %v431
        %v492 = vpack.c.bf16 %v434, %v433
        %v493 = vpack.c.bf16 %v437, %v436
        %v494 = vpack.c.bf16 %v439, %v438
        %v495 = vpack.c.bf16 %v441, %v440
        %v496 = vpack.c.bf16 %v443, %v442
        %v497 = vpack.c.bf16 %v446, %v445
        %v498 = vpack.c.bf16 %v448, %v447
        %v499 = vpack.c.bf16 %v450, %v449
        %v500 = vpack.c.bf16 %v452, %v451
        %v501 = vpack.c.bf16 %v455, %v454
        %v502 = vpack.c.bf16 %v457, %v456
        %v503 = vpack.c.bf16 %v459, %v458
        %v504 = vpack.c.bf16 %v461, %v460
        %v505 = vpack.c.bf16 %v464, %v463
        %v506 = vpack.c.bf16 %v466, %v465
        %v507 = vpack.c.bf16 %v468, %v467
        %v508 = vpack.c.bf16 %v470, %v469
        %v509 = vpack.c.bf16 %v473, %v472
        %v510 = vpack.c.bf16 %v475, %v474
        %v511 = vpack.c.bf16 %v477, %v476
        %v512 = vpack.c.bf16 %v479, %v478
        %v513 = vld [vmem:[%s1] sm:$0xf]
        %v514 = vld [vmem:[%s1 + $0x4] sm:$0xf]
        %v515 = vld [vmem:[%s1 + $0x8] sm:$0xf]
        %v516 = vld [vmem:[%s1 + $0xc] sm:$0xf]
        %v517 = vld [vmem:[%s1 + $0x10] sm:$0xf]
        %v518 = vld [vmem:[%s1 + $0x14] sm:$0xf]
        %v519 = vld [vmem:[%s1 + $0x18] sm:$0xf]
        %v520 = vld [vmem:[%s1 + $0x1c] sm:$0xf]
        %vm593 = vcmask 1043456
        %v594 = vrot.slane %v409, 4
        %v595 = vrot.slane %v410, 4
        %v596 = vsel %vm593, %v594, %v595
        %v597 = vrot.slane %v411, 4
        %v598 = vsel %vm593, %v595, %v597
        %v599 = vrot.slane %v412, 4
        %v600 = vsel %vm593, %v597, %v599
        %v601 = vrot.slane %v413, 4
        %v602 = vsel %vm593, %v599, %v601
        %v603 = vrot.slane %v414, 4
        %v604 = vsel %vm593, %v601, %v603
        %v605 = vrot.slane %v415, 4
        %v606 = vsel %vm593, %v603, %v605
        %v607 = vrot.slane %v416, 4
        %v608 = vsel %vm593, %v605, %v607
        %v609 = vrot.slane %v417, 4
        %v610 = vsel %vm593, %v607, %v609
        %v611 = vrot.slane %v418, 4
        %v612 = vrot.slane %v419, 4
        %v613 = vsel %vm593, %v611, %v612
        %v614 = vrot.slane %v420, 4
        %v615 = vsel %vm593, %v612, %v614
        %v616 = vrot.slane %v421, 4
        %v617 = vsel %vm593, %v614, %v616
        %v618 = vrot.slane %v422, 4
        %v619 = vsel %vm593, %v616, %v618
        %v620 = vrot.slane %v423, 4
        %v621 = vsel %vm593, %v618, %v620
        %v622 = vrot.slane %v424, 4
        %v623 = vsel %vm593, %v620, %v622
        %v624 = vrot.slane %v425, 4
        %v625 = vsel %vm593, %v622, %v624
        %v626 = vrot.slane %v426, 4
        %v627 = vsel %vm593, %v624, %v626
        %v628 = vrot.slane %v427, 4
        %v629 = vrot.slane %v428, 4
        %v630 = vsel %vm593, %v628, %v629
        %v631 = vrot.slane %v429, 4
        %v632 = vsel %vm593, %v629, %v631
        %v633 = vrot.slane %v430, 4
        %v634 = vsel %vm593, %v631, %v633
        %v635 = vrot.slane %v431, 4
        %v636 = vsel %vm593, %v633, %v635
        %v637 = vrot.slane %v432, 4
        %v638 = vsel %vm593, %v635, %v637
        %v639 = vrot.slane %v433, 4
        %v640 = vsel %vm593, %v637, %v639
        %v641 = vrot.slane %v434, 4
        %v642 = vsel %vm593, %v639, %v641
        %v643 = vrot.slane %v435, 4
        %v644 = vsel %vm593, %v641, %v643
        %v645 = vrot.slane %v436, 4
        %v646 = vrot.slane %v437, 4
        %v647 = vsel %vm593, %v645, %v646
        %v648 = vrot.slane %v438, 4
        %v649 = vsel %vm593, %v646, %v648
        %v650 = vrot.slane %v439, 4
        %v651 = vsel %vm593, %v648, %v650
        %v652 = vrot.slane %v440, 4
        %v653 = vsel %vm593, %v650, %v652
        %v654 = vrot.slane %v441, 4
        %v655 = vsel %vm593, %v652, %v654
        %v656 = vrot.slane %v442, 4
        %v657 = vsel %vm593, %v654, %v656
        %v658 = vrot.slane %v443, 4
        %v659 = vsel %vm593, %v656, %v658
        %v660 = vrot.slane %v444, 4
        %v661 = vsel %vm593, %v658, %v660
        %v662 = vrot.slane %v445, 4
        %v663 = vrot.slane %v446, 4
        %v664 = vsel %vm593, %v662, %v663
        %v665 = vrot.slane %v447, 4
        %v666 = vsel %vm593, %v663, %v665
        %v667 = vrot.slane %v448, 4
        %v668 = vsel %vm593, %v665, %v667
        %v669 = vrot.slane %v449, 4
        %v670 = vsel %vm593, %v667, %v669
        %v671 = vrot.slane %v450, 4
        %v672 = vsel %vm593, %v669, %v671
        %v673 = vrot.slane %v451, 4
        %v674 = vsel %vm593, %v671, %v673
        %v675 = vrot.slane %v452, 4
        %v676 = vsel %vm593, %v673, %v675
        %v677 = vrot.slane %v453, 4
        %v678 = vsel %vm593, %v675, %v677
        %v679 = vrot.slane %v454, 4
        %v680 = vrot.slane %v455, 4
        %v681 = vsel %vm593, %v679, %v680
        %v682 = vrot.slane %v456, 4
        %v683 = vsel %vm593, %v680, %v682
        %v684 = vrot.slane %v457, 4
        %v685 = vsel %vm593, %v682, %v684
        %v686 = vrot.slane %v458, 4
        %v687 = vsel %vm593, %v684, %v686
        %v688 = vrot.slane %v459, 4
        %v689 = vsel %vm593, %v686, %v688
        %v690 = vrot.slane %v460, 4
        %v691 = vsel %vm593, %v688, %v690
        %v692 = vrot.slane %v461, 4
        %v693 = vsel %vm593, %v690, %v692
        %v694 = vrot.slane %v462, 4
        %v695 = vsel %vm593, %v692, %v694
        %v696 = vrot.slane %v463, 4
        %v697 = vrot.slane %v464, 4
        %v698 = vsel %vm593, %v696, %v697
        %v699 = vrot.slane %v465, 4
        %v700 = vsel %vm593, %v697, %v699
        %v701 = vrot.slane %v466, 4
        %v702 = vsel %vm593, %v699, %v701
        %v703 = vrot.slane %v467, 4
        %v704 = vsel %vm593, %v701, %v703
        %v705 = vrot.slane %v468, 4
        %v706 = vsel %vm593, %v703, %v705
        %v707 = vrot.slane %v469, 4
        %v708 = vsel %vm593, %v705, %v707
        %v709 = vrot.slane %v470, 4
        %v710 = vsel %vm593, %v707, %v709
        %v711 = vrot.slane %v471, 4
        %v712 = vsel %vm593, %v709, %v711
        %v713 = vrot.slane %v472, 4
        %v714 = vrot.slane %v473, 4
        %v715 = vsel %vm593, %v713, %v714
        %v716 = vrot.slane %v474, 4
        %v717 = vsel %vm593, %v714, %v716
        %v718 = vrot.slane %v475, 4
        %v719 = vsel %vm593, %v716, %v718
        %v720 = vrot.slane %v476, 4
        %v721 = vsel %vm593, %v718, %v720
        %v722 = vrot.slane %v477, 4
        %v723 = vsel %vm593, %v720, %v722
        %v724 = vrot.slane %v478, 4
        %v725 = vsel %vm593, %v722, %v724
        %v726 = vrot.slane %v479, 4
        %v727 = vsel %vm593, %v724, %v726
        %v728 = vrot.slane %v480, 4
        %v729 = vsel %vm593, %v726, %v728
        %v794 = vpack.c.bf16 %v598, %v596
        %v795 = vpack.c.bf16 %v602, %v600
        %v796 = vpack.c.bf16 %v606, %v604
        %v797 = vpack.c.bf16 %v610, %v608
        %v798 = vpack.c.bf16 %v615, %v613
        %v799 = vpack.c.bf16 %v619, %v617
        %v800 = vpack.c.bf16 %v623, %v621
        %v801 = vpack.c.bf16 %v627, %v625
        %v802 = vpack.c.bf16 %v632, %v630
        %v803 = vpack.c.bf16 %v636, %v634
        %v804 = vpack.c.bf16 %v640, %v638
        %v805 = vpack.c.bf16 %v644, %v642
        %v806 = vpack.c.bf16 %v649, %v647
        %v807 = vpack.c.bf16 %v653, %v651
        %v808 = vpack.c.bf16 %v657, %v655
        %v809 = vpack.c.bf16 %v661, %v659
        %v810 = vpack.c.bf16 %v666, %v664
        %v811 = vpack.c.bf16 %v670, %v668
        %v812 = vpack.c.bf16 %v674, %v672
        %v813 = vpack.c.bf16 %v678, %v676
        %v814 = vpack.c.bf16 %v683, %v681
        %v815 = vpack.c.bf16 %v687, %v685
        %v816 = vpack.c.bf16 %v691, %v689
        %v817 = vpack.c.bf16 %v695, %v693
        %v818 = vpack.c.bf16 %v700, %v698
        %v819 = vpack.c.bf16 %v704, %v702
        %v820 = vpack.c.bf16 %v708, %v706
        %v821 = vpack.c.bf16 %v712, %v710
        %v822 = vpack.c.bf16 %v717, %v715
        %v823 = vpack.c.bf16 %v721, %v719
        %v824 = vpack.c.bf16 %v725, %v723
        %v825 = vpack.c.bf16 %v729, %v727
        %s826 = scalar_lea.vmem %s1, 32
        %v827 = vld [vmem:[%s826] sm:$0xf]
        %v828 = vld [vmem:[%s826 + $0x4] sm:$0xf]
        %v829 = vld [vmem:[%s826 + $0x8] sm:$0xf]
        %v830 = vld [vmem:[%s826 + $0xc] sm:$0xf]
        %v831 = vld [vmem:[%s826 + $0x10] sm:$0xf]
        %v832 = vld [vmem:[%s826 + $0x14] sm:$0xf]
        %v833 = vld [vmem:[%s826 + $0x18] sm:$0xf]
        %v834 = vld [vmem:[%s826 + $0x1c] sm:$0xf]
        %v843 = vunpack.c.l.b16 %v827
        %v844 = vunpack.c.l.b16 %v828
        %v845 = vunpack.c.l.b16 %v829
        %v846 = vunpack.c.l.b16 %v830
        %v847 = vunpack.c.l.b16 %v831
        %v848 = vunpack.c.l.b16 %v832
        %v849 = vunpack.c.l.b16 %v833
        %v850 = vunpack.c.l.b16 %v834
        %v851 = vpack.c.b16 %v844, %v843
        %v852 = vpack.c.b16 %v846, %v845
        %v853 = vpack.c.b16 %v848, %v847
        %v854 = vpack.c.b16 %v850, %v849
        %vm859 = vcmask 523264
        %v861 = vsel %vm859, %v794, 0
        %v864 = vsel %vm859, %v795, 0
        %v867 = vsel %vm859, %v796, 0
        %v870 = vsel %vm859, %v797, 0
        %v873 = vsel %vm859, %v798, 0
        %v876 = vsel %vm859, %v799, 0
        %v879 = vsel %vm859, %v800, 0
        %v882 = vsel %vm859, %v801, 0
        %v885 = vsel %vm859, %v802, 0
        %v888 = vsel %vm859, %v803, 0
        %v891 = vsel %vm859, %v804, 0
        %v894 = vsel %vm859, %v805, 0
        %v897 = vsel %vm859, %v806, 0
        %v900 = vsel %vm859, %v807, 0
        %v903 = vsel %vm859, %v808, 0
        %v906 = vsel %vm859, %v809, 0
        %v909 = vsel %vm859, %v810, 0
        %v912 = vsel %vm859, %v811, 0
        %v915 = vsel %vm859, %v812, 0
        %v918 = vsel %vm859, %v813, 0
        %v921 = vsel %vm859, %v814, 0
        %v924 = vsel %vm859, %v815, 0
        %v927 = vsel %vm859, %v816, 0
        %v930 = vsel %vm859, %v817, 0
        %v933 = vsel %vm859, %v818, 0
        %v936 = vsel %vm859, %v819, 0
        %v939 = vsel %vm859, %v820, 0
        %v942 = vsel %vm859, %v821, 0
        %v945 = vsel %vm859, %v822, 0
        %v948 = vsel %vm859, %v823, 0
        %v951 = vsel %vm859, %v824, 0
        %v954 = vsel %vm859, %v825, 0
        %956 = vmatprep.subr.bf16.mxu0 0
        %957 = vmatpush1.bf16.msra.mxu0 0
        %958 = vmatprep.subr.bf16.mxu0 0
        %959 = vmatpush1.bf16.msra.mxu0 0
        %960 = vmatprep.subr.bf16.mxu0 0
        %961 = vmatpush1.bf16.msra.mxu0 0
        %962 = vmatprep.subr.bf16.mxu0 0
        %963 = vmatpush1.bf16.msra.mxu0 0
        %964 = vmatprep.subr.bf16.mxu0 0
        %965 = vmatpush1.bf16.msra.mxu0 %v854
        %966 = vmatprep.subr.bf16.mxu0 0
        %967 = vmatpush1.bf16.msra.mxu0 %v853
        %968 = vmatprep.subr.bf16.mxu0 0
        %969 = vmatpush1.bf16.msra.mxu0 %v852
        %970 = vmatprep.subr.bf16.mxu0 0
        %971 = vmatpush1.bf16.msra.mxu0 %v851
        %972 = vmatprep.subr.bf16.mxu0 0
        %973 = vmatpush2.bf16.msra.mxu0 0
        %974 = vmatprep.subr.bf16.mxu0 0
        %975 = vmatpush2.bf16.msra.mxu0 0
        %976 = vmatprep.subr.bf16.mxu0 0
        %977 = vmatpush2.bf16.msra.mxu0 0
        %978 = vmatprep.subr.bf16.mxu0 0
        %979 = vmatpush2.bf16.msra.mxu0 0
        %980 = vmatprep.subr.bf16.mxu0 0
        %981 = vmatpush2.bf16.msra.mxu0 0
        %982 = vmatprep.subr.bf16.mxu0 0
        %983 = vmatpush2.bf16.msra.mxu0 0
        %984 = vmatprep.subr.bf16.mxu0 0
        %985 = vmatpush2.bf16.msra.mxu0 0
        %986 = vmatprep.subr.bf16.mxu0 0
        %987 = vmatpush2.bf16.msra.mxu0 0
        %988 = vmatprep.mubr.bf16.mxu0 0
        %989 = vmatmul.mubr.bf16.gmra.mxu0 %v861
        %v990 = vpop.f32.mrf.mxu0
        %v991 = vadd.f32 0.0, %v990
        %v992 = vpop.f32.mrf.mxu0
        %v993 = vpop.f32.mrf.mxu0
        %v994 = vadd.f32 0.0, %v993
        %v995 = vpop.f32.mrf.mxu0
        %996 = vmatprep.mubr.bf16.mxu0 0
        %997 = vmatmul.mubr.bf16.gmra.mxu0 %v864
        %v998 = vpop.f32.mrf.mxu0
        %v999 = vadd.f32 0.0, %v998
        %v1000 = vpop.f32.mrf.mxu0
        %v1001 = vpop.f32.mrf.mxu0
        %v1002 = vadd.f32 0.0, %v1001
        %v1003 = vpop.f32.mrf.mxu0
        %1004 = vmatprep.mubr.bf16.mxu0 0
        %1005 = vmatmul.mubr.bf16.gmra.mxu0 %v867
        %v1006 = vpop.f32.mrf.mxu0
        %v1007 = vadd.f32 0.0, %v1006
        %v1008 = vpop.f32.mrf.mxu0
        %v1009 = vpop.f32.mrf.mxu0
        %v1010 = vadd.f32 0.0, %v1009
        %v1011 = vpop.f32.mrf.mxu0
        %1012 = vmatprep.mubr.bf16.mxu0 0
        %1013 = vmatmul.mubr.bf16.gmra.mxu0 %v870
        %v1014 = vpop.f32.mrf.mxu0
        %v1015 = vadd.f32 0.0, %v1014
        %v1016 = vpop.f32.mrf.mxu0
        %v1017 = vpop.f32.mrf.mxu0
        %v1018 = vadd.f32 0.0, %v1017
        %v1019 = vpop.f32.mrf.mxu0
        %1020 = vmatprep.mubr.bf16.mxu0 0
        %1021 = vmatmul.mubr.bf16.gmra.mxu0 %v873
        %v1022 = vpop.f32.mrf.mxu0
        %v1023 = vadd.f32 0.0, %v1022
        %v1024 = vpop.f32.mrf.mxu0
        %v1025 = vpop.f32.mrf.mxu0
        %v1026 = vadd.f32 0.0, %v1025
        %v1027 = vpop.f32.mrf.mxu0
        %1028 = vmatprep.mubr.bf16.mxu0 0
        %1029 = vmatmul.mubr.bf16.gmra.mxu0 %v876
        %v1030 = vpop.f32.mrf.mxu0
        %v1031 = vadd.f32 0.0, %v1030
        %v1032 = vpop.f32.mrf.mxu0
        %v1033 = vpop.f32.mrf.mxu0
        %v1034 = vadd.f32 0.0, %v1033
        %v1035 = vpop.f32.mrf.mxu0
        %1036 = vmatprep.mubr.bf16.mxu0 0
        %1037 = vmatmul.mubr.bf16.gmra.mxu0 %v879
        %v1038 = vpop.f32.mrf.mxu0
        %v1039 = vadd.f32 0.0, %v1038
        %v1040 = vpop.f32.mrf.mxu0
        %v1041 = vpop.f32.mrf.mxu0
        %v1042 = vadd.f32 0.0, %v1041
        %v1043 = vpop.f32.mrf.mxu0
        %1044 = vmatprep.mubr.bf16.mxu0 0
        %1045 = vmatmul.mubr.bf16.gmra.mxu0 %v882
        %v1046 = vpop.f32.mrf.mxu0
        %v1047 = vadd.f32 0.0, %v1046
        %v1048 = vpop.f32.mrf.mxu0
        %v1049 = vpop.f32.mrf.mxu0
        %v1050 = vadd.f32 0.0, %v1049
        %v1051 = vpop.f32.mrf.mxu0
        %1052 = vmatprep.mubr.bf16.mxu0 0
        %1053 = vmatmul.mubr.bf16.gmra.mxu0 %v885
        %v1054 = vpop.f32.mrf.mxu0
        %v1055 = vadd.f32 0.0, %v1054
        %v1056 = vpop.f32.mrf.mxu0
        %v1057 = vpop.f32.mrf.mxu0
        %v1058 = vadd.f32 0.0, %v1057
        %v1059 = vpop.f32.mrf.mxu0
        %1060 = vmatprep.mubr.bf16.mxu0 0
        %1061 = vmatmul.mubr.bf16.gmra.mxu0 %v888
        %v1062 = vpop.f32.mrf.mxu0
        %v1063 = vadd.f32 0.0, %v1062
        %v1064 = vpop.f32.mrf.mxu0
        %v1065 = vpop.f32.mrf.mxu0
        %v1066 = vadd.f32 0.0, %v1065
        %v1067 = vpop.f32.mrf.mxu0
        %1068 = vmatprep.mubr.bf16.mxu0 0
        %1069 = vmatmul.mubr.bf16.gmra.mxu0 %v891
        %v1070 = vpop.f32.mrf.mxu0
        %v1071 = vadd.f32 0.0, %v1070
        %v1072 = vpop.f32.mrf.mxu0
        %v1073 = vpop.f32.mrf.mxu0
        %v1074 = vadd.f32 0.0, %v1073
        %v1075 = vpop.f32.mrf.mxu0
        %1076 = vmatprep.mubr.bf16.mxu0 0
        %1077 = vmatmul.mubr.bf16.gmra.mxu0 %v894
        %v1078 = vpop.f32.mrf.mxu0
        %v1079 = vadd.f32 0.0, %v1078
        %v1080 = vpop.f32.mrf.mxu0
        %v1081 = vpop.f32.mrf.mxu0
        %v1082 = vadd.f32 0.0, %v1081
        %v1083 = vpop.f32.mrf.mxu0
        %1084 = vmatprep.mubr.bf16.mxu0 0
        %1085 = vmatmul.mubr.bf16.gmra.mxu0 %v897
        %v1086 = vpop.f32.mrf.mxu0
        %v1087 = vadd.f32 0.0, %v1086
        %v1088 = vpop.f32.mrf.mxu0
        %v1089 = vpop.f32.mrf.mxu0
        %v1090 = vadd.f32 0.0, %v1089
        %v1091 = vpop.f32.mrf.mxu0
        %1092 = vmatprep.mubr.bf16.mxu0 0
        %1093 = vmatmul.mubr.bf16.gmra.mxu0 %v900
        %v1094 = vpop.f32.mrf.mxu0
        %v1095 = vadd.f32 0.0, %v1094
        %v1096 = vpop.f32.mrf.mxu0
        %v1097 = vpop.f32.mrf.mxu0
        %v1098 = vadd.f32 0.0, %v1097
        %v1099 = vpop.f32.mrf.mxu0
        %1100 = vmatprep.mubr.bf16.mxu0 0
        %1101 = vmatmul.mubr.bf16.gmra.mxu0 %v903
        %v1102 = vpop.f32.mrf.mxu0
        %v1103 = vadd.f32 0.0, %v1102
        %v1104 = vpop.f32.mrf.mxu0
        %v1105 = vpop.f32.mrf.mxu0
        %v1106 = vadd.f32 0.0, %v1105
        %v1107 = vpop.f32.mrf.mxu0
        %1108 = vmatprep.mubr.bf16.mxu0 0
        %1109 = vmatmul.mubr.bf16.gmra.mxu0 %v906
        %v1110 = vpop.f32.mrf.mxu0
        %v1111 = vadd.f32 0.0, %v1110
        %v1112 = vpop.f32.mrf.mxu0
        %v1113 = vpop.f32.mrf.mxu0
        %v1114 = vadd.f32 0.0, %v1113
        %v1115 = vpop.f32.mrf.mxu0
        %1116 = vmatprep.mubr.bf16.mxu0 0
        %1117 = vmatmul.mubr.bf16.gmra.mxu0 %v909
        %v1118 = vpop.f32.mrf.mxu0
        %v1119 = vadd.f32 0.0, %v1118
        %v1120 = vpop.f32.mrf.mxu0
        %v1121 = vpop.f32.mrf.mxu0
        %v1122 = vadd.f32 0.0, %v1121
        %v1123 = vpop.f32.mrf.mxu0
        %1124 = vmatprep.mubr.bf16.mxu0 0
        %1125 = vmatmul.mubr.bf16.gmra.mxu0 %v912
        %v1126 = vpop.f32.mrf.mxu0
        %v1127 = vadd.f32 0.0, %v1126
        %v1128 = vpop.f32.mrf.mxu0
        %v1129 = vpop.f32.mrf.mxu0
        %v1130 = vadd.f32 0.0, %v1129
        %v1131 = vpop.f32.mrf.mxu0
        %1132 = vmatprep.mubr.bf16.mxu0 0
        %1133 = vmatmul.mubr.bf16.gmra.mxu0 %v915
        %v1134 = vpop.f32.mrf.mxu0
        %v1135 = vadd.f32 0.0, %v1134
        %v1136 = vpop.f32.mrf.mxu0
        %v1137 = vpop.f32.mrf.mxu0
        %v1138 = vadd.f32 0.0, %v1137
        %v1139 = vpop.f32.mrf.mxu0
        %1140 = vmatprep.mubr.bf16.mxu0 0
        %1141 = vmatmul.mubr.bf16.gmra.mxu0 %v918
        %v1142 = vpop.f32.mrf.mxu0
        %v1143 = vadd.f32 0.0, %v1142
        %v1144 = vpop.f32.mrf.mxu0
        %v1145 = vpop.f32.mrf.mxu0
        %v1146 = vadd.f32 0.0, %v1145
        %v1147 = vpop.f32.mrf.mxu0
        %1148 = vmatprep.mubr.bf16.mxu0 0
        %1149 = vmatmul.mubr.bf16.gmra.mxu0 %v921
        %v1150 = vpop.f32.mrf.mxu0
        %v1151 = vadd.f32 0.0, %v1150
        %v1152 = vpop.f32.mrf.mxu0
        %v1153 = vpop.f32.mrf.mxu0
        %v1154 = vadd.f32 0.0, %v1153
        %v1155 = vpop.f32.mrf.mxu0
        %1156 = vmatprep.mubr.bf16.mxu0 0
        %1157 = vmatmul.mubr.bf16.gmra.mxu0 %v924
        %v1158 = vpop.f32.mrf.mxu0
        %v1159 = vadd.f32 0.0, %v1158
        %v1160 = vpop.f32.mrf.mxu0
        %v1161 = vpop.f32.mrf.mxu0
        %v1162 = vadd.f32 0.0, %v1161
        %v1163 = vpop.f32.mrf.mxu0
        %1164 = vmatprep.mubr.bf16.mxu0 0
        %1165 = vmatmul.mubr.bf16.gmra.mxu0 %v927
        %v1166 = vpop.f32.mrf.mxu0
        %v1167 = vadd.f32 0.0, %v1166
        %v1168 = vpop.f32.mrf.mxu0
        %v1169 = vpop.f32.mrf.mxu0
        %v1170 = vadd.f32 0.0, %v1169
        %v1171 = vpop.f32.mrf.mxu0
        %1172 = vmatprep.mubr.bf16.mxu0 0
        %1173 = vmatmul.mubr.bf16.gmra.mxu0 %v930
        %v1174 = vpop.f32.mrf.mxu0
        %v1175 = vadd.f32 0.0, %v1174
        %v1176 = vpop.f32.mrf.mxu0
        %v1177 = vpop.f32.mrf.mxu0
        %v1178 = vadd.f32 0.0, %v1177
        %v1179 = vpop.f32.mrf.mxu0
        %1180 = vmatprep.mubr.bf16.mxu0 0
        %1181 = vmatmul.mubr.bf16.gmra.mxu0 %v933
        %v1182 = vpop.f32.mrf.mxu0
        %v1183 = vadd.f32 0.0, %v1182
        %v1184 = vpop.f32.mrf.mxu0
        %v1185 = vpop.f32.mrf.mxu0
        %v1186 = vadd.f32 0.0, %v1185
        %v1187 = vpop.f32.mrf.mxu0
        %1188 = vmatprep.mubr.bf16.mxu0 0
        %1189 = vmatmul.mubr.bf16.gmra.mxu0 %v936
        %v1190 = vpop.f32.mrf.mxu0
        %v1191 = vadd.f32 0.0, %v1190
        %v1192 = vpop.f32.mrf.mxu0
        %v1193 = vpop.f32.mrf.mxu0
        %v1194 = vadd.f32 0.0, %v1193
        %v1195 = vpop.f32.mrf.mxu0
        %1196 = vmatprep.mubr.bf16.mxu0 0
        %1197 = vmatmul.mubr.bf16.gmra.mxu0 %v939
        %v1198 = vpop.f32.mrf.mxu0
        %v1199 = vadd.f32 0.0, %v1198
        %v1200 = vpop.f32.mrf.mxu0
        %v1201 = vpop.f32.mrf.mxu0
        %v1202 = vadd.f32 0.0, %v1201
        %v1203 = vpop.f32.mrf.mxu0
        %1204 = vmatprep.mubr.bf16.mxu0 0
        %1205 = vmatmul.mubr.bf16.gmra.mxu0 %v942
        %v1206 = vpop.f32.mrf.mxu0
        %v1207 = vadd.f32 0.0, %v1206
        %v1208 = vpop.f32.mrf.mxu0
        %v1209 = vpop.f32.mrf.mxu0
        %v1210 = vadd.f32 0.0, %v1209
        %v1211 = vpop.f32.mrf.mxu0
        %1212 = vmatprep.mubr.bf16.mxu0 0
        %1213 = vmatmul.mubr.bf16.gmra.mxu0 %v945
        %v1214 = vpop.f32.mrf.mxu0
        %v1215 = vadd.f32 0.0, %v1214
        %v1216 = vpop.f32.mrf.mxu0
        %v1217 = vpop.f32.mrf.mxu0
        %v1218 = vadd.f32 0.0, %v1217
        %v1219 = vpop.f32.mrf.mxu0
        %1220 = vmatprep.mubr.bf16.mxu0 0
        %1221 = vmatmul.mubr.bf16.gmra.mxu0 %v948
        %v1222 = vpop.f32.mrf.mxu0
        %v1223 = vadd.f32 0.0, %v1222
        %v1224 = vpop.f32.mrf.mxu0
        %v1225 = vpop.f32.mrf.mxu0
        %v1226 = vadd.f32 0.0, %v1225
        %v1227 = vpop.f32.mrf.mxu0
        %1228 = vmatprep.mubr.bf16.mxu0 0
        %1229 = vmatmul.mubr.bf16.gmra.mxu0 %v951
        %v1230 = vpop.f32.mrf.mxu0
        %v1231 = vadd.f32 0.0, %v1230
        %v1232 = vpop.f32.mrf.mxu0
        %v1233 = vpop.f32.mrf.mxu0
        %v1234 = vadd.f32 0.0, %v1233
        %v1235 = vpop.f32.mrf.mxu0
        %1236 = vmatprep.mubr.bf16.mxu0 0
        %1237 = vmatmul.mubr.bf16.gmra.mxu0 %v954
        %v1238 = vpop.f32.mrf.mxu0
        %v1239 = vadd.f32 0.0, %v1238
        %v1240 = vpop.f32.mrf.mxu0
        %v1241 = vpop.f32.mrf.mxu0
        %v1242 = vadd.f32 0.0, %v1241
        %v1243 = vpop.f32.mrf.mxu0
        %1244 = vdwg.mxu0
        %v1253 = vunpack.c.l.b16 %v513
        %v1254 = vunpack.c.l.b16 %v514
        %v1255 = vunpack.c.l.b16 %v515
        %v1256 = vunpack.c.l.b16 %v516
        %v1257 = vunpack.c.l.b16 %v517
        %v1258 = vunpack.c.l.b16 %v518
        %v1259 = vunpack.c.l.b16 %v519
        %v1260 = vunpack.c.l.b16 %v520
        %v1261 = vpack.c.b16 %v1254, %v1253
        %v1262 = vpack.c.b16 %v1256, %v1255
        %v1263 = vpack.c.b16 %v1258, %v1257
        %v1264 = vpack.c.b16 %v1260, %v1259
        %v1270 = vsel %vm859, %v481, 0
        %v1273 = vsel %vm859, %v482, 0
        %v1276 = vsel %vm859, %v483, 0
        %v1279 = vsel %vm859, %v484, 0
        %v1282 = vsel %vm859, %v485, 0
        %v1285 = vsel %vm859, %v486, 0
        %v1288 = vsel %vm859, %v487, 0
        %v1291 = vsel %vm859, %v488, 0
        %v1294 = vsel %vm859, %v489, 0
        %v1297 = vsel %vm859, %v490, 0
        %v1300 = vsel %vm859, %v491, 0
        %v1303 = vsel %vm859, %v492, 0
        %v1306 = vsel %vm859, %v493, 0
        %v1309 = vsel %vm859, %v494, 0
        %v1312 = vsel %vm859, %v495, 0
        %v1315 = vsel %vm859, %v496, 0
        %v1318 = vsel %vm859, %v497, 0
        %v1321 = vsel %vm859, %v498, 0
        %v1324 = vsel %vm859, %v499, 0
        %v1327 = vsel %vm859, %v500, 0
        %v1330 = vsel %vm859, %v501, 0
        %v1333 = vsel %vm859, %v502, 0
        %v1336 = vsel %vm859, %v503, 0
        %v1339 = vsel %vm859, %v504, 0
        %v1342 = vsel %vm859, %v505, 0
        %v1345 = vsel %vm859, %v506, 0
        %v1348 = vsel %vm859, %v507, 0
        %v1351 = vsel %vm859, %v508, 0
        %v1354 = vsel %vm859, %v509, 0
        %v1357 = vsel %vm859, %v510, 0
        %v1360 = vsel %vm859, %v511, 0
        %v1363 = vsel %vm859, %v512, 0
        %1365 = vmatprep.subr.bf16.mxu0 0
        %1366 = vmatpush1.bf16.msra.mxu0 0
        %1367 = vmatprep.subr.bf16.mxu0 0
        %1368 = vmatpush1.bf16.msra.mxu0 0
        %1369 = vmatprep.subr.bf16.mxu0 0
        %1370 = vmatpush1.bf16.msra.mxu0 0
        %1371 = vmatprep.subr.bf16.mxu0 0
        %1372 = vmatpush1.bf16.msra.mxu0 0
        %1373 = vmatprep.subr.bf16.mxu0 0
        %1374 = vmatpush1.bf16.msra.mxu0 %v1264
        %1375 = vmatprep.subr.bf16.mxu0 0
        %1376 = vmatpush1.bf16.msra.mxu0 %v1263
        %1377 = vmatprep.subr.bf16.mxu0 0
        %1378 = vmatpush1.bf16.msra.mxu0 %v1262
        %1379 = vmatprep.subr.bf16.mxu0 0
        %1380 = vmatpush1.bf16.msra.mxu0 %v1261
        %1381 = vmatprep.subr.bf16.mxu0 0
        %1382 = vmatpush2.bf16.msra.mxu0 0
        %1383 = vmatprep.subr.bf16.mxu0 0
        %1384 = vmatpush2.bf16.msra.mxu0 0
        %1385 = vmatprep.subr.bf16.mxu0 0
        %1386 = vmatpush2.bf16.msra.mxu0 0
        %1387 = vmatprep.subr.bf16.mxu0 0
        %1388 = vmatpush2.bf16.msra.mxu0 0
        %1389 = vmatprep.subr.bf16.mxu0 0
        %1390 = vmatpush2.bf16.msra.mxu0 0
        %1391 = vmatprep.subr.bf16.mxu0 0
        %1392 = vmatpush2.bf16.msra.mxu0 0
        %1393 = vmatprep.subr.bf16.mxu0 0
        %1394 = vmatpush2.bf16.msra.mxu0 0
        %1395 = vmatprep.subr.bf16.mxu0 0
        %1396 = vmatpush2.bf16.msra.mxu0 0
        %1397 = vmatprep.mubr.bf16.mxu0 0
        %1398 = vmatmul.mubr.bf16.gmra.mxu0 %v1270
        %v1399 = vpop.f32.mrf.mxu0
        %v1400 = vadd.f32 %v991, %v1399
        %v1401 = vpop.f32.mrf.mxu0
        %v1402 = vpop.f32.mrf.mxu0
        %v1403 = vadd.f32 %v994, %v1402
        %v1404 = vpop.f32.mrf.mxu0
        %1405 = vmatprep.mubr.bf16.mxu0 0
        %1406 = vmatmul.mubr.bf16.gmra.mxu0 %v1273
        %v1407 = vpop.f32.mrf.mxu0
        %v1408 = vadd.f32 %v999, %v1407
        %v1409 = vpop.f32.mrf.mxu0
        %v1410 = vpop.f32.mrf.mxu0
        %v1411 = vadd.f32 %v1002, %v1410
        %v1412 = vpop.f32.mrf.mxu0
        %1413 = vmatprep.mubr.bf16.mxu0 0
        %1414 = vmatmul.mubr.bf16.gmra.mxu0 %v1276
        %v1415 = vpop.f32.mrf.mxu0
        %v1416 = vadd.f32 %v1007, %v1415
        %v1417 = vpop.f32.mrf.mxu0
        %v1418 = vpop.f32.mrf.mxu0
        %v1419 = vadd.f32 %v1010, %v1418
        %v1420 = vpop.f32.mrf.mxu0
        %1421 = vmatprep.mubr.bf16.mxu0 0
        %1422 = vmatmul.mubr.bf16.gmra.mxu0 %v1279
        %v1423 = vpop.f32.mrf.mxu0
        %v1424 = vadd.f32 %v1015, %v1423
        %v1425 = vpop.f32.mrf.mxu0
        %v1426 = vpop.f32.mrf.mxu0
        %v1427 = vadd.f32 %v1018, %v1426
        %v1428 = vpop.f32.mrf.mxu0
        %1429 = vmatprep.mubr.bf16.mxu0 0
        %1430 = vmatmul.mubr.bf16.gmra.mxu0 %v1282
        %v1431 = vpop.f32.mrf.mxu0
        %v1432 = vadd.f32 %v1023, %v1431
        %v1433 = vpop.f32.mrf.mxu0
        %v1434 = vpop.f32.mrf.mxu0
        %v1435 = vadd.f32 %v1026, %v1434
        %v1436 = vpop.f32.mrf.mxu0
        %1437 = vmatprep.mubr.bf16.mxu0 0
        %1438 = vmatmul.mubr.bf16.gmra.mxu0 %v1285
        %v1439 = vpop.f32.mrf.mxu0
        %v1440 = vadd.f32 %v1031, %v1439
        %v1441 = vpop.f32.mrf.mxu0
        %v1442 = vpop.f32.mrf.mxu0
        %v1443 = vadd.f32 %v1034, %v1442
        %v1444 = vpop.f32.mrf.mxu0
        %1445 = vmatprep.mubr.bf16.mxu0 0
        %1446 = vmatmul.mubr.bf16.gmra.mxu0 %v1288
        %v1447 = vpop.f32.mrf.mxu0
        %v1448 = vadd.f32 %v1039, %v1447
        %v1449 = vpop.f32.mrf.mxu0
        %v1450 = vpop.f32.mrf.mxu0
        %v1451 = vadd.f32 %v1042, %v1450
        %v1452 = vpop.f32.mrf.mxu0
        %1453 = vmatprep.mubr.bf16.mxu0 0
        %1454 = vmatmul.mubr.bf16.gmra.mxu0 %v1291
        %v1455 = vpop.f32.mrf.mxu0
        %v1456 = vadd.f32 %v1047, %v1455
        %v1457 = vpop.f32.mrf.mxu0
        %v1458 = vpop.f32.mrf.mxu0
        %v1459 = vadd.f32 %v1050, %v1458
        %v1460 = vpop.f32.mrf.mxu0
        %1461 = vmatprep.mubr.bf16.mxu0 0
        %1462 = vmatmul.mubr.bf16.gmra.mxu0 %v1294
        %v1463 = vpop.f32.mrf.mxu0
        %v1464 = vadd.f32 %v1055, %v1463
        %v1465 = vpop.f32.mrf.mxu0
        %v1466 = vpop.f32.mrf.mxu0
        %v1467 = vadd.f32 %v1058, %v1466
        %v1468 = vpop.f32.mrf.mxu0
        %1469 = vmatprep.mubr.bf16.mxu0 0
        %1470 = vmatmul.mubr.bf16.gmra.mxu0 %v1297
        %v1471 = vpop.f32.mrf.mxu0
        %v1472 = vadd.f32 %v1063, %v1471
        %v1473 = vpop.f32.mrf.mxu0
        %v1474 = vpop.f32.mrf.mxu0
        %v1475 = vadd.f32 %v1066, %v1474
        %v1476 = vpop.f32.mrf.mxu0
        %1477 = vmatprep.mubr.bf16.mxu0 0
        %1478 = vmatmul.mubr.bf16.gmra.mxu0 %v1300
        %v1479 = vpop.f32.mrf.mxu0
        %v1480 = vadd.f32 %v1071, %v1479
        %v1481 = vpop.f32.mrf.mxu0
        %v1482 = vpop.f32.mrf.mxu0
        %v1483 = vadd.f32 %v1074, %v1482
        %v1484 = vpop.f32.mrf.mxu0
        %1485 = vmatprep.mubr.bf16.mxu0 0
        %1486 = vmatmul.mubr.bf16.gmra.mxu0 %v1303
        %v1487 = vpop.f32.mrf.mxu0
        %v1488 = vadd.f32 %v1079, %v1487
        %v1489 = vpop.f32.mrf.mxu0
        %v1490 = vpop.f32.mrf.mxu0
        %v1491 = vadd.f32 %v1082, %v1490
        %v1492 = vpop.f32.mrf.mxu0
        %1493 = vmatprep.mubr.bf16.mxu0 0
        %1494 = vmatmul.mubr.bf16.gmra.mxu0 %v1306
        %v1495 = vpop.f32.mrf.mxu0
        %v1496 = vadd.f32 %v1087, %v1495
        %v1497 = vpop.f32.mrf.mxu0
        %v1498 = vpop.f32.mrf.mxu0
        %v1499 = vadd.f32 %v1090, %v1498
        %v1500 = vpop.f32.mrf.mxu0
        %1501 = vmatprep.mubr.bf16.mxu0 0
        %1502 = vmatmul.mubr.bf16.gmra.mxu0 %v1309
        %v1503 = vpop.f32.mrf.mxu0
        %v1504 = vadd.f32 %v1095, %v1503
        %v1505 = vpop.f32.mrf.mxu0
        %v1506 = vpop.f32.mrf.mxu0
        %v1507 = vadd.f32 %v1098, %v1506
        %v1508 = vpop.f32.mrf.mxu0
        %1509 = vmatprep.mubr.bf16.mxu0 0
        %1510 = vmatmul.mubr.bf16.gmra.mxu0 %v1312
        %v1511 = vpop.f32.mrf.mxu0
        %v1512 = vadd.f32 %v1103, %v1511
        %v1513 = vpop.f32.mrf.mxu0
        %v1514 = vpop.f32.mrf.mxu0
        %v1515 = vadd.f32 %v1106, %v1514
        %v1516 = vpop.f32.mrf.mxu0
        %1517 = vmatprep.mubr.bf16.mxu0 0
        %1518 = vmatmul.mubr.bf16.gmra.mxu0 %v1315
        %v1519 = vpop.f32.mrf.mxu0
        %v1520 = vadd.f32 %v1111, %v1519
        %v1521 = vpop.f32.mrf.mxu0
        %v1522 = vpop.f32.mrf.mxu0
        %v1523 = vadd.f32 %v1114, %v1522
        %v1524 = vpop.f32.mrf.mxu0
        %1525 = vmatprep.mubr.bf16.mxu0 0
        %1526 = vmatmul.mubr.bf16.gmra.mxu0 %v1318
        %v1527 = vpop.f32.mrf.mxu0
        %v1528 = vadd.f32 %v1119, %v1527
        %v1529 = vpop.f32.mrf.mxu0
        %v1530 = vpop.f32.mrf.mxu0
        %v1531 = vadd.f32 %v1122, %v1530
        %v1532 = vpop.f32.mrf.mxu0
        %1533 = vmatprep.mubr.bf16.mxu0 0
        %1534 = vmatmul.mubr.bf16.gmra.mxu0 %v1321
        %v1535 = vpop.f32.mrf.mxu0
        %v1536 = vadd.f32 %v1127, %v1535
        %v1537 = vpop.f32.mrf.mxu0
        %v1538 = vpop.f32.mrf.mxu0
        %v1539 = vadd.f32 %v1130, %v1538
        %v1540 = vpop.f32.mrf.mxu0
        %1541 = vmatprep.mubr.bf16.mxu0 0
        %1542 = vmatmul.mubr.bf16.gmra.mxu0 %v1324
        %v1543 = vpop.f32.mrf.mxu0
        %v1544 = vadd.f32 %v1135, %v1543
        %v1545 = vpop.f32.mrf.mxu0
        %v1546 = vpop.f32.mrf.mxu0
        %v1547 = vadd.f32 %v1138, %v1546
        %v1548 = vpop.f32.mrf.mxu0
        %1549 = vmatprep.mubr.bf16.mxu0 0
        %1550 = vmatmul.mubr.bf16.gmra.mxu0 %v1327
        %v1551 = vpop.f32.mrf.mxu0
        %v1552 = vadd.f32 %v1143, %v1551
        %v1553 = vpop.f32.mrf.mxu0
        %v1554 = vpop.f32.mrf.mxu0
        %v1555 = vadd.f32 %v1146, %v1554
        %v1556 = vpop.f32.mrf.mxu0
        %1557 = vmatprep.mubr.bf16.mxu0 0
        %1558 = vmatmul.mubr.bf16.gmra.mxu0 %v1330
        %v1559 = vpop.f32.mrf.mxu0
        %v1560 = vadd.f32 %v1151, %v1559
        %v1561 = vpop.f32.mrf.mxu0
        %v1562 = vpop.f32.mrf.mxu0
        %v1563 = vadd.f32 %v1154, %v1562
        %v1564 = vpop.f32.mrf.mxu0
        %1565 = vmatprep.mubr.bf16.mxu0 0
        %1566 = vmatmul.mubr.bf16.gmra.mxu0 %v1333
        %v1567 = vpop.f32.mrf.mxu0
        %v1568 = vadd.f32 %v1159, %v1567
        %v1569 = vpop.f32.mrf.mxu0
        %v1570 = vpop.f32.mrf.mxu0
        %v1571 = vadd.f32 %v1162, %v1570
        %v1572 = vpop.f32.mrf.mxu0
        %1573 = vmatprep.mubr.bf16.mxu0 0
        %1574 = vmatmul.mubr.bf16.gmra.mxu0 %v1336
        %v1575 = vpop.f32.mrf.mxu0
        %v1576 = vadd.f32 %v1167, %v1575
        %v1577 = vpop.f32.mrf.mxu0
        %v1578 = vpop.f32.mrf.mxu0
        %v1579 = vadd.f32 %v1170, %v1578
        %v1580 = vpop.f32.mrf.mxu0
        %1581 = vmatprep.mubr.bf16.mxu0 0
        %1582 = vmatmul.mubr.bf16.gmra.mxu0 %v1339
        %v1583 = vpop.f32.mrf.mxu0
        %v1584 = vadd.f32 %v1175, %v1583
        %v1585 = vpop.f32.mrf.mxu0
        %v1586 = vpop.f32.mrf.mxu0
        %v1587 = vadd.f32 %v1178, %v1586
        %v1588 = vpop.f32.mrf.mxu0
        %1589 = vmatprep.mubr.bf16.mxu0 0
        %1590 = vmatmul.mubr.bf16.gmra.mxu0 %v1342
        %v1591 = vpop.f32.mrf.mxu0
        %v1592 = vadd.f32 %v1183, %v1591
        %v1593 = vpop.f32.mrf.mxu0
        %v1594 = vpop.f32.mrf.mxu0
        %v1595 = vadd.f32 %v1186, %v1594
        %v1596 = vpop.f32.mrf.mxu0
        %1597 = vmatprep.mubr.bf16.mxu0 0
        %1598 = vmatmul.mubr.bf16.gmra.mxu0 %v1345
        %v1599 = vpop.f32.mrf.mxu0
        %v1600 = vadd.f32 %v1191, %v1599
        %v1601 = vpop.f32.mrf.mxu0
        %v1602 = vpop.f32.mrf.mxu0
        %v1603 = vadd.f32 %v1194, %v1602
        %v1604 = vpop.f32.mrf.mxu0
        %1605 = vmatprep.mubr.bf16.mxu0 0
        %1606 = vmatmul.mubr.bf16.gmra.mxu0 %v1348
        %v1607 = vpop.f32.mrf.mxu0
        %v1608 = vadd.f32 %v1199, %v1607
        %v1609 = vpop.f32.mrf.mxu0
        %v1610 = vpop.f32.mrf.mxu0
        %v1611 = vadd.f32 %v1202, %v1610
        %v1612 = vpop.f32.mrf.mxu0
        %1613 = vmatprep.mubr.bf16.mxu0 0
        %1614 = vmatmul.mubr.bf16.gmra.mxu0 %v1351
        %v1615 = vpop.f32.mrf.mxu0
        %v1616 = vadd.f32 %v1207, %v1615
        %v1617 = vpop.f32.mrf.mxu0
        %v1618 = vpop.f32.mrf.mxu0
        %v1619 = vadd.f32 %v1210, %v1618
        %v1620 = vpop.f32.mrf.mxu0
        %1621 = vmatprep.mubr.bf16.mxu0 0
        %1622 = vmatmul.mubr.bf16.gmra.mxu0 %v1354
        %v1623 = vpop.f32.mrf.mxu0
        %v1624 = vadd.f32 %v1215, %v1623
        %v1625 = vpop.f32.mrf.mxu0
        %v1626 = vpop.f32.mrf.mxu0
        %v1627 = vadd.f32 %v1218, %v1626
        %v1628 = vpop.f32.mrf.mxu0
        %1629 = vmatprep.mubr.bf16.mxu0 0
        %1630 = vmatmul.mubr.bf16.gmra.mxu0 %v1357
        %v1631 = vpop.f32.mrf.mxu0
        %v1632 = vadd.f32 %v1223, %v1631
        %v1633 = vpop.f32.mrf.mxu0
        %v1634 = vpop.f32.mrf.mxu0
        %v1635 = vadd.f32 %v1226, %v1634
        %v1636 = vpop.f32.mrf.mxu0
        %1637 = vmatprep.mubr.bf16.mxu0 0
        %1638 = vmatmul.mubr.bf16.gmra.mxu0 %v1360
        %v1639 = vpop.f32.mrf.mxu0
        %v1640 = vadd.f32 %v1231, %v1639
        %v1641 = vpop.f32.mrf.mxu0
        %v1642 = vpop.f32.mrf.mxu0
        %v1643 = vadd.f32 %v1234, %v1642
        %v1644 = vpop.f32.mrf.mxu0
        %1645 = vmatprep.mubr.bf16.mxu0 0
        %1646 = vmatmul.mubr.bf16.gmra.mxu0 %v1363
        %v1647 = vpop.f32.mrf.mxu0
        %v1648 = vadd.f32 %v1239, %v1647
        %v1649 = vpop.f32.mrf.mxu0
        %v1650 = vpop.f32.mrf.mxu0
        %v1651 = vadd.f32 %v1242, %v1650
        %v1652 = vpop.f32.mrf.mxu0
        %1653 = vdwg.mxu0
        %v1654 = vpack.c.bf16 %v411, %v410
        %v1655 = vpack.c.bf16 %v413, %v412
        %v1656 = vpack.c.bf16 %v415, %v414
        %v1657 = vpack.c.bf16 %v417, %v416
        %v1658 = vpack.c.bf16 %v420, %v419
        %v1659 = vpack.c.bf16 %v422, %v421
        %v1660 = vpack.c.bf16 %v424, %v423
        %v1661 = vpack.c.bf16 %v426, %v425
        %v1662 = vpack.c.bf16 %v429, %v428
        %v1663 = vpack.c.bf16 %v431, %v430
        %v1664 = vpack.c.bf16 %v433, %v432
        %v1665 = vpack.c.bf16 %v435, %v434
        %v1666 = vpack.c.bf16 %v438, %v437
        %v1667 = vpack.c.bf16 %v440, %v439
        %v1668 = vpack.c.bf16 %v442, %v441
        %v1669 = vpack.c.bf16 %v444, %v443
        %v1670 = vpack.c.bf16 %v447, %v446
        %v1671 = vpack.c.bf16 %v449, %v448
        %v1672 = vpack.c.bf16 %v451, %v450
        %v1673 = vpack.c.bf16 %v453, %v452
        %v1674 = vpack.c.bf16 %v456, %v455
        %v1675 = vpack.c.bf16 %v458, %v457
        %v1676 = vpack.c.bf16 %v460, %v459
        %v1677 = vpack.c.bf16 %v462, %v461
        %v1678 = vpack.c.bf16 %v465, %v464
        %v1679 = vpack.c.bf16 %v467, %v466
        %v1680 = vpack.c.bf16 %v469, %v468
        %v1681 = vpack.c.bf16 %v471, %v470
        %v1682 = vpack.c.bf16 %v474, %v473
        %v1683 = vpack.c.bf16 %v476, %v475
        %v1684 = vpack.c.bf16 %v478, %v477
        %v1685 = vpack.c.bf16 %v480, %v479
        %s1686 = scalar_lea.vmem %s1, 64
        %v1687 = vld [vmem:[%s1686] sm:$0xf]
        %v1688 = vld [vmem:[%s1686 + $0x4] sm:$0xf]
        %v1689 = vld [vmem:[%s1686 + $0x8] sm:$0xf]
        %v1690 = vld [vmem:[%s1686 + $0xc] sm:$0xf]
        %v1691 = vld [vmem:[%s1686 + $0x10] sm:$0xf]
        %v1692 = vld [vmem:[%s1686 + $0x14] sm:$0xf]
        %v1693 = vld [vmem:[%s1686 + $0x18] sm:$0xf]
        %v1694 = vld [vmem:[%s1686 + $0x1c] sm:$0xf]
        %v1703 = vunpack.c.l.b16 %v1687
        %v1704 = vunpack.c.l.b16 %v1688
        %v1705 = vunpack.c.l.b16 %v1689
        %v1706 = vunpack.c.l.b16 %v1690
        %v1707 = vunpack.c.l.b16 %v1691
        %v1708 = vunpack.c.l.b16 %v1692
        %v1709 = vunpack.c.l.b16 %v1693
        %v1710 = vunpack.c.l.b16 %v1694
        %v1711 = vpack.c.b16 %v1704, %v1703
        %v1712 = vpack.c.b16 %v1706, %v1705
        %v1713 = vpack.c.b16 %v1708, %v1707
        %v1714 = vpack.c.b16 %v1710, %v1709
        %v1720 = vsel %vm859, %v1654, 0
        %v1723 = vsel %vm859, %v1655, 0
        %v1726 = vsel %vm859, %v1656, 0
        %v1729 = vsel %vm859, %v1657, 0
        %v1732 = vsel %vm859, %v1658, 0
        %v1735 = vsel %vm859, %v1659, 0
        %v1738 = vsel %vm859, %v1660, 0
        %v1741 = vsel %vm859, %v1661, 0
        %v1744 = vsel %vm859, %v1662, 0
        %v1747 = vsel %vm859, %v1663, 0
        %v1750 = vsel %vm859, %v1664, 0
        %v1753 = vsel %vm859, %v1665, 0
        %v1756 = vsel %vm859, %v1666, 0
        %v1759 = vsel %vm859, %v1667, 0
        %v1762 = vsel %vm859, %v1668, 0
        %v1765 = vsel %vm859, %v1669, 0
        %v1768 = vsel %vm859, %v1670, 0
        %v1771 = vsel %vm859, %v1671, 0
        %v1774 = vsel %vm859, %v1672, 0
        %v1777 = vsel %vm859, %v1673, 0
        %v1780 = vsel %vm859, %v1674, 0
        %v1783 = vsel %vm859, %v1675, 0
        %v1786 = vsel %vm859, %v1676, 0
        %v1789 = vsel %vm859, %v1677, 0
        %v1792 = vsel %vm859, %v1678, 0
        %v1795 = vsel %vm859, %v1679, 0
        %v1798 = vsel %vm859, %v1680, 0
        %v1801 = vsel %vm859, %v1681, 0
        %v1804 = vsel %vm859, %v1682, 0
        %v1807 = vsel %vm859, %v1683, 0
        %v1810 = vsel %vm859, %v1684, 0
        %v1813 = vsel %vm859, %v1685, 0
        %1815 = vmatprep.subr.bf16.mxu0 0
        %1816 = vmatpush1.bf16.msra.mxu0 0
        %1817 = vmatprep.subr.bf16.mxu0 0
        %1818 = vmatpush1.bf16.msra.mxu0 0
        %1819 = vmatprep.subr.bf16.mxu0 0
        %1820 = vmatpush1.bf16.msra.mxu0 0
        %1821 = vmatprep.subr.bf16.mxu0 0
        %1822 = vmatpush1.bf16.msra.mxu0 0
        %1823 = vmatprep.subr.bf16.mxu0 0
        %1824 = vmatpush1.bf16.msra.mxu0 %v1714
        %1825 = vmatprep.subr.bf16.mxu0 0
        %1826 = vmatpush1.bf16.msra.mxu0 %v1713
        %1827 = vmatprep.subr.bf16.mxu0 0
        %1828 = vmatpush1.bf16.msra.mxu0 %v1712
        %1829 = vmatprep.subr.bf16.mxu0 0
        %1830 = vmatpush1.bf16.msra.mxu0 %v1711
        %1831 = vmatprep.subr.bf16.mxu0 0
        %1832 = vmatpush2.bf16.msra.mxu0 0
        %1833 = vmatprep.subr.bf16.mxu0 0
        %1834 = vmatpush2.bf16.msra.mxu0 0
        %1835 = vmatprep.subr.bf16.mxu0 0
        %1836 = vmatpush2.bf16.msra.mxu0 0
        %1837 = vmatprep.subr.bf16.mxu0 0
        %1838 = vmatpush2.bf16.msra.mxu0 0
        %1839 = vmatprep.subr.bf16.mxu0 0
        %1840 = vmatpush2.bf16.msra.mxu0 0
        %1841 = vmatprep.subr.bf16.mxu0 0
        %1842 = vmatpush2.bf16.msra.mxu0 0
        %1843 = vmatprep.subr.bf16.mxu0 0
        %1844 = vmatpush2.bf16.msra.mxu0 0
        %1845 = vmatprep.subr.bf16.mxu0 0
        %1846 = vmatpush2.bf16.msra.mxu0 0
        %1847 = vmatprep.mubr.bf16.mxu0 0
        %1848 = vmatmul.mubr.bf16.gmra.mxu0 %v1720
        %v1849 = vpop.f32.mrf.mxu0
        %v1850 = vadd.f32 0.0, %v1849
        %v1851 = vpop.f32.mrf.mxu0
        %v1852 = vpop.f32.mrf.mxu0
        %v1853 = vadd.f32 0.0, %v1852
        %v1854 = vpop.f32.mrf.mxu0
        %1855 = vmatprep.mubr.bf16.mxu0 0
        %1856 = vmatmul.mubr.bf16.gmra.mxu0 %v1723
        %v1857 = vpop.f32.mrf.mxu0
        %v1858 = vadd.f32 0.0, %v1857
        %v1859 = vpop.f32.mrf.mxu0
        %v1860 = vpop.f32.mrf.mxu0
        %v1861 = vadd.f32 0.0, %v1860
        %v1862 = vpop.f32.mrf.mxu0
        %1863 = vmatprep.mubr.bf16.mxu0 0
        %1864 = vmatmul.mubr.bf16.gmra.mxu0 %v1726
        %v1865 = vpop.f32.mrf.mxu0
        %v1866 = vadd.f32 0.0, %v1865
        %v1867 = vpop.f32.mrf.mxu0
        %v1868 = vpop.f32.mrf.mxu0
        %v1869 = vadd.f32 0.0, %v1868
        %v1870 = vpop.f32.mrf.mxu0
        %1871 = vmatprep.mubr.bf16.mxu0 0
        %1872 = vmatmul.mubr.bf16.gmra.mxu0 %v1729
        %v1873 = vpop.f32.mrf.mxu0
        %v1874 = vadd.f32 0.0, %v1873
        %v1875 = vpop.f32.mrf.mxu0
        %v1876 = vpop.f32.mrf.mxu0
        %v1877 = vadd.f32 0.0, %v1876
        %v1878 = vpop.f32.mrf.mxu0
        %1879 = vmatprep.mubr.bf16.mxu0 0
        %1880 = vmatmul.mubr.bf16.gmra.mxu0 %v1732
        %v1881 = vpop.f32.mrf.mxu0
        %v1882 = vadd.f32 0.0, %v1881
        %v1883 = vpop.f32.mrf.mxu0
        %v1884 = vpop.f32.mrf.mxu0
        %v1885 = vadd.f32 0.0, %v1884
        %v1886 = vpop.f32.mrf.mxu0
        %1887 = vmatprep.mubr.bf16.mxu0 0
        %1888 = vmatmul.mubr.bf16.gmra.mxu0 %v1735
        %v1889 = vpop.f32.mrf.mxu0
        %v1890 = vadd.f32 0.0, %v1889
        %v1891 = vpop.f32.mrf.mxu0
        %v1892 = vpop.f32.mrf.mxu0
        %v1893 = vadd.f32 0.0, %v1892
        %v1894 = vpop.f32.mrf.mxu0
        %1895 = vmatprep.mubr.bf16.mxu0 0
        %1896 = vmatmul.mubr.bf16.gmra.mxu0 %v1738
        %v1897 = vpop.f32.mrf.mxu0
        %v1898 = vadd.f32 0.0, %v1897
        %v1899 = vpop.f32.mrf.mxu0
        %v1900 = vpop.f32.mrf.mxu0
        %v1901 = vadd.f32 0.0, %v1900
        %v1902 = vpop.f32.mrf.mxu0
        %1903 = vmatprep.mubr.bf16.mxu0 0
        %1904 = vmatmul.mubr.bf16.gmra.mxu0 %v1741
        %v1905 = vpop.f32.mrf.mxu0
        %v1906 = vadd.f32 0.0, %v1905
        %v1907 = vpop.f32.mrf.mxu0
        %v1908 = vpop.f32.mrf.mxu0
        %v1909 = vadd.f32 0.0, %v1908
        %v1910 = vpop.f32.mrf.mxu0
        %1911 = vmatprep.mubr.bf16.mxu0 0
        %1912 = vmatmul.mubr.bf16.gmra.mxu0 %v1744
        %v1913 = vpop.f32.mrf.mxu0
        %v1914 = vadd.f32 0.0, %v1913
        %v1915 = vpop.f32.mrf.mxu0
        %v1916 = vpop.f32.mrf.mxu0
        %v1917 = vadd.f32 0.0, %v1916
        %v1918 = vpop.f32.mrf.mxu0
        %1919 = vmatprep.mubr.bf16.mxu0 0
        %1920 = vmatmul.mubr.bf16.gmra.mxu0 %v1747
        %v1921 = vpop.f32.mrf.mxu0
        %v1922 = vadd.f32 0.0, %v1921
        %v1923 = vpop.f32.mrf.mxu0
        %v1924 = vpop.f32.mrf.mxu0
        %v1925 = vadd.f32 0.0, %v1924
        %v1926 = vpop.f32.mrf.mxu0
        %1927 = vmatprep.mubr.bf16.mxu0 0
        %1928 = vmatmul.mubr.bf16.gmra.mxu0 %v1750
        %v1929 = vpop.f32.mrf.mxu0
        %v1930 = vadd.f32 0.0, %v1929
        %v1931 = vpop.f32.mrf.mxu0
        %v1932 = vpop.f32.mrf.mxu0
        %v1933 = vadd.f32 0.0, %v1932
        %v1934 = vpop.f32.mrf.mxu0
        %1935 = vmatprep.mubr.bf16.mxu0 0
        %1936 = vmatmul.mubr.bf16.gmra.mxu0 %v1753
        %v1937 = vpop.f32.mrf.mxu0
        %v1938 = vadd.f32 0.0, %v1937
        %v1939 = vpop.f32.mrf.mxu0
        %v1940 = vpop.f32.mrf.mxu0
        %v1941 = vadd.f32 0.0, %v1940
        %v1942 = vpop.f32.mrf.mxu0
        %1943 = vmatprep.mubr.bf16.mxu0 0
        %1944 = vmatmul.mubr.bf16.gmra.mxu0 %v1756
        %v1945 = vpop.f32.mrf.mxu0
        %v1946 = vadd.f32 0.0, %v1945
        %v1947 = vpop.f32.mrf.mxu0
        %v1948 = vpop.f32.mrf.mxu0
        %v1949 = vadd.f32 0.0, %v1948
        %v1950 = vpop.f32.mrf.mxu0
        %1951 = vmatprep.mubr.bf16.mxu0 0
        %1952 = vmatmul.mubr.bf16.gmra.mxu0 %v1759
        %v1953 = vpop.f32.mrf.mxu0
        %v1954 = vadd.f32 0.0, %v1953
        %v1955 = vpop.f32.mrf.mxu0
        %v1956 = vpop.f32.mrf.mxu0
        %v1957 = vadd.f32 0.0, %v1956
        %v1958 = vpop.f32.mrf.mxu0
        %1959 = vmatprep.mubr.bf16.mxu0 0
        %1960 = vmatmul.mubr.bf16.gmra.mxu0 %v1762
        %v1961 = vpop.f32.mrf.mxu0
        %v1962 = vadd.f32 0.0, %v1961
        %v1963 = vpop.f32.mrf.mxu0
        %v1964 = vpop.f32.mrf.mxu0
        %v1965 = vadd.f32 0.0, %v1964
        %v1966 = vpop.f32.mrf.mxu0
        %1967 = vmatprep.mubr.bf16.mxu0 0
        %1968 = vmatmul.mubr.bf16.gmra.mxu0 %v1765
        %v1969 = vpop.f32.mrf.mxu0
        %v1970 = vadd.f32 0.0, %v1969
        %v1971 = vpop.f32.mrf.mxu0
        %v1972 = vpop.f32.mrf.mxu0
        %v1973 = vadd.f32 0.0, %v1972
        %v1974 = vpop.f32.mrf.mxu0
        %1975 = vmatprep.mubr.bf16.mxu0 0
        %1976 = vmatmul.mubr.bf16.gmra.mxu0 %v1768
        %v1977 = vpop.f32.mrf.mxu0
        %v1978 = vadd.f32 0.0, %v1977
        %v1979 = vpop.f32.mrf.mxu0
        %v1980 = vpop.f32.mrf.mxu0
        %v1981 = vadd.f32 0.0, %v1980
        %v1982 = vpop.f32.mrf.mxu0
        %1983 = vmatprep.mubr.bf16.mxu0 0
        %1984 = vmatmul.mubr.bf16.gmra.mxu0 %v1771
        %v1985 = vpop.f32.mrf.mxu0
        %v1986 = vadd.f32 0.0, %v1985
        %v1987 = vpop.f32.mrf.mxu0
        %v1988 = vpop.f32.mrf.mxu0
        %v1989 = vadd.f32 0.0, %v1988
        %v1990 = vpop.f32.mrf.mxu0
        %1991 = vmatprep.mubr.bf16.mxu0 0
        %1992 = vmatmul.mubr.bf16.gmra.mxu0 %v1774
        %v1993 = vpop.f32.mrf.mxu0
        %v1994 = vadd.f32 0.0, %v1993
        %v1995 = vpop.f32.mrf.mxu0
        %v1996 = vpop.f32.mrf.mxu0
        %v1997 = vadd.f32 0.0, %v1996
        %v1998 = vpop.f32.mrf.mxu0
        %1999 = vmatprep.mubr.bf16.mxu0 0
        %2000 = vmatmul.mubr.bf16.gmra.mxu0 %v1777
        %v2001 = vpop.f32.mrf.mxu0
        %v2002 = vadd.f32 0.0, %v2001
        %v2003 = vpop.f32.mrf.mxu0
        %v2004 = vpop.f32.mrf.mxu0
        %v2005 = vadd.f32 0.0, %v2004
        %v2006 = vpop.f32.mrf.mxu0
        %2007 = vmatprep.mubr.bf16.mxu0 0
        %2008 = vmatmul.mubr.bf16.gmra.mxu0 %v1780
        %v2009 = vpop.f32.mrf.mxu0
        %v2010 = vadd.f32 0.0, %v2009
        %v2011 = vpop.f32.mrf.mxu0
        %v2012 = vpop.f32.mrf.mxu0
        %v2013 = vadd.f32 0.0, %v2012
        %v2014 = vpop.f32.mrf.mxu0
        %2015 = vmatprep.mubr.bf16.mxu0 0
        %2016 = vmatmul.mubr.bf16.gmra.mxu0 %v1783
        %v2017 = vpop.f32.mrf.mxu0
        %v2018 = vadd.f32 0.0, %v2017
        %v2019 = vpop.f32.mrf.mxu0
        %v2020 = vpop.f32.mrf.mxu0
        %v2021 = vadd.f32 0.0, %v2020
        %v2022 = vpop.f32.mrf.mxu0
        %2023 = vmatprep.mubr.bf16.mxu0 0
        %2024 = vmatmul.mubr.bf16.gmra.mxu0 %v1786
        %v2025 = vpop.f32.mrf.mxu0
        %v2026 = vadd.f32 0.0, %v2025
        %v2027 = vpop.f32.mrf.mxu0
        %v2028 = vpop.f32.mrf.mxu0
        %v2029 = vadd.f32 0.0, %v2028
        %v2030 = vpop.f32.mrf.mxu0
        %2031 = vmatprep.mubr.bf16.mxu0 0
        %2032 = vmatmul.mubr.bf16.gmra.mxu0 %v1789
        %v2033 = vpop.f32.mrf.mxu0
        %v2034 = vadd.f32 0.0, %v2033
        %v2035 = vpop.f32.mrf.mxu0
        %v2036 = vpop.f32.mrf.mxu0
        %v2037 = vadd.f32 0.0, %v2036
        %v2038 = vpop.f32.mrf.mxu0
        %2039 = vmatprep.mubr.bf16.mxu0 0
        %2040 = vmatmul.mubr.bf16.gmra.mxu0 %v1792
        %v2041 = vpop.f32.mrf.mxu0
        %v2042 = vadd.f32 0.0, %v2041
        %v2043 = vpop.f32.mrf.mxu0
        %v2044 = vpop.f32.mrf.mxu0
        %v2045 = vadd.f32 0.0, %v2044
        %v2046 = vpop.f32.mrf.mxu0
        %2047 = vmatprep.mubr.bf16.mxu0 0
        %2048 = vmatmul.mubr.bf16.gmra.mxu0 %v1795
        %v2049 = vpop.f32.mrf.mxu0
        %v2050 = vadd.f32 0.0, %v2049
        %v2051 = vpop.f32.mrf.mxu0
        %v2052 = vpop.f32.mrf.mxu0
        %v2053 = vadd.f32 0.0, %v2052
        %v2054 = vpop.f32.mrf.mxu0
        %2055 = vmatprep.mubr.bf16.mxu0 0
        %2056 = vmatmul.mubr.bf16.gmra.mxu0 %v1798
        %v2057 = vpop.f32.mrf.mxu0
        %v2058 = vadd.f32 0.0, %v2057
        %v2059 = vpop.f32.mrf.mxu0
        %v2060 = vpop.f32.mrf.mxu0
        %v2061 = vadd.f32 0.0, %v2060
        %v2062 = vpop.f32.mrf.mxu0
        %2063 = vmatprep.mubr.bf16.mxu0 0
        %2064 = vmatmul.mubr.bf16.gmra.mxu0 %v1801
        %v2065 = vpop.f32.mrf.mxu0
        %v2066 = vadd.f32 0.0, %v2065
        %v2067 = vpop.f32.mrf.mxu0
        %v2068 = vpop.f32.mrf.mxu0
        %v2069 = vadd.f32 0.0, %v2068
        %v2070 = vpop.f32.mrf.mxu0
        %2071 = vmatprep.mubr.bf16.mxu0 0
        %2072 = vmatmul.mubr.bf16.gmra.mxu0 %v1804
        %v2073 = vpop.f32.mrf.mxu0
        %v2074 = vadd.f32 0.0, %v2073
        %v2075 = vpop.f32.mrf.mxu0
        %v2076 = vpop.f32.mrf.mxu0
        %v2077 = vadd.f32 0.0, %v2076
        %v2078 = vpop.f32.mrf.mxu0
        %2079 = vmatprep.mubr.bf16.mxu0 0
        %2080 = vmatmul.mubr.bf16.gmra.mxu0 %v1807
        %v2081 = vpop.f32.mrf.mxu0
        %v2082 = vadd.f32 0.0, %v2081
        %v2083 = vpop.f32.mrf.mxu0
        %v2084 = vpop.f32.mrf.mxu0
        %v2085 = vadd.f32 0.0, %v2084
        %v2086 = vpop.f32.mrf.mxu0
        %2087 = vmatprep.mubr.bf16.mxu0 0
        %2088 = vmatmul.mubr.bf16.gmra.mxu0 %v1810
        %v2089 = vpop.f32.mrf.mxu0
        %v2090 = vadd.f32 0.0, %v2089
        %v2091 = vpop.f32.mrf.mxu0
        %v2092 = vpop.f32.mrf.mxu0
        %v2093 = vadd.f32 0.0, %v2092
        %v2094 = vpop.f32.mrf.mxu0
        %2095 = vmatprep.mubr.bf16.mxu0 0
        %2096 = vmatmul.mubr.bf16.gmra.mxu0 %v1813
        %v2097 = vpop.f32.mrf.mxu0
        %v2098 = vadd.f32 0.0, %v2097
        %v2099 = vpop.f32.mrf.mxu0
        %v2100 = vpop.f32.mrf.mxu0
        %v2101 = vadd.f32 0.0, %v2100
        %v2102 = vpop.f32.mrf.mxu0
        %2103 = vdwg.mxu0
        %v2104 = vadd.f32 %v1400, %v1850
        %v2105 = vadd.f32 %v1403, %v1853
        %v2106 = vadd.f32 %v1408, %v1858
        %v2107 = vadd.f32 %v1411, %v1861
        %v2108 = vadd.f32 %v1416, %v1866
        %v2109 = vadd.f32 %v1419, %v1869
        %v2110 = vadd.f32 %v1424, %v1874
        %v2111 = vadd.f32 %v1427, %v1877
        %v2112 = vadd.f32 %v1432, %v1882
        %v2113 = vadd.f32 %v1435, %v1885
        %v2114 = vadd.f32 %v1440, %v1890
        %v2115 = vadd.f32 %v1443, %v1893
        %v2116 = vadd.f32 %v1448, %v1898
        %v2117 = vadd.f32 %v1451, %v1901
        %v2118 = vadd.f32 %v1456, %v1906
        %v2119 = vadd.f32 %v1459, %v1909
        %v2120 = vadd.f32 %v1464, %v1914
        %v2121 = vadd.f32 %v1467, %v1917
        %v2122 = vadd.f32 %v1472, %v1922
        %v2123 = vadd.f32 %v1475, %v1925
        %v2124 = vadd.f32 %v1480, %v1930
        %v2125 = vadd.f32 %v1483, %v1933
        %v2126 = vadd.f32 %v1488, %v1938
        %v2127 = vadd.f32 %v1491, %v1941
        %v2128 = vadd.f32 %v1496, %v1946
        %v2129 = vadd.f32 %v1499, %v1949
        %v2130 = vadd.f32 %v1504, %v1954
        %v2131 = vadd.f32 %v1507, %v1957
        %v2132 = vadd.f32 %v1512, %v1962
        %v2133 = vadd.f32 %v1515, %v1965
        %v2134 = vadd.f32 %v1520, %v1970
        %v2135 = vadd.f32 %v1523, %v1973
        %v2136 = vadd.f32 %v1528, %v1978
        %v2137 = vadd.f32 %v1531, %v1981
        %v2138 = vadd.f32 %v1536, %v1986
        %v2139 = vadd.f32 %v1539, %v1989
        %v2140 = vadd.f32 %v1544, %v1994
        %v2141 = vadd.f32 %v1547, %v1997
        %v2142 = vadd.f32 %v1552, %v2002
        %v2143 = vadd.f32 %v1555, %v2005
        %v2144 = vadd.f32 %v1560, %v2010
        %v2145 = vadd.f32 %v1563, %v2013
        %v2146 = vadd.f32 %v1568, %v2018
        %v2147 = vadd.f32 %v1571, %v2021
        %v2148 = vadd.f32 %v1576, %v2026
        %v2149 = vadd.f32 %v1579, %v2029
        %v2150 = vadd.f32 %v1584, %v2034
        %v2151 = vadd.f32 %v1587, %v2037
        %v2152 = vadd.f32 %v1592, %v2042
        %v2153 = vadd.f32 %v1595, %v2045
        %v2154 = vadd.f32 %v1600, %v2050
        %v2155 = vadd.f32 %v1603, %v2053
        %v2156 = vadd.f32 %v1608, %v2058
        %v2157 = vadd.f32 %v1611, %v2061
        %v2158 = vadd.f32 %v1616, %v2066
        %v2159 = vadd.f32 %v1619, %v2069
        %v2160 = vadd.f32 %v1624, %v2074
        %v2161 = vadd.f32 %v1627, %v2077
        %v2162 = vadd.f32 %v1632, %v2082
        %v2163 = vadd.f32 %v1635, %v2085
        %v2164 = vadd.f32 %v1640, %v2090
        %v2165 = vadd.f32 %v1643, %v2093
        %v2166 = vadd.f32 %v1648, %v2098
        %v2167 = vadd.f32 %v1651, %v2101
        %v2168 = vld [vmem:[%s2] sm:$0x1]
        %v2170 = vlaneseq
        %v2171 = vshrl.u32 %v2170, 7
        %v2172 = vsub.s32 0, %v2171
        %v2173 = vrot.slane %v2168, %v2172
        %v2175 = vadd.f32 %v2104, %v2173
        %v2176 = vadd.f32 %v2105, %v2173
        %v2177 = vadd.f32 %v2106, %v2173
        %v2178 = vadd.f32 %v2107, %v2173
        %v2179 = vadd.f32 %v2108, %v2173
        %v2180 = vadd.f32 %v2109, %v2173
        %v2181 = vadd.f32 %v2110, %v2173
        %v2182 = vadd.f32 %v2111, %v2173
        %v2183 = vadd.f32 %v2112, %v2173
        %v2184 = vadd.f32 %v2113, %v2173
        %v2185 = vadd.f32 %v2114, %v2173
        %v2186 = vadd.f32 %v2115, %v2173
        %v2187 = vadd.f32 %v2116, %v2173
        %v2188 = vadd.f32 %v2117, %v2173
        %v2189 = vadd.f32 %v2118, %v2173
        %v2190 = vadd.f32 %v2119, %v2173
        %v2191 = vadd.f32 %v2120, %v2173
        %v2192 = vadd.f32 %v2121, %v2173
        %v2193 = vadd.f32 %v2122, %v2173
        %v2194 = vadd.f32 %v2123, %v2173
        %v2195 = vadd.f32 %v2124, %v2173
        %v2196 = vadd.f32 %v2125, %v2173
        %v2197 = vadd.f32 %v2126, %v2173
        %v2198 = vadd.f32 %v2127, %v2173
        %v2199 = vadd.f32 %v2128, %v2173
        %v2200 = vadd.f32 %v2129, %v2173
        %v2201 = vadd.f32 %v2130, %v2173
        %v2202 = vadd.f32 %v2131, %v2173
        %v2203 = vadd.f32 %v2132, %v2173
        %v2204 = vadd.f32 %v2133, %v2173
        %v2205 = vadd.f32 %v2134, %v2173
        %v2206 = vadd.f32 %v2135, %v2173
        %v2207 = vadd.f32 %v2136, %v2173
        %v2208 = vadd.f32 %v2137, %v2173
        %v2209 = vadd.f32 %v2138, %v2173
        %v2210 = vadd.f32 %v2139, %v2173
        %v2211 = vadd.f32 %v2140, %v2173
        %v2212 = vadd.f32 %v2141, %v2173
        %v2213 = vadd.f32 %v2142, %v2173
        %v2214 = vadd.f32 %v2143, %v2173
        %v2215 = vadd.f32 %v2144, %v2173
        %v2216 = vadd.f32 %v2145, %v2173
        %v2217 = vadd.f32 %v2146, %v2173
        %v2218 = vadd.f32 %v2147, %v2173
        %v2219 = vadd.f32 %v2148, %v2173
        %v2220 = vadd.f32 %v2149, %v2173
        %v2221 = vadd.f32 %v2150, %v2173
        %v2222 = vadd.f32 %v2151, %v2173
        %v2223 = vadd.f32 %v2152, %v2173
        %v2224 = vadd.f32 %v2153, %v2173
        %v2225 = vadd.f32 %v2154, %v2173
        %v2226 = vadd.f32 %v2155, %v2173
        %v2227 = vadd.f32 %v2156, %v2173
        %v2228 = vadd.f32 %v2157, %v2173
        %v2229 = vadd.f32 %v2158, %v2173
        %v2230 = vadd.f32 %v2159, %v2173
        %v2231 = vadd.f32 %v2160, %v2173
        %v2232 = vadd.f32 %v2161, %v2173
        %v2233 = vadd.f32 %v2162, %v2173
        %v2234 = vadd.f32 %v2163, %v2173
        %v2235 = vadd.f32 %v2164, %v2173
        %v2236 = vadd.f32 %v2165, %v2173
        %v2237 = vadd.f32 %v2166, %v2173
        %v2238 = vadd.f32 %v2167, %v2173
        %v2239 = vxor.u32 %v2175, 2147483648
        %v2240 = vxor.u32 %v2176, 2147483648
        %v2241 = vxor.u32 %v2177, 2147483648
        %v2242 = vxor.u32 %v2178, 2147483648
        %v2243 = vxor.u32 %v2179, 2147483648
        %v2244 = vxor.u32 %v2180, 2147483648
        %v2245 = vxor.u32 %v2181, 2147483648
        %v2246 = vxor.u32 %v2182, 2147483648
        %v2247 = vxor.u32 %v2183, 2147483648
        %v2248 = vxor.u32 %v2184, 2147483648
        %v2249 = vxor.u32 %v2185, 2147483648
        %v2250 = vxor.u32 %v2186, 2147483648
        %v2251 = vxor.u32 %v2187, 2147483648
        %v2252 = vxor.u32 %v2188, 2147483648
        %v2253 = vxor.u32 %v2189, 2147483648
        %v2254 = vxor.u32 %v2190, 2147483648
        %v2255 = vxor.u32 %v2191, 2147483648
        %v2256 = vxor.u32 %v2192, 2147483648
        %v2257 = vxor.u32 %v2193, 2147483648
        %v2258 = vxor.u32 %v2194, 2147483648
        %v2259 = vxor.u32 %v2195, 2147483648
        %v2260 = vxor.u32 %v2196, 2147483648
        %v2261 = vxor.u32 %v2197, 2147483648
        %v2262 = vxor.u32 %v2198, 2147483648
        %v2263 = vxor.u32 %v2199, 2147483648
        %v2264 = vxor.u32 %v2200, 2147483648
        %v2265 = vxor.u32 %v2201, 2147483648
        %v2266 = vxor.u32 %v2202, 2147483648
        %v2267 = vxor.u32 %v2203, 2147483648
        %v2268 = vxor.u32 %v2204, 2147483648
        %v2269 = vxor.u32 %v2205, 2147483648
        %v2270 = vxor.u32 %v2206, 2147483648
        %v2271 = vxor.u32 %v2207, 2147483648
        %v2272 = vxor.u32 %v2208, 2147483648
        %v2273 = vxor.u32 %v2209, 2147483648
        %v2274 = vxor.u32 %v2210, 2147483648
        %v2275 = vxor.u32 %v2211, 2147483648
        %v2276 = vxor.u32 %v2212, 2147483648
        %v2277 = vxor.u32 %v2213, 2147483648
        %v2278 = vxor.u32 %v2214, 2147483648
        %v2279 = vxor.u32 %v2215, 2147483648
        %v2280 = vxor.u32 %v2216, 2147483648
        %v2281 = vxor.u32 %v2217, 2147483648
        %v2282 = vxor.u32 %v2218, 2147483648
        %v2283 = vxor.u32 %v2219, 2147483648
        %v2284 = vxor.u32 %v2220, 2147483648
        %v2285 = vxor.u32 %v2221, 2147483648
        %v2286 = vxor.u32 %v2222, 2147483648
        %v2287 = vxor.u32 %v2223, 2147483648
        %v2288 = vxor.u32 %v2224, 2147483648
        %v2289 = vxor.u32 %v2225, 2147483648
        %v2290 = vxor.u32 %v2226, 2147483648
        %v2291 = vxor.u32 %v2227, 2147483648
        %v2292 = vxor.u32 %v2228, 2147483648
        %v2293 = vxor.u32 %v2229, 2147483648
        %v2294 = vxor.u32 %v2230, 2147483648
        %v2295 = vxor.u32 %v2231, 2147483648
        %v2296 = vxor.u32 %v2232, 2147483648
        %v2297 = vxor.u32 %v2233, 2147483648
        %v2298 = vxor.u32 %v2234, 2147483648
        %v2299 = vxor.u32 %v2235, 2147483648
        %v2300 = vxor.u32 %v2236, 2147483648
        %v2301 = vxor.u32 %v2237, 2147483648
        %v2302 = vxor.u32 %v2238, 2147483648
        %v2303 = vmul.f32 %v2239, 1.442695
        %v2304 = vpow.pop %v2303
        %v2305 = vmul.f32 %v2240, 1.442695
        %v2306 = vpow.pop %v2305
        %v2307 = vmul.f32 %v2241, 1.442695
        %v2308 = vpow.pop %v2307
        %v2309 = vmul.f32 %v2242, 1.442695
        %v2310 = vpow.pop %v2309
        %v2311 = vmul.f32 %v2243, 1.442695
        %v2312 = vpow.pop %v2311
        %v2313 = vmul.f32 %v2244, 1.442695
        %v2314 = vpow.pop %v2313
        %v2315 = vmul.f32 %v2245, 1.442695
        %v2316 = vpow.pop %v2315
        %v2317 = vmul.f32 %v2246, 1.442695
        %v2318 = vpow.pop %v2317
        %v2319 = vmul.f32 %v2247, 1.442695
        %v2320 = vpow.pop %v2319
        %v2321 = vmul.f32 %v2248, 1.442695
        %v2322 = vpow.pop %v2321
        %v2323 = vmul.f32 %v2249, 1.442695
        %v2324 = vpow.pop %v2323
        %v2325 = vmul.f32 %v2250, 1.442695
        %v2326 = vpow.pop %v2325
        %v2327 = vmul.f32 %v2251, 1.442695
        %v2328 = vpow.pop %v2327
        %v2329 = vmul.f32 %v2252, 1.442695
        %v2330 = vpow.pop %v2329
        %v2331 = vmul.f32 %v2253, 1.442695
        %v2332 = vpow.pop %v2331
        %v2333 = vmul.f32 %v2254, 1.442695
        %v2334 = vpow.pop %v2333
        %v2335 = vmul.f32 %v2255, 1.442695
        %v2336 = vpow.pop %v2335
        %v2337 = vmul.f32 %v2256, 1.442695
        %v2338 = vpow.pop %v2337
        %v2339 = vmul.f32 %v2257, 1.442695
        %v2340 = vpow.pop %v2339
        %v2341 = vmul.f32 %v2258, 1.442695
        %v2342 = vpow.pop %v2341
        %v2343 = vmul.f32 %v2259, 1.442695
        %v2344 = vpow.pop %v2343
        %v2345 = vmul.f32 %v2260, 1.442695
        %v2346 = vpow.pop %v2345
        %v2347 = vmul.f32 %v2261, 1.442695
        %v2348 = vpow.pop %v2347
        %v2349 = vmul.f32 %v2262, 1.442695
        %v2350 = vpow.pop %v2349
        %v2351 = vmul.f32 %v2263, 1.442695
        %v2352 = vpow.pop %v2351
        %v2353 = vmul.f32 %v2264, 1.442695
        %v2354 = vpow.pop %v2353
        %v2355 = vmul.f32 %v2265, 1.442695
        %v2356 = vpow.pop %v2355
        %v2357 = vmul.f32 %v2266, 1.442695
        %v2358 = vpow.pop %v2357
        %v2359 = vmul.f32 %v2267, 1.442695
        %v2360 = vpow.pop %v2359
        %v2361 = vmul.f32 %v2268, 1.442695
        %v2362 = vpow.pop %v2361
        %v2363 = vmul.f32 %v2269, 1.442695
        %v2364 = vpow.pop %v2363
        %v2365 = vmul.f32 %v2270, 1.442695
        %v2366 = vpow.pop %v2365
        %v2367 = vmul.f32 %v2271, 1.442695
        %v2368 = vpow.pop %v2367
        %v2369 = vmul.f32 %v2272, 1.442695
        %v2370 = vpow.pop %v2369
        %v2371 = vmul.f32 %v2273, 1.442695
        %v2372 = vpow.pop %v2371
        %v2373 = vmul.f32 %v2274, 1.442695
        %v2374 = vpow.pop %v2373
        %v2375 = vmul.f32 %v2275, 1.442695
        %v2376 = vpow.pop %v2375
        %v2377 = vmul.f32 %v2276, 1.442695
        %v2378 = vpow.pop %v2377
        %v2379 = vmul.f32 %v2277, 1.442695
        %v2380 = vpow.pop %v2379
        %v2381 = vmul.f32 %v2278, 1.442695
        %v2382 = vpow.pop %v2381
        %v2383 = vmul.f32 %v2279, 1.442695
        %v2384 = vpow.pop %v2383
        %v2385 = vmul.f32 %v2280, 1.442695
        %v2386 = vpow.pop %v2385
        %v2387 = vmul.f32 %v2281, 1.442695
        %v2388 = vpow.pop %v2387
        %v2389 = vmul.f32 %v2282, 1.442695
        %v2390 = vpow.pop %v2389
        %v2391 = vmul.f32 %v2283, 1.442695
        %v2392 = vpow.pop %v2391
        %v2393 = vmul.f32 %v2284, 1.442695
        %v2394 = vpow.pop %v2393
        %v2395 = vmul.f32 %v2285, 1.442695
        %v2396 = vpow.pop %v2395
        %v2397 = vmul.f32 %v2286, 1.442695
        %v2398 = vpow.pop %v2397
        %v2399 = vmul.f32 %v2287, 1.442695
        %v2400 = vpow.pop %v2399
        %v2401 = vmul.f32 %v2288, 1.442695
        %v2402 = vpow.pop %v2401
        %v2403 = vmul.f32 %v2289, 1.442695
        %v2404 = vpow.pop %v2403
        %v2405 = vmul.f32 %v2290, 1.442695
        %v2406 = vpow.pop %v2405
        %v2407 = vmul.f32 %v2291, 1.442695
        %v2408 = vpow.pop %v2407
        %v2409 = vmul.f32 %v2292, 1.442695
        %v2410 = vpow.pop %v2409
        %v2411 = vmul.f32 %v2293, 1.442695
        %v2412 = vpow.pop %v2411
        %v2413 = vmul.f32 %v2294, 1.442695
        %v2414 = vpow.pop %v2413
        %v2415 = vmul.f32 %v2295, 1.442695
        %v2416 = vpow.pop %v2415
        %v2417 = vmul.f32 %v2296, 1.442695
        %v2418 = vpow.pop %v2417
        %v2419 = vmul.f32 %v2297, 1.442695
        %v2420 = vpow.pop %v2419
        %v2421 = vmul.f32 %v2298, 1.442695
        %v2422 = vpow.pop %v2421
        %v2423 = vmul.f32 %v2299, 1.442695
        %v2424 = vpow.pop %v2423
        %v2425 = vmul.f32 %v2300, 1.442695
        %v2426 = vpow.pop %v2425
        %v2427 = vmul.f32 %v2301, 1.442695
        %v2428 = vpow.pop %v2427
        %v2429 = vmul.f32 %v2302, 1.442695
        %v2430 = vpow.pop %v2429
        %v2431 = vadd.f32 %v2304, 1.0
        %v2432 = vadd.f32 %v2306, 1.0
        %v2433 = vadd.f32 %v2308, 1.0
        %v2434 = vadd.f32 %v2310, 1.0
        %v2435 = vadd.f32 %v2312, 1.0
        %v2436 = vadd.f32 %v2314, 1.0
        %v2437 = vadd.f32 %v2316, 1.0
        %v2438 = vadd.f32 %v2318, 1.0
        %v2439 = vadd.f32 %v2320, 1.0
        %v2440 = vadd.f32 %v2322, 1.0
        %v2441 = vadd.f32 %v2324, 1.0
        %v2442 = vadd.f32 %v2326, 1.0
        %v2443 = vadd.f32 %v2328, 1.0
        %v2444 = vadd.f32 %v2330, 1.0
        %v2445 = vadd.f32 %v2332, 1.0
        %v2446 = vadd.f32 %v2334, 1.0
        %v2447 = vadd.f32 %v2336, 1.0
        %v2448 = vadd.f32 %v2338, 1.0
        %v2449 = vadd.f32 %v2340, 1.0
        %v2450 = vadd.f32 %v2342, 1.0
        %v2451 = vadd.f32 %v2344, 1.0
        %v2452 = vadd.f32 %v2346, 1.0
        %v2453 = vadd.f32 %v2348, 1.0
        %v2454 = vadd.f32 %v2350, 1.0
        %v2455 = vadd.f32 %v2352, 1.0
        %v2456 = vadd.f32 %v2354, 1.0
        %v2457 = vadd.f32 %v2356, 1.0
        %v2458 = vadd.f32 %v2358, 1.0
        %v2459 = vadd.f32 %v2360, 1.0
        %v2460 = vadd.f32 %v2362, 1.0
        %v2461 = vadd.f32 %v2364, 1.0
        %v2462 = vadd.f32 %v2366, 1.0
        %v2463 = vadd.f32 %v2368, 1.0
        %v2464 = vadd.f32 %v2370, 1.0
        %v2465 = vadd.f32 %v2372, 1.0
        %v2466 = vadd.f32 %v2374, 1.0
        %v2467 = vadd.f32 %v2376, 1.0
        %v2468 = vadd.f32 %v2378, 1.0
        %v2469 = vadd.f32 %v2380, 1.0
        %v2470 = vadd.f32 %v2382, 1.0
        %v2471 = vadd.f32 %v2384, 1.0
        %v2472 = vadd.f32 %v2386, 1.0
        %v2473 = vadd.f32 %v2388, 1.0
        %v2474 = vadd.f32 %v2390, 1.0
        %v2475 = vadd.f32 %v2392, 1.0
        %v2476 = vadd.f32 %v2394, 1.0
        %v2477 = vadd.f32 %v2396, 1.0
        %v2478 = vadd.f32 %v2398, 1.0
        %v2479 = vadd.f32 %v2400, 1.0
        %v2480 = vadd.f32 %v2402, 1.0
        %v2481 = vadd.f32 %v2404, 1.0
        %v2482 = vadd.f32 %v2406, 1.0
        %v2483 = vadd.f32 %v2408, 1.0
        %v2484 = vadd.f32 %v2410, 1.0
        %v2485 = vadd.f32 %v2412, 1.0
        %v2486 = vadd.f32 %v2414, 1.0
        %v2487 = vadd.f32 %v2416, 1.0
        %v2488 = vadd.f32 %v2418, 1.0
        %v2489 = vadd.f32 %v2420, 1.0
        %v2490 = vadd.f32 %v2422, 1.0
        %v2491 = vadd.f32 %v2424, 1.0
        %v2492 = vadd.f32 %v2426, 1.0
        %v2493 = vadd.f32 %v2428, 1.0
        %v2494 = vadd.f32 %v2430, 1.0
        %v2495 = vrcp.pop %v2431
        %v2496 = vmul.f32 1.0, %v2495
        %v2497 = vrcp.pop %v2432
        %v2498 = vmul.f32 1.0, %v2497
        %v2499 = vrcp.pop %v2433
        %v2500 = vmul.f32 1.0, %v2499
        %v2501 = vrcp.pop %v2434
        %v2502 = vmul.f32 1.0, %v2501
        %v2503 = vrcp.pop %v2435
        %v2504 = vmul.f32 1.0, %v2503
        %v2505 = vrcp.pop %v2436
        %v2506 = vmul.f32 1.0, %v2505
        %v2507 = vrcp.pop %v2437
        %v2508 = vmul.f32 1.0, %v2507
        %v2509 = vrcp.pop %v2438
        %v2510 = vmul.f32 1.0, %v2509
        %v2511 = vrcp.pop %v2439
        %v2512 = vmul.f32 1.0, %v2511
        %v2513 = vrcp.pop %v2440
        %v2514 = vmul.f32 1.0, %v2513
        %v2515 = vrcp.pop %v2441
        %v2516 = vmul.f32 1.0, %v2515
        %v2517 = vrcp.pop %v2442
        %v2518 = vmul.f32 1.0, %v2517
        %v2519 = vrcp.pop %v2443
        %v2520 = vmul.f32 1.0, %v2519
        %v2521 = vrcp.pop %v2444
        %v2522 = vmul.f32 1.0, %v2521
        %v2523 = vrcp.pop %v2445
        %v2524 = vmul.f32 1.0, %v2523
        %v2525 = vrcp.pop %v2446
        %v2526 = vmul.f32 1.0, %v2525
        %v2527 = vrcp.pop %v2447
        %v2528 = vmul.f32 1.0, %v2527
        %v2529 = vrcp.pop %v2448
        %v2530 = vmul.f32 1.0, %v2529
        %v2531 = vrcp.pop %v2449
        %v2532 = vmul.f32 1.0, %v2531
        %v2533 = vrcp.pop %v2450
        %v2534 = vmul.f32 1.0, %v2533
        %v2535 = vrcp.pop %v2451
        %v2536 = vmul.f32 1.0, %v2535
        %v2537 = vrcp.pop %v2452
        %v2538 = vmul.f32 1.0, %v2537
        %v2539 = vrcp.pop %v2453
        %v2540 = vmul.f32 1.0, %v2539
        %v2541 = vrcp.pop %v2454
        %v2542 = vmul.f32 1.0, %v2541
        %v2543 = vrcp.pop %v2455
        %v2544 = vmul.f32 1.0, %v2543
        %v2545 = vrcp.pop %v2456
        %v2546 = vmul.f32 1.0, %v2545
        %v2547 = vrcp.pop %v2457
        %v2548 = vmul.f32 1.0, %v2547
        %v2549 = vrcp.pop %v2458
        %v2550 = vmul.f32 1.0, %v2549
        %v2551 = vrcp.pop %v2459
        %v2552 = vmul.f32 1.0, %v2551
        %v2553 = vrcp.pop %v2460
        %v2554 = vmul.f32 1.0, %v2553
        %v2555 = vrcp.pop %v2461
        %v2556 = vmul.f32 1.0, %v2555
        %v2557 = vrcp.pop %v2462
        %v2558 = vmul.f32 1.0, %v2557
        %v2559 = vrcp.pop %v2463
        %v2560 = vmul.f32 1.0, %v2559
        %v2561 = vrcp.pop %v2464
        %v2562 = vmul.f32 1.0, %v2561
        %v2563 = vrcp.pop %v2465
        %v2564 = vmul.f32 1.0, %v2563
        %v2565 = vrcp.pop %v2466
        %v2566 = vmul.f32 1.0, %v2565
        %v2567 = vrcp.pop %v2467
        %v2568 = vmul.f32 1.0, %v2567
        %v2569 = vrcp.pop %v2468
        %v2570 = vmul.f32 1.0, %v2569
        %v2571 = vrcp.pop %v2469
        %v2572 = vmul.f32 1.0, %v2571
        %v2573 = vrcp.pop %v2470
        %v2574 = vmul.f32 1.0, %v2573
        %v2575 = vrcp.pop %v2471
        %v2576 = vmul.f32 1.0, %v2575
        %v2577 = vrcp.pop %v2472
        %v2578 = vmul.f32 1.0, %v2577
        %v2579 = vrcp.pop %v2473
        %v2580 = vmul.f32 1.0, %v2579
        %v2581 = vrcp.pop %v2474
        %v2582 = vmul.f32 1.0, %v2581
        %v2583 = vrcp.pop %v2475
        %v2584 = vmul.f32 1.0, %v2583
        %v2585 = vrcp.pop %v2476
        %v2586 = vmul.f32 1.0, %v2585
        %v2587 = vrcp.pop %v2477
        %v2588 = vmul.f32 1.0, %v2587
        %v2589 = vrcp.pop %v2478
        %v2590 = vmul.f32 1.0, %v2589
        %v2591 = vrcp.pop %v2479
        %v2592 = vmul.f32 1.0, %v2591
        %v2593 = vrcp.pop %v2480
        %v2594 = vmul.f32 1.0, %v2593
        %v2595 = vrcp.pop %v2481
        %v2596 = vmul.f32 1.0, %v2595
        %v2597 = vrcp.pop %v2482
        %v2598 = vmul.f32 1.0, %v2597
        %v2599 = vrcp.pop %v2483
        %v2600 = vmul.f32 1.0, %v2599
        %v2601 = vrcp.pop %v2484
        %v2602 = vmul.f32 1.0, %v2601
        %v2603 = vrcp.pop %v2485
        %v2604 = vmul.f32 1.0, %v2603
        %v2605 = vrcp.pop %v2486
        %v2606 = vmul.f32 1.0, %v2605
        %v2607 = vrcp.pop %v2487
        %v2608 = vmul.f32 1.0, %v2607
        %v2609 = vrcp.pop %v2488
        %v2610 = vmul.f32 1.0, %v2609
        %v2611 = vrcp.pop %v2489
        %v2612 = vmul.f32 1.0, %v2611
        %v2613 = vrcp.pop %v2490
        %v2614 = vmul.f32 1.0, %v2613
        %v2615 = vrcp.pop %v2491
        %v2616 = vmul.f32 1.0, %v2615
        %v2617 = vrcp.pop %v2492
        %v2618 = vmul.f32 1.0, %v2617
        %v2619 = vrcp.pop %v2493
        %v2620 = vmul.f32 1.0, %v2619
        %v2621 = vrcp.pop %v2494
        %v2622 = vmul.f32 1.0, %v2621
        %v2623 = vmul.f32 %v2175, %v2496
        %v2624 = vmul.f32 %v2176, %v2498
        %v2625 = vmul.f32 %v2177, %v2500
        %v2626 = vmul.f32 %v2178, %v2502
        %v2627 = vmul.f32 %v2179, %v2504
        %v2628 = vmul.f32 %v2180, %v2506
        %v2629 = vmul.f32 %v2181, %v2508
        %v2630 = vmul.f32 %v2182, %v2510
        %v2631 = vmul.f32 %v2183, %v2512
        %v2632 = vmul.f32 %v2184, %v2514
        %v2633 = vmul.f32 %v2185, %v2516
        %v2634 = vmul.f32 %v2186, %v2518
        %v2635 = vmul.f32 %v2187, %v2520
        %v2636 = vmul.f32 %v2188, %v2522
        %v2637 = vmul.f32 %v2189, %v2524
        %v2638 = vmul.f32 %v2190, %v2526
        %v2639 = vmul.f32 %v2191, %v2528
        %v2640 = vmul.f32 %v2192, %v2530
        %v2641 = vmul.f32 %v2193, %v2532
        %v2642 = vmul.f32 %v2194, %v2534
        %v2643 = vmul.f32 %v2195, %v2536
        %v2644 = vmul.f32 %v2196, %v2538
        %v2645 = vmul.f32 %v2197, %v2540
        %v2646 = vmul.f32 %v2198, %v2542
        %v2647 = vmul.f32 %v2199, %v2544
        %v2648 = vmul.f32 %v2200, %v2546
        %v2649 = vmul.f32 %v2201, %v2548
        %v2650 = vmul.f32 %v2202, %v2550
        %v2651 = vmul.f32 %v2203, %v2552
        %v2652 = vmul.f32 %v2204, %v2554
        %v2653 = vmul.f32 %v2205, %v2556
        %v2654 = vmul.f32 %v2206, %v2558
        %v2655 = vmul.f32 %v2207, %v2560
        %v2656 = vmul.f32 %v2208, %v2562
        %v2657 = vmul.f32 %v2209, %v2564
        %v2658 = vmul.f32 %v2210, %v2566
        %v2659 = vmul.f32 %v2211, %v2568
        %v2660 = vmul.f32 %v2212, %v2570
        %v2661 = vmul.f32 %v2213, %v2572
        %v2662 = vmul.f32 %v2214, %v2574
        %v2663 = vmul.f32 %v2215, %v2576
        %v2664 = vmul.f32 %v2216, %v2578
        %v2665 = vmul.f32 %v2217, %v2580
        %v2666 = vmul.f32 %v2218, %v2582
        %v2667 = vmul.f32 %v2219, %v2584
        %v2668 = vmul.f32 %v2220, %v2586
        %v2669 = vmul.f32 %v2221, %v2588
        %v2670 = vmul.f32 %v2222, %v2590
        %v2671 = vmul.f32 %v2223, %v2592
        %v2672 = vmul.f32 %v2224, %v2594
        %v2673 = vmul.f32 %v2225, %v2596
        %v2674 = vmul.f32 %v2226, %v2598
        %v2675 = vmul.f32 %v2227, %v2600
        %v2676 = vmul.f32 %v2228, %v2602
        %v2677 = vmul.f32 %v2229, %v2604
        %v2678 = vmul.f32 %v2230, %v2606
        %v2679 = vmul.f32 %v2231, %v2608
        %v2680 = vmul.f32 %v2232, %v2610
        %v2681 = vmul.f32 %v2233, %v2612
        %v2682 = vmul.f32 %v2234, %v2614
        %v2683 = vmul.f32 %v2235, %v2616
        %v2684 = vmul.f32 %v2236, %v2618
        %v2685 = vmul.f32 %v2237, %v2620
        %v2686 = vmul.f32 %v2238, %v2622
        %v2687 = vpack.c.bf16 %v2623, 0.0
        %v2688 = vpack.c.bf16 %v2625, %v2624
        %v2689 = vpack.c.bf16 %v2627, %v2626
        %v2690 = vpack.c.bf16 %v2629, %v2628
        %v2691 = vpack.c.bf16 %v2631, 0.0
        %v2692 = vpack.c.bf16 %v2633, %v2632
        %v2693 = vpack.c.bf16 %v2635, %v2634
        %v2694 = vpack.c.bf16 %v2637, %v2636
        %v2695 = vpack.c.bf16 %v2639, 0.0
        %v2696 = vpack.c.bf16 %v2641, %v2640
        %v2697 = vpack.c.bf16 %v2643, %v2642
        %v2698 = vpack.c.bf16 %v2645, %v2644
        %v2699 = vpack.c.bf16 %v2647, 0.0
        %v2700 = vpack.c.bf16 %v2649, %v2648
        %v2701 = vpack.c.bf16 %v2651, %v2650
        %v2702 = vpack.c.bf16 %v2653, %v2652
        %v2703 = vpack.c.bf16 %v2655, 0.0
        %v2704 = vpack.c.bf16 %v2657, %v2656
        %v2705 = vpack.c.bf16 %v2659, %v2658
        %v2706 = vpack.c.bf16 %v2661, %v2660
        %v2707 = vpack.c.bf16 %v2663, 0.0
        %v2708 = vpack.c.bf16 %v2665, %v2664
        %v2709 = vpack.c.bf16 %v2667, %v2666
        %v2710 = vpack.c.bf16 %v2669, %v2668
        %v2711 = vpack.c.bf16 %v2671, 0.0
        %v2712 = vpack.c.bf16 %v2673, %v2672
        %v2713 = vpack.c.bf16 %v2675, %v2674
        %v2714 = vpack.c.bf16 %v2677, %v2676
        %v2715 = vpack.c.bf16 %v2679, 0.0
        %v2716 = vpack.c.bf16 %v2681, %v2680
        %v2717 = vpack.c.bf16 %v2683, %v2682
        %v2718 = vpack.c.bf16 %v2685, %v2684
        %v2719 = vld [vmem:[%s3] sm:$0xf]
        %v2720 = vld [vmem:[%s3 + $0x4] sm:$0xf]
        %v2721 = vld [vmem:[%s3 + $0x8] sm:$0xf]
        %v2722 = vld [vmem:[%s3 + $0xc] sm:$0xf]
        %v2723 = vld [vmem:[%s3 + $0x10] sm:$0xf]
        %v2724 = vld [vmem:[%s3 + $0x14] sm:$0xf]
        %v2725 = vld [vmem:[%s3 + $0x18] sm:$0xf]
        %v2726 = vld [vmem:[%s3 + $0x1c] sm:$0xf]
        %v2727 = vpack.c.bf16 %v2624, %v2623
        %v2728 = vpack.c.bf16 %v2626, %v2625
        %v2729 = vpack.c.bf16 %v2628, %v2627
        %v2730 = vpack.c.bf16 %v2630, %v2629
        %v2731 = vpack.c.bf16 %v2632, %v2631
        %v2732 = vpack.c.bf16 %v2634, %v2633
        %v2733 = vpack.c.bf16 %v2636, %v2635
        %v2734 = vpack.c.bf16 %v2638, %v2637
        %v2735 = vpack.c.bf16 %v2640, %v2639
        %v2736 = vpack.c.bf16 %v2642, %v2641
        %v2737 = vpack.c.bf16 %v2644, %v2643
        %v2738 = vpack.c.bf16 %v2646, %v2645
        %v2739 = vpack.c.bf16 %v2648, %v2647
        %v2740 = vpack.c.bf16 %v2650, %v2649
        %v2741 = vpack.c.bf16 %v2652, %v2651
        %v2742 = vpack.c.bf16 %v2654, %v2653
        %v2743 = vpack.c.bf16 %v2656, %v2655
        %v2744 = vpack.c.bf16 %v2658, %v2657
        %v2745 = vpack.c.bf16 %v2660, %v2659
        %v2746 = vpack.c.bf16 %v2662, %v2661
        %v2747 = vpack.c.bf16 %v2664, %v2663
        %v2748 = vpack.c.bf16 %v2666, %v2665
        %v2749 = vpack.c.bf16 %v2668, %v2667
        %v2750 = vpack.c.bf16 %v2670, %v2669
        %v2751 = vpack.c.bf16 %v2672, %v2671
        %v2752 = vpack.c.bf16 %v2674, %v2673
        %v2753 = vpack.c.bf16 %v2676, %v2675
        %v2754 = vpack.c.bf16 %v2678, %v2677
        %v2755 = vpack.c.bf16 %v2680, %v2679
        %v2756 = vpack.c.bf16 %v2682, %v2681
        %v2757 = vpack.c.bf16 %v2684, %v2683
        %v2758 = vpack.c.bf16 %v2686, %v2685
        %s2759 = scalar_lea.vmem %s3, 32
        %v2760 = vld [vmem:[%s2759] sm:$0xf]
        %v2761 = vld [vmem:[%s2759 + $0x4] sm:$0xf]
        %v2762 = vld [vmem:[%s2759 + $0x8] sm:$0xf]
        %v2763 = vld [vmem:[%s2759 + $0xc] sm:$0xf]
        %v2764 = vld [vmem:[%s2759 + $0x10] sm:$0xf]
        %v2765 = vld [vmem:[%s2759 + $0x14] sm:$0xf]
        %v2766 = vld [vmem:[%s2759 + $0x18] sm:$0xf]
        %v2767 = vld [vmem:[%s2759 + $0x1c] sm:$0xf]
        %v2776 = vunpack.c.l.b16 %v2760
        %v2777 = vunpack.c.l.b16 %v2761
        %v2778 = vunpack.c.l.b16 %v2762
        %v2779 = vunpack.c.l.b16 %v2763
        %v2780 = vunpack.c.l.b16 %v2764
        %v2781 = vunpack.c.l.b16 %v2765
        %v2782 = vunpack.c.l.b16 %v2766
        %v2783 = vunpack.c.l.b16 %v2767
        %v2784 = vpack.c.b16 %v2777, %v2776
        %v2785 = vpack.c.b16 %v2779, %v2778
        %v2786 = vpack.c.b16 %v2781, %v2780
        %v2787 = vpack.c.b16 %v2783, %v2782
        %v2793 = vsel %vm859, %v2727, 0
        %v2796 = vsel %vm859, %v2728, 0
        %v2799 = vsel %vm859, %v2729, 0
        %v2802 = vsel %vm859, %v2730, 0
        %v2805 = vsel %vm859, %v2731, 0
        %v2808 = vsel %vm859, %v2732, 0
        %v2811 = vsel %vm859, %v2733, 0
        %v2814 = vsel %vm859, %v2734, 0
        %v2817 = vsel %vm859, %v2735, 0
        %v2820 = vsel %vm859, %v2736, 0
        %v2823 = vsel %vm859, %v2737, 0
        %v2826 = vsel %vm859, %v2738, 0
        %v2829 = vsel %vm859, %v2739, 0
        %v2832 = vsel %vm859, %v2740, 0
        %v2835 = vsel %vm859, %v2741, 0
        %v2838 = vsel %vm859, %v2742, 0
        %v2841 = vsel %vm859, %v2743, 0
        %v2844 = vsel %vm859, %v2744, 0
        %v2847 = vsel %vm859, %v2745, 0
        %v2850 = vsel %vm859, %v2746, 0
        %v2853 = vsel %vm859, %v2747, 0
        %v2856 = vsel %vm859, %v2748, 0
        %v2859 = vsel %vm859, %v2749, 0
        %v2862 = vsel %vm859, %v2750, 0
        %v2865 = vsel %vm859, %v2751, 0
        %v2868 = vsel %vm859, %v2752, 0
        %v2871 = vsel %vm859, %v2753, 0
        %v2874 = vsel %vm859, %v2754, 0
        %v2877 = vsel %vm859, %v2755, 0
        %v2880 = vsel %vm859, %v2756, 0
        %v2883 = vsel %vm859, %v2757, 0
        %v2886 = vsel %vm859, %v2758, 0
        %2888 = vmatprep.subr.bf16.mxu0 0
        %2889 = vmatpush1.bf16.msra.mxu0 0
        %2890 = vmatprep.subr.bf16.mxu0 0
        %2891 = vmatpush1.bf16.msra.mxu0 0
        %2892 = vmatprep.subr.bf16.mxu0 0
        %2893 = vmatpush1.bf16.msra.mxu0 0
        %2894 = vmatprep.subr.bf16.mxu0 0
        %2895 = vmatpush1.bf16.msra.mxu0 0
        %2896 = vmatprep.subr.bf16.mxu0 0
        %2897 = vmatpush1.bf16.msra.mxu0 %v2787
        %2898 = vmatprep.subr.bf16.mxu0 0
        %2899 = vmatpush1.bf16.msra.mxu0 %v2786
        %2900 = vmatprep.subr.bf16.mxu0 0
        %2901 = vmatpush1.bf16.msra.mxu0 %v2785
        %2902 = vmatprep.subr.bf16.mxu0 0
        %2903 = vmatpush1.bf16.msra.mxu0 %v2784
        %2904 = vmatprep.subr.bf16.mxu0 0
        %2905 = vmatpush2.bf16.msra.mxu0 0
        %2906 = vmatprep.subr.bf16.mxu0 0
        %2907 = vmatpush2.bf16.msra.mxu0 0
        %2908 = vmatprep.subr.bf16.mxu0 0
        %2909 = vmatpush2.bf16.msra.mxu0 0
        %2910 = vmatprep.subr.bf16.mxu0 0
        %2911 = vmatpush2.bf16.msra.mxu0 0
        %2912 = vmatprep.subr.bf16.mxu0 0
        %2913 = vmatpush2.bf16.msra.mxu0 0
        %2914 = vmatprep.subr.bf16.mxu0 0
        %2915 = vmatpush2.bf16.msra.mxu0 0
        %2916 = vmatprep.subr.bf16.mxu0 0
        %2917 = vmatpush2.bf16.msra.mxu0 0
        %2918 = vmatprep.subr.bf16.mxu0 0
        %2919 = vmatpush2.bf16.msra.mxu0 0
        %2920 = vmatprep.mubr.bf16.mxu0 0
        %2921 = vmatmul.mubr.bf16.gmra.mxu0 %v2793
        %v2922 = vpop.f32.mrf.mxu0
        %v2923 = vadd.f32 0.0, %v2922
        %v2924 = vpop.f32.mrf.mxu0
        %v2925 = vpop.f32.mrf.mxu0
        %v2926 = vadd.f32 0.0, %v2925
        %v2927 = vpop.f32.mrf.mxu0
        %2928 = vmatprep.mubr.bf16.mxu0 0
        %2929 = vmatmul.mubr.bf16.gmra.mxu0 %v2796
        %v2930 = vpop.f32.mrf.mxu0
        %v2931 = vadd.f32 0.0, %v2930
        %v2932 = vpop.f32.mrf.mxu0
        %v2933 = vpop.f32.mrf.mxu0
        %v2934 = vadd.f32 0.0, %v2933
        %v2935 = vpop.f32.mrf.mxu0
        %2936 = vmatprep.mubr.bf16.mxu0 0
        %2937 = vmatmul.mubr.bf16.gmra.mxu0 %v2799
        %v2938 = vpop.f32.mrf.mxu0
        %v2939 = vadd.f32 0.0, %v2938
        %v2940 = vpop.f32.mrf.mxu0
        %v2941 = vpop.f32.mrf.mxu0
        %v2942 = vadd.f32 0.0, %v2941
        %v2943 = vpop.f32.mrf.mxu0
        %2944 = vmatprep.mubr.bf16.mxu0 0
        %2945 = vmatmul.mubr.bf16.gmra.mxu0 %v2802
        %v2946 = vpop.f32.mrf.mxu0
        %v2947 = vadd.f32 0.0, %v2946
        %v2948 = vpop.f32.mrf.mxu0
        %v2949 = vpop.f32.mrf.mxu0
        %v2950 = vadd.f32 0.0, %v2949
        %v2951 = vpop.f32.mrf.mxu0
        %2952 = vmatprep.mubr.bf16.mxu0 0
        %2953 = vmatmul.mubr.bf16.gmra.mxu0 %v2805
        %v2954 = vpop.f32.mrf.mxu0
        %v2955 = vadd.f32 0.0, %v2954
        %v2956 = vpop.f32.mrf.mxu0
        %v2957 = vpop.f32.mrf.mxu0
        %v2958 = vadd.f32 0.0, %v2957
        %v2959 = vpop.f32.mrf.mxu0
        %2960 = vmatprep.mubr.bf16.mxu0 0
        %2961 = vmatmul.mubr.bf16.gmra.mxu0 %v2808
        %v2962 = vpop.f32.mrf.mxu0
        %v2963 = vadd.f32 0.0, %v2962
        %v2964 = vpop.f32.mrf.mxu0
        %v2965 = vpop.f32.mrf.mxu0
        %v2966 = vadd.f32 0.0, %v2965
        %v2967 = vpop.f32.mrf.mxu0
        %2968 = vmatprep.mubr.bf16.mxu0 0
        %2969 = vmatmul.mubr.bf16.gmra.mxu0 %v2811
        %v2970 = vpop.f32.mrf.mxu0
        %v2971 = vadd.f32 0.0, %v2970
        %v2972 = vpop.f32.mrf.mxu0
        %v2973 = vpop.f32.mrf.mxu0
        %v2974 = vadd.f32 0.0, %v2973
        %v2975 = vpop.f32.mrf.mxu0
        %2976 = vmatprep.mubr.bf16.mxu0 0
        %2977 = vmatmul.mubr.bf16.gmra.mxu0 %v2814
        %v2978 = vpop.f32.mrf.mxu0
        %v2979 = vadd.f32 0.0, %v2978
        %v2980 = vpop.f32.mrf.mxu0
        %v2981 = vpop.f32.mrf.mxu0
        %v2982 = vadd.f32 0.0, %v2981
        %v2983 = vpop.f32.mrf.mxu0
        %2984 = vmatprep.mubr.bf16.mxu0 0
        %2985 = vmatmul.mubr.bf16.gmra.mxu0 %v2817
        %v2986 = vpop.f32.mrf.mxu0
        %v2987 = vadd.f32 0.0, %v2986
        %v2988 = vpop.f32.mrf.mxu0
        %v2989 = vpop.f32.mrf.mxu0
        %v2990 = vadd.f32 0.0, %v2989
        %v2991 = vpop.f32.mrf.mxu0
        %2992 = vmatprep.mubr.bf16.mxu0 0
        %2993 = vmatmul.mubr.bf16.gmra.mxu0 %v2820
        %v2994 = vpop.f32.mrf.mxu0
        %v2995 = vadd.f32 0.0, %v2994
        %v2996 = vpop.f32.mrf.mxu0
        %v2997 = vpop.f32.mrf.mxu0
        %v2998 = vadd.f32 0.0, %v2997
        %v2999 = vpop.f32.mrf.mxu0
        %3000 = vmatprep.mubr.bf16.mxu0 0
        %3001 = vmatmul.mubr.bf16.gmra.mxu0 %v2823
        %v3002 = vpop.f32.mrf.mxu0
        %v3003 = vadd.f32 0.0, %v3002
        %v3004 = vpop.f32.mrf.mxu0
        %v3005 = vpop.f32.mrf.mxu0
        %v3006 = vadd.f32 0.0, %v3005
        %v3007 = vpop.f32.mrf.mxu0
        %3008 = vmatprep.mubr.bf16.mxu0 0
        %3009 = vmatmul.mubr.bf16.gmra.mxu0 %v2826
        %v3010 = vpop.f32.mrf.mxu0
        %v3011 = vadd.f32 0.0, %v3010
        %v3012 = vpop.f32.mrf.mxu0
        %v3013 = vpop.f32.mrf.mxu0
        %v3014 = vadd.f32 0.0, %v3013
        %v3015 = vpop.f32.mrf.mxu0
        %3016 = vmatprep.mubr.bf16.mxu0 0
        %3017 = vmatmul.mubr.bf16.gmra.mxu0 %v2829
        %v3018 = vpop.f32.mrf.mxu0
        %v3019 = vadd.f32 0.0, %v3018
        %v3020 = vpop.f32.mrf.mxu0
        %v3021 = vpop.f32.mrf.mxu0
        %v3022 = vadd.f32 0.0, %v3021
        %v3023 = vpop.f32.mrf.mxu0
        %3024 = vmatprep.mubr.bf16.mxu0 0
        %3025 = vmatmul.mubr.bf16.gmra.mxu0 %v2832
        %v3026 = vpop.f32.mrf.mxu0
        %v3027 = vadd.f32 0.0, %v3026
        %v3028 = vpop.f32.mrf.mxu0
        %v3029 = vpop.f32.mrf.mxu0
        %v3030 = vadd.f32 0.0, %v3029
        %v3031 = vpop.f32.mrf.mxu0
        %3032 = vmatprep.mubr.bf16.mxu0 0
        %3033 = vmatmul.mubr.bf16.gmra.mxu0 %v2835
        %v3034 = vpop.f32.mrf.mxu0
        %v3035 = vadd.f32 0.0, %v3034
        %v3036 = vpop.f32.mrf.mxu0
        %v3037 = vpop.f32.mrf.mxu0
        %v3038 = vadd.f32 0.0, %v3037
        %v3039 = vpop.f32.mrf.mxu0
        %3040 = vmatprep.mubr.bf16.mxu0 0
        %3041 = vmatmul.mubr.bf16.gmra.mxu0 %v2838
        %v3042 = vpop.f32.mrf.mxu0
        %v3043 = vadd.f32 0.0, %v3042
        %v3044 = vpop.f32.mrf.mxu0
        %v3045 = vpop.f32.mrf.mxu0
        %v3046 = vadd.f32 0.0, %v3045
        %v3047 = vpop.f32.mrf.mxu0
        %3048 = vmatprep.mubr.bf16.mxu0 0
        %3049 = vmatmul.mubr.bf16.gmra.mxu0 %v2841
        %v3050 = vpop.f32.mrf.mxu0
        %v3051 = vadd.f32 0.0, %v3050
        %v3052 = vpop.f32.mrf.mxu0
        %v3053 = vpop.f32.mrf.mxu0
        %v3054 = vadd.f32 0.0, %v3053
        %v3055 = vpop.f32.mrf.mxu0
        %3056 = vmatprep.mubr.bf16.mxu0 0
        %3057 = vmatmul.mubr.bf16.gmra.mxu0 %v2844
        %v3058 = vpop.f32.mrf.mxu0
        %v3059 = vadd.f32 0.0, %v3058
        %v3060 = vpop.f32.mrf.mxu0
        %v3061 = vpop.f32.mrf.mxu0
        %v3062 = vadd.f32 0.0, %v3061
        %v3063 = vpop.f32.mrf.mxu0
        %3064 = vmatprep.mubr.bf16.mxu0 0
        %3065 = vmatmul.mubr.bf16.gmra.mxu0 %v2847
        %v3066 = vpop.f32.mrf.mxu0
        %v3067 = vadd.f32 0.0, %v3066
        %v3068 = vpop.f32.mrf.mxu0
        %v3069 = vpop.f32.mrf.mxu0
        %v3070 = vadd.f32 0.0, %v3069
        %v3071 = vpop.f32.mrf.mxu0
        %3072 = vmatprep.mubr.bf16.mxu0 0
        %3073 = vmatmul.mubr.bf16.gmra.mxu0 %v2850
        %v3074 = vpop.f32.mrf.mxu0
        %v3075 = vadd.f32 0.0, %v3074
        %v3076 = vpop.f32.mrf.mxu0
        %v3077 = vpop.f32.mrf.mxu0
        %v3078 = vadd.f32 0.0, %v3077
        %v3079 = vpop.f32.mrf.mxu0
        %3080 = vmatprep.mubr.bf16.mxu0 0
        %3081 = vmatmul.mubr.bf16.gmra.mxu0 %v2853
        %v3082 = vpop.f32.mrf.mxu0
        %v3083 = vadd.f32 0.0, %v3082
        %v3084 = vpop.f32.mrf.mxu0
        %v3085 = vpop.f32.mrf.mxu0
        %v3086 = vadd.f32 0.0, %v3085
        %v3087 = vpop.f32.mrf.mxu0
        %3088 = vmatprep.mubr.bf16.mxu0 0
        %3089 = vmatmul.mubr.bf16.gmra.mxu0 %v2856
        %v3090 = vpop.f32.mrf.mxu0
        %v3091 = vadd.f32 0.0, %v3090
        %v3092 = vpop.f32.mrf.mxu0
        %v3093 = vpop.f32.mrf.mxu0
        %v3094 = vadd.f32 0.0, %v3093
        %v3095 = vpop.f32.mrf.mxu0
        %3096 = vmatprep.mubr.bf16.mxu0 0
        %3097 = vmatmul.mubr.bf16.gmra.mxu0 %v2859
        %v3098 = vpop.f32.mrf.mxu0
        %v3099 = vadd.f32 0.0, %v3098
        %v3100 = vpop.f32.mrf.mxu0
        %v3101 = vpop.f32.mrf.mxu0
        %v3102 = vadd.f32 0.0, %v3101
        %v3103 = vpop.f32.mrf.mxu0
        %3104 = vmatprep.mubr.bf16.mxu0 0
        %3105 = vmatmul.mubr.bf16.gmra.mxu0 %v2862
        %v3106 = vpop.f32.mrf.mxu0
        %v3107 = vadd.f32 0.0, %v3106
        %v3108 = vpop.f32.mrf.mxu0
        %v3109 = vpop.f32.mrf.mxu0
        %v3110 = vadd.f32 0.0, %v3109
        %v3111 = vpop.f32.mrf.mxu0
        %3112 = vmatprep.mubr.bf16.mxu0 0
        %3113 = vmatmul.mubr.bf16.gmra.mxu0 %v2865
        %v3114 = vpop.f32.mrf.mxu0
        %v3115 = vadd.f32 0.0, %v3114
        %v3116 = vpop.f32.mrf.mxu0
        %v3117 = vpop.f32.mrf.mxu0
        %v3118 = vadd.f32 0.0, %v3117
        %v3119 = vpop.f32.mrf.mxu0
        %3120 = vmatprep.mubr.bf16.mxu0 0
        %3121 = vmatmul.mubr.bf16.gmra.mxu0 %v2868
        %v3122 = vpop.f32.mrf.mxu0
        %v3123 = vadd.f32 0.0, %v3122
        %v3124 = vpop.f32.mrf.mxu0
        %v3125 = vpop.f32.mrf.mxu0
        %v3126 = vadd.f32 0.0, %v3125
        %v3127 = vpop.f32.mrf.mxu0
        %3128 = vmatprep.mubr.bf16.mxu0 0
        %3129 = vmatmul.mubr.bf16.gmra.mxu0 %v2871
        %v3130 = vpop.f32.mrf.mxu0
        %v3131 = vadd.f32 0.0, %v3130
        %v3132 = vpop.f32.mrf.mxu0
        %v3133 = vpop.f32.mrf.mxu0
        %v3134 = vadd.f32 0.0, %v3133
        %v3135 = vpop.f32.mrf.mxu0
        %3136 = vmatprep.mubr.bf16.mxu0 0
        %3137 = vmatmul.mubr.bf16.gmra.mxu0 %v2874
        %v3138 = vpop.f32.mrf.mxu0
        %v3139 = vadd.f32 0.0, %v3138
        %v3140 = vpop.f32.mrf.mxu0
        %v3141 = vpop.f32.mrf.mxu0
        %v3142 = vadd.f32 0.0, %v3141
        %v3143 = vpop.f32.mrf.mxu0
        %3144 = vmatprep.mubr.bf16.mxu0 0
        %3145 = vmatmul.mubr.bf16.gmra.mxu0 %v2877
        %v3146 = vpop.f32.mrf.mxu0
        %v3147 = vadd.f32 0.0, %v3146
        %v3148 = vpop.f32.mrf.mxu0
        %v3149 = vpop.f32.mrf.mxu0
        %v3150 = vadd.f32 0.0, %v3149
        %v3151 = vpop.f32.mrf.mxu0
        %3152 = vmatprep.mubr.bf16.mxu0 0
        %3153 = vmatmul.mubr.bf16.gmra.mxu0 %v2880
        %v3154 = vpop.f32.mrf.mxu0
        %v3155 = vadd.f32 0.0, %v3154
        %v3156 = vpop.f32.mrf.mxu0
        %v3157 = vpop.f32.mrf.mxu0
        %v3158 = vadd.f32 0.0, %v3157
        %v3159 = vpop.f32.mrf.mxu0
        %3160 = vmatprep.mubr.bf16.mxu0 0
        %3161 = vmatmul.mubr.bf16.gmra.mxu0 %v2883
        %v3162 = vpop.f32.mrf.mxu0
        %v3163 = vadd.f32 0.0, %v3162
        %v3164 = vpop.f32.mrf.mxu0
        %v3165 = vpop.f32.mrf.mxu0
        %v3166 = vadd.f32 0.0, %v3165
        %v3167 = vpop.f32.mrf.mxu0
        %3168 = vmatprep.mubr.bf16.mxu0 0
        %3169 = vmatmul.mubr.bf16.gmra.mxu0 %v2886
        %v3170 = vpop.f32.mrf.mxu0
        %v3171 = vadd.f32 0.0, %v3170
        %v3172 = vpop.f32.mrf.mxu0
        %v3173 = vpop.f32.mrf.mxu0
        %v3174 = vadd.f32 0.0, %v3173
        %v3175 = vpop.f32.mrf.mxu0
        %3176 = vdwg.mxu0
        %v3185 = vunpack.c.l.b16 %v2719
        %v3186 = vunpack.c.l.b16 %v2720
        %v3187 = vunpack.c.l.b16 %v2721
        %v3188 = vunpack.c.l.b16 %v2722
        %v3189 = vunpack.c.l.b16 %v2723
        %v3190 = vunpack.c.l.b16 %v2724
        %v3191 = vunpack.c.l.b16 %v2725
        %v3192 = vunpack.c.l.b16 %v2726
        %v3193 = vpack.c.b16 %v3186, %v3185
        %v3194 = vpack.c.b16 %v3188, %v3187
        %v3195 = vpack.c.b16 %v3190, %v3189
        %v3196 = vpack.c.b16 %v3192, %v3191
        %v3202 = vsel %vm859, %v2687, 0
        %v3205 = vsel %vm859, %v2688, 0
        %v3208 = vsel %vm859, %v2689, 0
        %v3211 = vsel %vm859, %v2690, 0
        %v3214 = vsel %vm859, %v2691, 0
        %v3217 = vsel %vm859, %v2692, 0
        %v3220 = vsel %vm859, %v2693, 0
        %v3223 = vsel %vm859, %v2694, 0
        %v3226 = vsel %vm859, %v2695, 0
        %v3229 = vsel %vm859, %v2696, 0
        %v3232 = vsel %vm859, %v2697, 0
        %v3235 = vsel %vm859, %v2698, 0
        %v3238 = vsel %vm859, %v2699, 0
        %v3241 = vsel %vm859, %v2700, 0
        %v3244 = vsel %vm859, %v2701, 0
        %v3247 = vsel %vm859, %v2702, 0
        %v3250 = vsel %vm859, %v2703, 0
        %v3253 = vsel %vm859, %v2704, 0
        %v3256 = vsel %vm859, %v2705, 0
        %v3259 = vsel %vm859, %v2706, 0
        %v3262 = vsel %vm859, %v2707, 0
        %v3265 = vsel %vm859, %v2708, 0
        %v3268 = vsel %vm859, %v2709, 0
        %v3271 = vsel %vm859, %v2710, 0
        %v3274 = vsel %vm859, %v2711, 0
        %v3277 = vsel %vm859, %v2712, 0
        %v3280 = vsel %vm859, %v2713, 0
        %v3283 = vsel %vm859, %v2714, 0
        %v3286 = vsel %vm859, %v2715, 0
        %v3289 = vsel %vm859, %v2716, 0
        %v3292 = vsel %vm859, %v2717, 0
        %v3295 = vsel %vm859, %v2718, 0
        %3297 = vmatprep.subr.bf16.mxu0 0
        %3298 = vmatpush1.bf16.msra.mxu0 0
        %3299 = vmatprep.subr.bf16.mxu0 0
        %3300 = vmatpush1.bf16.msra.mxu0 0
        %3301 = vmatprep.subr.bf16.mxu0 0
        %3302 = vmatpush1.bf16.msra.mxu0 0
        %3303 = vmatprep.subr.bf16.mxu0 0
        %3304 = vmatpush1.bf16.msra.mxu0 0
        %3305 = vmatprep.subr.bf16.mxu0 0
        %3306 = vmatpush1.bf16.msra.mxu0 %v3196
        %3307 = vmatprep.subr.bf16.mxu0 0
        %3308 = vmatpush1.bf16.msra.mxu0 %v3195
        %3309 = vmatprep.subr.bf16.mxu0 0
        %3310 = vmatpush1.bf16.msra.mxu0 %v3194
        %3311 = vmatprep.subr.bf16.mxu0 0
        %3312 = vmatpush1.bf16.msra.mxu0 %v3193
        %3313 = vmatprep.subr.bf16.mxu0 0
        %3314 = vmatpush2.bf16.msra.mxu0 0
        %3315 = vmatprep.subr.bf16.mxu0 0
        %3316 = vmatpush2.bf16.msra.mxu0 0
        %3317 = vmatprep.subr.bf16.mxu0 0
        %3318 = vmatpush2.bf16.msra.mxu0 0
        %3319 = vmatprep.subr.bf16.mxu0 0
        %3320 = vmatpush2.bf16.msra.mxu0 0
        %3321 = vmatprep.subr.bf16.mxu0 0
        %3322 = vmatpush2.bf16.msra.mxu0 0
        %3323 = vmatprep.subr.bf16.mxu0 0
        %3324 = vmatpush2.bf16.msra.mxu0 0
        %3325 = vmatprep.subr.bf16.mxu0 0
        %3326 = vmatpush2.bf16.msra.mxu0 0
        %3327 = vmatprep.subr.bf16.mxu0 0
        %3328 = vmatpush2.bf16.msra.mxu0 0
        %3329 = vmatprep.mubr.bf16.mxu0 0
        %3330 = vmatmul.mubr.bf16.gmra.mxu0 %v3202
        %v3331 = vpop.f32.mrf.mxu0
        %v3332 = vadd.f32 %v2923, %v3331
        %v3333 = vpop.f32.mrf.mxu0
        %v3334 = vpop.f32.mrf.mxu0
        %v3335 = vadd.f32 %v2926, %v3334
        %v3336 = vpop.f32.mrf.mxu0
        %3337 = vmatprep.mubr.bf16.mxu0 0
        %3338 = vmatmul.mubr.bf16.gmra.mxu0 %v3205
        %v3339 = vpop.f32.mrf.mxu0
        %v3340 = vadd.f32 %v2931, %v3339
        %v3341 = vpop.f32.mrf.mxu0
        %v3342 = vpop.f32.mrf.mxu0
        %v3343 = vadd.f32 %v2934, %v3342
        %v3344 = vpop.f32.mrf.mxu0
        %3345 = vmatprep.mubr.bf16.mxu0 0
        %3346 = vmatmul.mubr.bf16.gmra.mxu0 %v3208
        %v3347 = vpop.f32.mrf.mxu0
        %v3348 = vadd.f32 %v2939, %v3347
        %v3349 = vpop.f32.mrf.mxu0
        %v3350 = vpop.f32.mrf.mxu0
        %v3351 = vadd.f32 %v2942, %v3350
        %v3352 = vpop.f32.mrf.mxu0
        %3353 = vmatprep.mubr.bf16.mxu0 0
        %3354 = vmatmul.mubr.bf16.gmra.mxu0 %v3211
        %v3355 = vpop.f32.mrf.mxu0
        %v3356 = vadd.f32 %v2947, %v3355
        %v3357 = vpop.f32.mrf.mxu0
        %v3358 = vpop.f32.mrf.mxu0
        %v3359 = vadd.f32 %v2950, %v3358
        %v3360 = vpop.f32.mrf.mxu0
        %3361 = vmatprep.mubr.bf16.mxu0 0
        %3362 = vmatmul.mubr.bf16.gmra.mxu0 %v3214
        %v3363 = vpop.f32.mrf.mxu0
        %v3364 = vadd.f32 %v2955, %v3363
        %v3365 = vpop.f32.mrf.mxu0
        %v3366 = vpop.f32.mrf.mxu0
        %v3367 = vadd.f32 %v2958, %v3366
        %v3368 = vpop.f32.mrf.mxu0
        %3369 = vmatprep.mubr.bf16.mxu0 0
        %3370 = vmatmul.mubr.bf16.gmra.mxu0 %v3217
        %v3371 = vpop.f32.mrf.mxu0
        %v3372 = vadd.f32 %v2963, %v3371
        %v3373 = vpop.f32.mrf.mxu0
        %v3374 = vpop.f32.mrf.mxu0
        %v3375 = vadd.f32 %v2966, %v3374
        %v3376 = vpop.f32.mrf.mxu0
        %3377 = vmatprep.mubr.bf16.mxu0 0
        %3378 = vmatmul.mubr.bf16.gmra.mxu0 %v3220
        %v3379 = vpop.f32.mrf.mxu0
        %v3380 = vadd.f32 %v2971, %v3379
        %v3381 = vpop.f32.mrf.mxu0
        %v3382 = vpop.f32.mrf.mxu0
        %v3383 = vadd.f32 %v2974, %v3382
        %v3384 = vpop.f32.mrf.mxu0
        %3385 = vmatprep.mubr.bf16.mxu0 0
        %3386 = vmatmul.mubr.bf16.gmra.mxu0 %v3223
        %v3387 = vpop.f32.mrf.mxu0
        %v3388 = vadd.f32 %v2979, %v3387
        %v3389 = vpop.f32.mrf.mxu0
        %v3390 = vpop.f32.mrf.mxu0
        %v3391 = vadd.f32 %v2982, %v3390
        %v3392 = vpop.f32.mrf.mxu0
        %3393 = vmatprep.mubr.bf16.mxu0 0
        %3394 = vmatmul.mubr.bf16.gmra.mxu0 %v3226
        %v3395 = vpop.f32.mrf.mxu0
        %v3396 = vadd.f32 %v2987, %v3395
        %v3397 = vpop.f32.mrf.mxu0
        %v3398 = vpop.f32.mrf.mxu0
        %v3399 = vadd.f32 %v2990, %v3398
        %v3400 = vpop.f32.mrf.mxu0
        %3401 = vmatprep.mubr.bf16.mxu0 0
        %3402 = vmatmul.mubr.bf16.gmra.mxu0 %v3229
        %v3403 = vpop.f32.mrf.mxu0
        %v3404 = vadd.f32 %v2995, %v3403
        %v3405 = vpop.f32.mrf.mxu0
        %v3406 = vpop.f32.mrf.mxu0
        %v3407 = vadd.f32 %v2998, %v3406
        %v3408 = vpop.f32.mrf.mxu0
        %3409 = vmatprep.mubr.bf16.mxu0 0
        %3410 = vmatmul.mubr.bf16.gmra.mxu0 %v3232
        %v3411 = vpop.f32.mrf.mxu0
        %v3412 = vadd.f32 %v3003, %v3411
        %v3413 = vpop.f32.mrf.mxu0
        %v3414 = vpop.f32.mrf.mxu0
        %v3415 = vadd.f32 %v3006, %v3414
        %v3416 = vpop.f32.mrf.mxu0
        %3417 = vmatprep.mubr.bf16.mxu0 0
        %3418 = vmatmul.mubr.bf16.gmra.mxu0 %v3235
        %v3419 = vpop.f32.mrf.mxu0
        %v3420 = vadd.f32 %v3011, %v3419
        %v3421 = vpop.f32.mrf.mxu0
        %v3422 = vpop.f32.mrf.mxu0
        %v3423 = vadd.f32 %v3014, %v3422
        %v3424 = vpop.f32.mrf.mxu0
        %3425 = vmatprep.mubr.bf16.mxu0 0
        %3426 = vmatmul.mubr.bf16.gmra.mxu0 %v3238
        %v3427 = vpop.f32.mrf.mxu0
        %v3428 = vadd.f32 %v3019, %v3427
        %v3429 = vpop.f32.mrf.mxu0
        %v3430 = vpop.f32.mrf.mxu0
        %v3431 = vadd.f32 %v3022, %v3430
        %v3432 = vpop.f32.mrf.mxu0
        %3433 = vmatprep.mubr.bf16.mxu0 0
        %3434 = vmatmul.mubr.bf16.gmra.mxu0 %v3241
        %v3435 = vpop.f32.mrf.mxu0
        %v3436 = vadd.f32 %v3027, %v3435
        %v3437 = vpop.f32.mrf.mxu0
        %v3438 = vpop.f32.mrf.mxu0
        %v3439 = vadd.f32 %v3030, %v3438
        %v3440 = vpop.f32.mrf.mxu0
        %3441 = vmatprep.mubr.bf16.mxu0 0
        %3442 = vmatmul.mubr.bf16.gmra.mxu0 %v3244
        %v3443 = vpop.f32.mrf.mxu0
        %v3444 = vadd.f32 %v3035, %v3443
        %v3445 = vpop.f32.mrf.mxu0
        %v3446 = vpop.f32.mrf.mxu0
        %v3447 = vadd.f32 %v3038, %v3446
        %v3448 = vpop.f32.mrf.mxu0
        %3449 = vmatprep.mubr.bf16.mxu0 0
        %3450 = vmatmul.mubr.bf16.gmra.mxu0 %v3247
        %v3451 = vpop.f32.mrf.mxu0
        %v3452 = vadd.f32 %v3043, %v3451
        %v3453 = vpop.f32.mrf.mxu0
        %v3454 = vpop.f32.mrf.mxu0
        %v3455 = vadd.f32 %v3046, %v3454
        %v3456 = vpop.f32.mrf.mxu0
        %3457 = vmatprep.mubr.bf16.mxu0 0
        %3458 = vmatmul.mubr.bf16.gmra.mxu0 %v3250
        %v3459 = vpop.f32.mrf.mxu0
        %v3460 = vadd.f32 %v3051, %v3459
        %v3461 = vpop.f32.mrf.mxu0
        %v3462 = vpop.f32.mrf.mxu0
        %v3463 = vadd.f32 %v3054, %v3462
        %v3464 = vpop.f32.mrf.mxu0
        %3465 = vmatprep.mubr.bf16.mxu0 0
        %3466 = vmatmul.mubr.bf16.gmra.mxu0 %v3253
        %v3467 = vpop.f32.mrf.mxu0
        %v3468 = vadd.f32 %v3059, %v3467
        %v3469 = vpop.f32.mrf.mxu0
        %v3470 = vpop.f32.mrf.mxu0
        %v3471 = vadd.f32 %v3062, %v3470
        %v3472 = vpop.f32.mrf.mxu0
        %3473 = vmatprep.mubr.bf16.mxu0 0
        %3474 = vmatmul.mubr.bf16.gmra.mxu0 %v3256
        %v3475 = vpop.f32.mrf.mxu0
        %v3476 = vadd.f32 %v3067, %v3475
        %v3477 = vpop.f32.mrf.mxu0
        %v3478 = vpop.f32.mrf.mxu0
        %v3479 = vadd.f32 %v3070, %v3478
        %v3480 = vpop.f32.mrf.mxu0
        %3481 = vmatprep.mubr.bf16.mxu0 0
        %3482 = vmatmul.mubr.bf16.gmra.mxu0 %v3259
        %v3483 = vpop.f32.mrf.mxu0
        %v3484 = vadd.f32 %v3075, %v3483
        %v3485 = vpop.f32.mrf.mxu0
        %v3486 = vpop.f32.mrf.mxu0
        %v3487 = vadd.f32 %v3078, %v3486
        %v3488 = vpop.f32.mrf.mxu0
        %3489 = vmatprep.mubr.bf16.mxu0 0
        %3490 = vmatmul.mubr.bf16.gmra.mxu0 %v3262
        %v3491 = vpop.f32.mrf.mxu0
        %v3492 = vadd.f32 %v3083, %v3491
        %v3493 = vpop.f32.mrf.mxu0
        %v3494 = vpop.f32.mrf.mxu0
        %v3495 = vadd.f32 %v3086, %v3494
        %v3496 = vpop.f32.mrf.mxu0
        %3497 = vmatprep.mubr.bf16.mxu0 0
        %3498 = vmatmul.mubr.bf16.gmra.mxu0 %v3265
        %v3499 = vpop.f32.mrf.mxu0
        %v3500 = vadd.f32 %v3091, %v3499
        %v3501 = vpop.f32.mrf.mxu0
        %v3502 = vpop.f32.mrf.mxu0
        %v3503 = vadd.f32 %v3094, %v3502
        %v3504 = vpop.f32.mrf.mxu0
        %3505 = vmatprep.mubr.bf16.mxu0 0
        %3506 = vmatmul.mubr.bf16.gmra.mxu0 %v3268
        %v3507 = vpop.f32.mrf.mxu0
        %v3508 = vadd.f32 %v3099, %v3507
        %v3509 = vpop.f32.mrf.mxu0
        %v3510 = vpop.f32.mrf.mxu0
        %v3511 = vadd.f32 %v3102, %v3510
        %v3512 = vpop.f32.mrf.mxu0
        %3513 = vmatprep.mubr.bf16.mxu0 0
        %3514 = vmatmul.mubr.bf16.gmra.mxu0 %v3271
        %v3515 = vpop.f32.mrf.mxu0
        %v3516 = vadd.f32 %v3107, %v3515
        %v3517 = vpop.f32.mrf.mxu0
        %v3518 = vpop.f32.mrf.mxu0
        %v3519 = vadd.f32 %v3110, %v3518
        %v3520 = vpop.f32.mrf.mxu0
        %3521 = vmatprep.mubr.bf16.mxu0 0
        %3522 = vmatmul.mubr.bf16.gmra.mxu0 %v3274
        %v3523 = vpop.f32.mrf.mxu0
        %v3524 = vadd.f32 %v3115, %v3523
        %v3525 = vpop.f32.mrf.mxu0
        %v3526 = vpop.f32.mrf.mxu0
        %v3527 = vadd.f32 %v3118, %v3526
        %v3528 = vpop.f32.mrf.mxu0
        %3529 = vmatprep.mubr.bf16.mxu0 0
        %3530 = vmatmul.mubr.bf16.gmra.mxu0 %v3277
        %v3531 = vpop.f32.mrf.mxu0
        %v3532 = vadd.f32 %v3123, %v3531
        %v3533 = vpop.f32.mrf.mxu0
        %v3534 = vpop.f32.mrf.mxu0
        %v3535 = vadd.f32 %v3126, %v3534
        %v3536 = vpop.f32.mrf.mxu0
        %3537 = vmatprep.mubr.bf16.mxu0 0
        %3538 = vmatmul.mubr.bf16.gmra.mxu0 %v3280
        %v3539 = vpop.f32.mrf.mxu0
        %v3540 = vadd.f32 %v3131, %v3539
        %v3541 = vpop.f32.mrf.mxu0
        %v3542 = vpop.f32.mrf.mxu0
        %v3543 = vadd.f32 %v3134, %v3542
        %v3544 = vpop.f32.mrf.mxu0
        %3545 = vmatprep.mubr.bf16.mxu0 0
        %3546 = vmatmul.mubr.bf16.gmra.mxu0 %v3283
        %v3547 = vpop.f32.mrf.mxu0
        %v3548 = vadd.f32 %v3139, %v3547
        %v3549 = vpop.f32.mrf.mxu0
        %v3550 = vpop.f32.mrf.mxu0
        %v3551 = vadd.f32 %v3142, %v3550
        %v3552 = vpop.f32.mrf.mxu0
        %3553 = vmatprep.mubr.bf16.mxu0 0
        %3554 = vmatmul.mubr.bf16.gmra.mxu0 %v3286
        %v3555 = vpop.f32.mrf.mxu0
        %v3556 = vadd.f32 %v3147, %v3555
        %v3557 = vpop.f32.mrf.mxu0
        %v3558 = vpop.f32.mrf.mxu0
        %v3559 = vadd.f32 %v3150, %v3558
        %v3560 = vpop.f32.mrf.mxu0
        %3561 = vmatprep.mubr.bf16.mxu0 0
        %3562 = vmatmul.mubr.bf16.gmra.mxu0 %v3289
        %v3563 = vpop.f32.mrf.mxu0
        %v3564 = vadd.f32 %v3155, %v3563
        %v3565 = vpop.f32.mrf.mxu0
        %v3566 = vpop.f32.mrf.mxu0
        %v3567 = vadd.f32 %v3158, %v3566
        %v3568 = vpop.f32.mrf.mxu0
        %3569 = vmatprep.mubr.bf16.mxu0 0
        %3570 = vmatmul.mubr.bf16.gmra.mxu0 %v3292
        %v3571 = vpop.f32.mrf.mxu0
        %v3572 = vadd.f32 %v3163, %v3571
        %v3573 = vpop.f32.mrf.mxu0
        %v3574 = vpop.f32.mrf.mxu0
        %v3575 = vadd.f32 %v3166, %v3574
        %v3576 = vpop.f32.mrf.mxu0
        %3577 = vmatprep.mubr.bf16.mxu0 0
        %3578 = vmatmul.mubr.bf16.gmra.mxu0 %v3295
        %v3579 = vpop.f32.mrf.mxu0
        %v3580 = vadd.f32 %v3171, %v3579
        %v3581 = vpop.f32.mrf.mxu0
        %v3582 = vpop.f32.mrf.mxu0
        %v3583 = vadd.f32 %v3174, %v3582
        %v3584 = vpop.f32.mrf.mxu0
        %3585 = vdwg.mxu0
        %v3586 = vpack.c.bf16 0.0, %v2630
        %v3587 = vpack.c.bf16 0.0, %v2638
        %v3588 = vpack.c.bf16 0.0, %v2646
        %v3589 = vpack.c.bf16 0.0, %v2654
        %v3590 = vpack.c.bf16 0.0, %v2662
        %v3591 = vpack.c.bf16 0.0, %v2670
        %v3592 = vpack.c.bf16 0.0, %v2678
        %v3593 = vpack.c.bf16 0.0, %v2686
        %s3594 = scalar_lea.vmem %s3, 64
        %v3595 = vld [vmem:[%s3594] sm:$0xf]
        %v3596 = vld [vmem:[%s3594 + $0x4] sm:$0xf]
        %v3597 = vld [vmem:[%s3594 + $0x8] sm:$0xf]
        %v3598 = vld [vmem:[%s3594 + $0xc] sm:$0xf]
        %v3599 = vld [vmem:[%s3594 + $0x10] sm:$0xf]
        %v3600 = vld [vmem:[%s3594 + $0x14] sm:$0xf]
        %v3601 = vld [vmem:[%s3594 + $0x18] sm:$0xf]
        %v3602 = vld [vmem:[%s3594 + $0x1c] sm:$0xf]
        %v3611 = vunpack.c.l.b16 %v3595
        %v3612 = vunpack.c.l.b16 %v3596
        %v3613 = vunpack.c.l.b16 %v3597
        %v3614 = vunpack.c.l.b16 %v3598
        %v3615 = vunpack.c.l.b16 %v3599
        %v3616 = vunpack.c.l.b16 %v3600
        %v3617 = vunpack.c.l.b16 %v3601
        %v3618 = vunpack.c.l.b16 %v3602
        %v3619 = vpack.c.b16 %v3612, %v3611
        %v3620 = vpack.c.b16 %v3614, %v3613
        %v3621 = vpack.c.b16 %v3616, %v3615
        %v3622 = vpack.c.b16 %v3618, %v3617
        %v3628 = vsel %vm859, %v3586, 0
        %v3631 = vsel %vm859, %v3587, 0
        %v3634 = vsel %vm859, %v3588, 0
        %v3637 = vsel %vm859, %v3589, 0
        %v3640 = vsel %vm859, %v3590, 0
        %v3643 = vsel %vm859, %v3591, 0
        %v3646 = vsel %vm859, %v3592, 0
        %v3649 = vsel %vm859, %v3593, 0
        %3651 = vmatprep.subr.bf16.mxu0 0
        %3652 = vmatpush1.bf16.msra.mxu0 0
        %3653 = vmatprep.subr.bf16.mxu0 0
        %3654 = vmatpush1.bf16.msra.mxu0 0
        %3655 = vmatprep.subr.bf16.mxu0 0
        %3656 = vmatpush1.bf16.msra.mxu0 0
        %3657 = vmatprep.subr.bf16.mxu0 0
        %3658 = vmatpush1.bf16.msra.mxu0 0
        %3659 = vmatprep.subr.bf16.mxu0 0
        %3660 = vmatpush1.bf16.msra.mxu0 %v3622
        %3661 = vmatprep.subr.bf16.mxu0 0
        %3662 = vmatpush1.bf16.msra.mxu0 %v3621
        %3663 = vmatprep.subr.bf16.mxu0 0
        %3664 = vmatpush1.bf16.msra.mxu0 %v3620
        %3665 = vmatprep.subr.bf16.mxu0 0
        %3666 = vmatpush1.bf16.msra.mxu0 %v3619
        %3667 = vmatprep.subr.bf16.mxu0 0
        %3668 = vmatpush2.bf16.msra.mxu0 0
        %3669 = vmatprep.subr.bf16.mxu0 0
        %3670 = vmatpush2.bf16.msra.mxu0 0
        %3671 = vmatprep.subr.bf16.mxu0 0
        %3672 = vmatpush2.bf16.msra.mxu0 0
        %3673 = vmatprep.subr.bf16.mxu0 0
        %3674 = vmatpush2.bf16.msra.mxu0 0
        %3675 = vmatprep.subr.bf16.mxu0 0
        %3676 = vmatpush2.bf16.msra.mxu0 0
        %3677 = vmatprep.subr.bf16.mxu0 0
        %3678 = vmatpush2.bf16.msra.mxu0 0
        %3679 = vmatprep.subr.bf16.mxu0 0
        %3680 = vmatpush2.bf16.msra.mxu0 0
        %3681 = vmatprep.subr.bf16.mxu0 0
        %3682 = vmatpush2.bf16.msra.mxu0 0
        %3683 = vmatprep.mubr.bf16.mxu0 0
        %3684 = vmatmul.mubr.bf16.gmra.mxu0 %v3205
        %v3685 = vpop.f32.mrf.mxu0
        %v3686 = vadd.f32 0.0, %v3685
        %v3687 = vpop.f32.mrf.mxu0
        %v3688 = vpop.f32.mrf.mxu0
        %v3689 = vadd.f32 0.0, %v3688
        %v3690 = vpop.f32.mrf.mxu0
        %3691 = vmatprep.mubr.bf16.mxu0 0
        %3692 = vmatmul.mubr.bf16.gmra.mxu0 %v3208
        %v3693 = vpop.f32.mrf.mxu0
        %v3694 = vadd.f32 0.0, %v3693
        %v3695 = vpop.f32.mrf.mxu0
        %v3696 = vpop.f32.mrf.mxu0
        %v3697 = vadd.f32 0.0, %v3696
        %v3698 = vpop.f32.mrf.mxu0
        %3699 = vmatprep.mubr.bf16.mxu0 0
        %3700 = vmatmul.mubr.bf16.gmra.mxu0 %v3211
        %v3701 = vpop.f32.mrf.mxu0
        %v3702 = vadd.f32 0.0, %v3701
        %v3703 = vpop.f32.mrf.mxu0
        %v3704 = vpop.f32.mrf.mxu0
        %v3705 = vadd.f32 0.0, %v3704
        %v3706 = vpop.f32.mrf.mxu0
        %3707 = vmatprep.mubr.bf16.mxu0 0
        %3708 = vmatmul.mubr.bf16.gmra.mxu0 %v3628
        %v3709 = vpop.f32.mrf.mxu0
        %v3710 = vadd.f32 0.0, %v3709
        %v3711 = vpop.f32.mrf.mxu0
        %v3712 = vpop.f32.mrf.mxu0
        %v3713 = vadd.f32 0.0, %v3712
        %v3714 = vpop.f32.mrf.mxu0
        %3715 = vmatprep.mubr.bf16.mxu0 0
        %3716 = vmatmul.mubr.bf16.gmra.mxu0 %v3217
        %v3717 = vpop.f32.mrf.mxu0
        %v3718 = vadd.f32 0.0, %v3717
        %v3719 = vpop.f32.mrf.mxu0
        %v3720 = vpop.f32.mrf.mxu0
        %v3721 = vadd.f32 0.0, %v3720
        %v3722 = vpop.f32.mrf.mxu0
        %3723 = vmatprep.mubr.bf16.mxu0 0
        %3724 = vmatmul.mubr.bf16.gmra.mxu0 %v3220
        %v3725 = vpop.f32.mrf.mxu0
        %v3726 = vadd.f32 0.0, %v3725
        %v3727 = vpop.f32.mrf.mxu0
        %v3728 = vpop.f32.mrf.mxu0
        %v3729 = vadd.f32 0.0, %v3728
        %v3730 = vpop.f32.mrf.mxu0
        %3731 = vmatprep.mubr.bf16.mxu0 0
        %3732 = vmatmul.mubr.bf16.gmra.mxu0 %v3223
        %v3733 = vpop.f32.mrf.mxu0
        %v3734 = vadd.f32 0.0, %v3733
        %v3735 = vpop.f32.mrf.mxu0
        %v3736 = vpop.f32.mrf.mxu0
        %v3737 = vadd.f32 0.0, %v3736
        %v3738 = vpop.f32.mrf.mxu0
        %3739 = vmatprep.mubr.bf16.mxu0 0
        %3740 = vmatmul.mubr.bf16.gmra.mxu0 %v3631
        %v3741 = vpop.f32.mrf.mxu0
        %v3742 = vadd.f32 0.0, %v3741
        %v3743 = vpop.f32.mrf.mxu0
        %v3744 = vpop.f32.mrf.mxu0
        %v3745 = vadd.f32 0.0, %v3744
        %v3746 = vpop.f32.mrf.mxu0
        %3747 = vmatprep.mubr.bf16.mxu0 0
        %3748 = vmatmul.mubr.bf16.gmra.mxu0 %v3229
        %v3749 = vpop.f32.mrf.mxu0
        %v3750 = vadd.f32 0.0, %v3749
        %v3751 = vpop.f32.mrf.mxu0
        %v3752 = vpop.f32.mrf.mxu0
        %v3753 = vadd.f32 0.0, %v3752
        %v3754 = vpop.f32.mrf.mxu0
        %3755 = vmatprep.mubr.bf16.mxu0 0
        %3756 = vmatmul.mubr.bf16.gmra.mxu0 %v3232
        %v3757 = vpop.f32.mrf.mxu0
        %v3758 = vadd.f32 0.0, %v3757
        %v3759 = vpop.f32.mrf.mxu0
        %v3760 = vpop.f32.mrf.mxu0
        %v3761 = vadd.f32 0.0, %v3760
        %v3762 = vpop.f32.mrf.mxu0
        %3763 = vmatprep.mubr.bf16.mxu0 0
        %3764 = vmatmul.mubr.bf16.gmra.mxu0 %v3235
        %v3765 = vpop.f32.mrf.mxu0
        %v3766 = vadd.f32 0.0, %v3765
        %v3767 = vpop.f32.mrf.mxu0
        %v3768 = vpop.f32.mrf.mxu0
        %v3769 = vadd.f32 0.0, %v3768
        %v3770 = vpop.f32.mrf.mxu0
        %3771 = vmatprep.mubr.bf16.mxu0 0
        %3772 = vmatmul.mubr.bf16.gmra.mxu0 %v3634
        %v3773 = vpop.f32.mrf.mxu0
        %v3774 = vadd.f32 0.0, %v3773
        %v3775 = vpop.f32.mrf.mxu0
        %v3776 = vpop.f32.mrf.mxu0
        %v3777 = vadd.f32 0.0, %v3776
        %v3778 = vpop.f32.mrf.mxu0
        %3779 = vmatprep.mubr.bf16.mxu0 0
        %3780 = vmatmul.mubr.bf16.gmra.mxu0 %v3241
        %v3781 = vpop.f32.mrf.mxu0
        %v3782 = vadd.f32 0.0, %v3781
        %v3783 = vpop.f32.mrf.mxu0
        %v3784 = vpop.f32.mrf.mxu0
        %v3785 = vadd.f32 0.0, %v3784
        %v3786 = vpop.f32.mrf.mxu0
        %3787 = vmatprep.mubr.bf16.mxu0 0
        %3788 = vmatmul.mubr.bf16.gmra.mxu0 %v3244
        %v3789 = vpop.f32.mrf.mxu0
        %v3790 = vadd.f32 0.0, %v3789
        %v3791 = vpop.f32.mrf.mxu0
        %v3792 = vpop.f32.mrf.mxu0
        %v3793 = vadd.f32 0.0, %v3792
        %v3794 = vpop.f32.mrf.mxu0
        %3795 = vmatprep.mubr.bf16.mxu0 0
        %3796 = vmatmul.mubr.bf16.gmra.mxu0 %v3247
        %v3797 = vpop.f32.mrf.mxu0
        %v3798 = vadd.f32 0.0, %v3797
        %v3799 = vpop.f32.mrf.mxu0
        %v3800 = vpop.f32.mrf.mxu0
        %v3801 = vadd.f32 0.0, %v3800
        %v3802 = vpop.f32.mrf.mxu0
        %3803 = vmatprep.mubr.bf16.mxu0 0
        %3804 = vmatmul.mubr.bf16.gmra.mxu0 %v3637
        %v3805 = vpop.f32.mrf.mxu0
        %v3806 = vadd.f32 0.0, %v3805
        %v3807 = vpop.f32.mrf.mxu0
        %v3808 = vpop.f32.mrf.mxu0
        %v3809 = vadd.f32 0.0, %v3808
        %v3810 = vpop.f32.mrf.mxu0
        %3811 = vmatprep.mubr.bf16.mxu0 0
        %3812 = vmatmul.mubr.bf16.gmra.mxu0 %v3253
        %v3813 = vpop.f32.mrf.mxu0
        %v3814 = vadd.f32 0.0, %v3813
        %v3815 = vpop.f32.mrf.mxu0
        %v3816 = vpop.f32.mrf.mxu0
        %v3817 = vadd.f32 0.0, %v3816
        %v3818 = vpop.f32.mrf.mxu0
        %3819 = vmatprep.mubr.bf16.mxu0 0
        %3820 = vmatmul.mubr.bf16.gmra.mxu0 %v3256
        %v3821 = vpop.f32.mrf.mxu0
        %v3822 = vadd.f32 0.0, %v3821
        %v3823 = vpop.f32.mrf.mxu0
        %v3824 = vpop.f32.mrf.mxu0
        %v3825 = vadd.f32 0.0, %v3824
        %v3826 = vpop.f32.mrf.mxu0
        %3827 = vmatprep.mubr.bf16.mxu0 0
        %3828 = vmatmul.mubr.bf16.gmra.mxu0 %v3259
        %v3829 = vpop.f32.mrf.mxu0
        %v3830 = vadd.f32 0.0, %v3829
        %v3831 = vpop.f32.mrf.mxu0
        %v3832 = vpop.f32.mrf.mxu0
        %v3833 = vadd.f32 0.0, %v3832
        %v3834 = vpop.f32.mrf.mxu0
        %3835 = vmatprep.mubr.bf16.mxu0 0
        %3836 = vmatmul.mubr.bf16.gmra.mxu0 %v3640
        %v3837 = vpop.f32.mrf.mxu0
        %v3838 = vadd.f32 0.0, %v3837
        %v3839 = vpop.f32.mrf.mxu0
        %v3840 = vpop.f32.mrf.mxu0
        %v3841 = vadd.f32 0.0, %v3840
        %v3842 = vpop.f32.mrf.mxu0
        %3843 = vmatprep.mubr.bf16.mxu0 0
        %3844 = vmatmul.mubr.bf16.gmra.mxu0 %v3265
        %v3845 = vpop.f32.mrf.mxu0
        %v3846 = vadd.f32 0.0, %v3845
        %v3847 = vpop.f32.mrf.mxu0
        %v3848 = vpop.f32.mrf.mxu0
        %v3849 = vadd.f32 0.0, %v3848
        %v3850 = vpop.f32.mrf.mxu0
        %3851 = vmatprep.mubr.bf16.mxu0 0
        %3852 = vmatmul.mubr.bf16.gmra.mxu0 %v3268
        %v3853 = vpop.f32.mrf.mxu0
        %v3854 = vadd.f32 0.0, %v3853
        %v3855 = vpop.f32.mrf.mxu0
        %v3856 = vpop.f32.mrf.mxu0
        %v3857 = vadd.f32 0.0, %v3856
        %v3858 = vpop.f32.mrf.mxu0
        %3859 = vmatprep.mubr.bf16.mxu0 0
        %3860 = vmatmul.mubr.bf16.gmra.mxu0 %v3271
        %v3861 = vpop.f32.mrf.mxu0
        %v3862 = vadd.f32 0.0, %v3861
        %v3863 = vpop.f32.mrf.mxu0
        %v3864 = vpop.f32.mrf.mxu0
        %v3865 = vadd.f32 0.0, %v3864
        %v3866 = vpop.f32.mrf.mxu0
        %3867 = vmatprep.mubr.bf16.mxu0 0
        %3868 = vmatmul.mubr.bf16.gmra.mxu0 %v3643
        %v3869 = vpop.f32.mrf.mxu0
        %v3870 = vadd.f32 0.0, %v3869
        %v3871 = vpop.f32.mrf.mxu0
        %v3872 = vpop.f32.mrf.mxu0
        %v3873 = vadd.f32 0.0, %v3872
        %v3874 = vpop.f32.mrf.mxu0
        %3875 = vmatprep.mubr.bf16.mxu0 0
        %3876 = vmatmul.mubr.bf16.gmra.mxu0 %v3277
        %v3877 = vpop.f32.mrf.mxu0
        %v3878 = vadd.f32 0.0, %v3877
        %v3879 = vpop.f32.mrf.mxu0
        %v3880 = vpop.f32.mrf.mxu0
        %v3881 = vadd.f32 0.0, %v3880
        %v3882 = vpop.f32.mrf.mxu0
        %3883 = vmatprep.mubr.bf16.mxu0 0
        %3884 = vmatmul.mubr.bf16.gmra.mxu0 %v3280
        %v3885 = vpop.f32.mrf.mxu0
        %v3886 = vadd.f32 0.0, %v3885
        %v3887 = vpop.f32.mrf.mxu0
        %v3888 = vpop.f32.mrf.mxu0
        %v3889 = vadd.f32 0.0, %v3888
        %v3890 = vpop.f32.mrf.mxu0
        %3891 = vmatprep.mubr.bf16.mxu0 0
        %3892 = vmatmul.mubr.bf16.gmra.mxu0 %v3283
        %v3893 = vpop.f32.mrf.mxu0
        %v3894 = vadd.f32 0.0, %v3893
        %v3895 = vpop.f32.mrf.mxu0
        %v3896 = vpop.f32.mrf.mxu0
        %v3897 = vadd.f32 0.0, %v3896
        %v3898 = vpop.f32.mrf.mxu0
        %3899 = vmatprep.mubr.bf16.mxu0 0
        %3900 = vmatmul.mubr.bf16.gmra.mxu0 %v3646
        %v3901 = vpop.f32.mrf.mxu0
        %v3902 = vadd.f32 0.0, %v3901
        %v3903 = vpop.f32.mrf.mxu0
        %v3904 = vpop.f32.mrf.mxu0
        %v3905 = vadd.f32 0.0, %v3904
        %v3906 = vpop.f32.mrf.mxu0
        %3907 = vmatprep.mubr.bf16.mxu0 0
        %3908 = vmatmul.mubr.bf16.gmra.mxu0 %v3289
        %v3909 = vpop.f32.mrf.mxu0
        %v3910 = vadd.f32 0.0, %v3909
        %v3911 = vpop.f32.mrf.mxu0
        %v3912 = vpop.f32.mrf.mxu0
        %v3913 = vadd.f32 0.0, %v3912
        %v3914 = vpop.f32.mrf.mxu0
        %3915 = vmatprep.mubr.bf16.mxu0 0
        %3916 = vmatmul.mubr.bf16.gmra.mxu0 %v3292
        %v3917 = vpop.f32.mrf.mxu0
        %v3918 = vadd.f32 0.0, %v3917
        %v3919 = vpop.f32.mrf.mxu0
        %v3920 = vpop.f32.mrf.mxu0
        %v3921 = vadd.f32 0.0, %v3920
        %v3922 = vpop.f32.mrf.mxu0
        %3923 = vmatprep.mubr.bf16.mxu0 0
        %3924 = vmatmul.mubr.bf16.gmra.mxu0 %v3295
        %v3925 = vpop.f32.mrf.mxu0
        %v3926 = vadd.f32 0.0, %v3925
        %v3927 = vpop.f32.mrf.mxu0
        %v3928 = vpop.f32.mrf.mxu0
        %v3929 = vadd.f32 0.0, %v3928
        %v3930 = vpop.f32.mrf.mxu0
        %3931 = vmatprep.mubr.bf16.mxu0 0
        %3932 = vmatmul.mubr.bf16.gmra.mxu0 %v3649
        %v3933 = vpop.f32.mrf.mxu0
        %v3934 = vadd.f32 0.0, %v3933
        %v3935 = vpop.f32.mrf.mxu0
        %v3936 = vpop.f32.mrf.mxu0
        %v3937 = vadd.f32 0.0, %v3936
        %v3938 = vpop.f32.mrf.mxu0
        %3939 = vdwg.mxu0
        %v3940 = vadd.f32 %v3332, %v3686
        %v3941 = vadd.f32 %v3335, %v3689
        %v3942 = vadd.f32 %v3340, %v3694
        %v3943 = vadd.f32 %v3343, %v3697
        %v3944 = vadd.f32 %v3348, %v3702
        %v3945 = vadd.f32 %v3351, %v3705
        %v3946 = vadd.f32 %v3356, %v3710
        %v3947 = vadd.f32 %v3359, %v3713
        %v3948 = vadd.f32 %v3364, %v3718
        %v3949 = vadd.f32 %v3367, %v3721
        %v3950 = vadd.f32 %v3372, %v3726
        %v3951 = vadd.f32 %v3375, %v3729
        %v3952 = vadd.f32 %v3380, %v3734
        %v3953 = vadd.f32 %v3383, %v3737
        %v3954 = vadd.f32 %v3388, %v3742
        %v3955 = vadd.f32 %v3391, %v3745
        %v3956 = vadd.f32 %v3396, %v3750
        %v3957 = vadd.f32 %v3399, %v3753
        %v3958 = vadd.f32 %v3404, %v3758
        %v3959 = vadd.f32 %v3407, %v3761
        %v3960 = vadd.f32 %v3412, %v3766
        %v3961 = vadd.f32 %v3415, %v3769
        %v3962 = vadd.f32 %v3420, %v3774
        %v3963 = vadd.f32 %v3423, %v3777
        %v3964 = vadd.f32 %v3428, %v3782
        %v3965 = vadd.f32 %v3431, %v3785
        %v3966 = vadd.f32 %v3436, %v3790
        %v3967 = vadd.f32 %v3439, %v3793
        %v3968 = vadd.f32 %v3444, %v3798
        %v3969 = vadd.f32 %v3447, %v3801
        %v3970 = vadd.f32 %v3452, %v3806
        %v3971 = vadd.f32 %v3455, %v3809
        %v3972 = vadd.f32 %v3460, %v3814
        %v3973 = vadd.f32 %v3463, %v3817
        %v3974 = vadd.f32 %v3468, %v3822
        %v3975 = vadd.f32 %v3471, %v3825
        %v3976 = vadd.f32 %v3476, %v3830
        %v3977 = vadd.f32 %v3479, %v3833
        %v3978 = vadd.f32 %v3484, %v3838
        %v3979 = vadd.f32 %v3487, %v3841
        %v3980 = vadd.f32 %v3492, %v3846
        %v3981 = vadd.f32 %v3495, %v3849
        %v3982 = vadd.f32 %v3500, %v3854
        %v3983 = vadd.f32 %v3503, %v3857
        %v3984 = vadd.f32 %v3508, %v3862
        %v3985 = vadd.f32 %v3511, %v3865
        %v3986 = vadd.f32 %v3516, %v3870
        %v3987 = vadd.f32 %v3519, %v3873
        %v3988 = vadd.f32 %v3524, %v3878
        %v3989 = vadd.f32 %v3527, %v3881
        %v3990 = vadd.f32 %v3532, %v3886
        %v3991 = vadd.f32 %v3535, %v3889
        %v3992 = vadd.f32 %v3540, %v3894
        %v3993 = vadd.f32 %v3543, %v3897
        %v3994 = vadd.f32 %v3548, %v3902
        %v3995 = vadd.f32 %v3551, %v3905
        %v3996 = vadd.f32 %v3556, %v3910
        %v3997 = vadd.f32 %v3559, %v3913
        %v3998 = vadd.f32 %v3564, %v3918
        %v3999 = vadd.f32 %v3567, %v3921
        %v4000 = vadd.f32 %v3572, %v3926
        %v4001 = vadd.f32 %v3575, %v3929
        %v4002 = vadd.f32 %v3580, %v3934
        %v4003 = vadd.f32 %v3583, %v3937
        %v4004 = vld [vmem:[%s4] sm:$0x1]
        %v4006 = vlaneseq
        %v4007 = vshrl.u32 %v4006, 7
        %v4008 = vsub.s32 0, %v4007
        %v4009 = vrot.slane %v4004, %v4008
        %v4011 = vadd.f32 %v3940, %v4009
        %v4012 = vadd.f32 %v3941, %v4009
        %v4013 = vadd.f32 %v3942, %v4009
        %v4014 = vadd.f32 %v3943, %v4009
        %v4015 = vadd.f32 %v3944, %v4009
        %v4016 = vadd.f32 %v3945, %v4009
        %v4017 = vadd.f32 %v3946, %v4009
        %v4018 = vadd.f32 %v3947, %v4009
        %v4019 = vadd.f32 %v3948, %v4009
        %v4020 = vadd.f32 %v3949, %v4009
        %v4021 = vadd.f32 %v3950, %v4009
        %v4022 = vadd.f32 %v3951, %v4009
        %v4023 = vadd.f32 %v3952, %v4009
        %v4024 = vadd.f32 %v3953, %v4009
        %v4025 = vadd.f32 %v3954, %v4009
        %v4026 = vadd.f32 %v3955, %v4009
        %v4027 = vadd.f32 %v3956, %v4009
        %v4028 = vadd.f32 %v3957, %v4009
        %v4029 = vadd.f32 %v3958, %v4009
        %v4030 = vadd.f32 %v3959, %v4009
        %v4031 = vadd.f32 %v3960, %v4009
        %v4032 = vadd.f32 %v3961, %v4009
        %v4033 = vadd.f32 %v3962, %v4009
        %v4034 = vadd.f32 %v3963, %v4009
        %v4035 = vadd.f32 %v3964, %v4009
        %v4036 = vadd.f32 %v3965, %v4009
        %v4037 = vadd.f32 %v3966, %v4009
        %v4038 = vadd.f32 %v3967, %v4009
        %v4039 = vadd.f32 %v3968, %v4009
        %v4040 = vadd.f32 %v3969, %v4009
        %v4041 = vadd.f32 %v3970, %v4009
        %v4042 = vadd.f32 %v3971, %v4009
        %v4043 = vadd.f32 %v3972, %v4009
        %v4044 = vadd.f32 %v3973, %v4009
        %v4045 = vadd.f32 %v3974, %v4009
        %v4046 = vadd.f32 %v3975, %v4009
        %v4047 = vadd.f32 %v3976, %v4009
        %v4048 = vadd.f32 %v3977, %v4009
        %v4049 = vadd.f32 %v3978, %v4009
        %v4050 = vadd.f32 %v3979, %v4009
        %v4051 = vadd.f32 %v3980, %v4009
        %v4052 = vadd.f32 %v3981, %v4009
        %v4053 = vadd.f32 %v3982, %v4009
        %v4054 = vadd.f32 %v3983, %v4009
        %v4055 = vadd.f32 %v3984, %v4009
        %v4056 = vadd.f32 %v3985, %v4009
        %v4057 = vadd.f32 %v3986, %v4009
        %v4058 = vadd.f32 %v3987, %v4009
        %v4059 = vadd.f32 %v3988, %v4009
        %v4060 = vadd.f32 %v3989, %v4009
        %v4061 = vadd.f32 %v3990, %v4009
        %v4062 = vadd.f32 %v3991, %v4009
        %v4063 = vadd.f32 %v3992, %v4009
        %v4064 = vadd.f32 %v3993, %v4009
        %v4065 = vadd.f32 %v3994, %v4009
        %v4066 = vadd.f32 %v3995, %v4009
        %v4067 = vadd.f32 %v3996, %v4009
        %v4068 = vadd.f32 %v3997, %v4009
        %v4069 = vadd.f32 %v3998, %v4009
        %v4070 = vadd.f32 %v3999, %v4009
        %v4071 = vadd.f32 %v4000, %v4009
        %v4072 = vadd.f32 %v4001, %v4009
        %v4073 = vadd.f32 %v4002, %v4009
        %v4074 = vadd.f32 %v4003, %v4009
        %v4075 = vxor.u32 %v4011, 2147483648
        %v4076 = vxor.u32 %v4012, 2147483648
        %v4077 = vxor.u32 %v4013, 2147483648
        %v4078 = vxor.u32 %v4014, 2147483648
        %v4079 = vxor.u32 %v4015, 2147483648
        %v4080 = vxor.u32 %v4016, 2147483648
        %v4081 = vxor.u32 %v4017, 2147483648
        %v4082 = vxor.u32 %v4018, 2147483648
        %v4083 = vxor.u32 %v4019, 2147483648
        %v4084 = vxor.u32 %v4020, 2147483648
        %v4085 = vxor.u32 %v4021, 2147483648
        %v4086 = vxor.u32 %v4022, 2147483648
        %v4087 = vxor.u32 %v4023, 2147483648
        %v4088 = vxor.u32 %v4024, 2147483648
        %v4089 = vxor.u32 %v4025, 2147483648
        %v4090 = vxor.u32 %v4026, 2147483648
        %v4091 = vxor.u32 %v4027, 2147483648
        %v4092 = vxor.u32 %v4028, 2147483648
        %v4093 = vxor.u32 %v4029, 2147483648
        %v4094 = vxor.u32 %v4030, 2147483648
        %v4095 = vxor.u32 %v4031, 2147483648
        %v4096 = vxor.u32 %v4032, 2147483648
        %v4097 = vxor.u32 %v4033, 2147483648
        %v4098 = vxor.u32 %v4034, 2147483648
        %v4099 = vxor.u32 %v4035, 2147483648
        %v4100 = vxor.u32 %v4036, 2147483648
        %v4101 = vxor.u32 %v4037, 2147483648
        %v4102 = vxor.u32 %v4038, 2147483648
        %v4103 = vxor.u32 %v4039, 2147483648
        %v4104 = vxor.u32 %v4040, 2147483648
        %v4105 = vxor.u32 %v4041, 2147483648
        %v4106 = vxor.u32 %v4042, 2147483648
        %v4107 = vxor.u32 %v4043, 2147483648
        %v4108 = vxor.u32 %v4044, 2147483648
        %v4109 = vxor.u32 %v4045, 2147483648
        %v4110 = vxor.u32 %v4046, 2147483648
        %v4111 = vxor.u32 %v4047, 2147483648
        %v4112 = vxor.u32 %v4048, 2147483648
        %v4113 = vxor.u32 %v4049, 2147483648
        %v4114 = vxor.u32 %v4050, 2147483648
        %v4115 = vxor.u32 %v4051, 2147483648
        %v4116 = vxor.u32 %v4052, 2147483648
        %v4117 = vxor.u32 %v4053, 2147483648
        %v4118 = vxor.u32 %v4054, 2147483648
        %v4119 = vxor.u32 %v4055, 2147483648
        %v4120 = vxor.u32 %v4056, 2147483648
        %v4121 = vxor.u32 %v4057, 2147483648
        %v4122 = vxor.u32 %v4058, 2147483648
        %v4123 = vxor.u32 %v4059, 2147483648
        %v4124 = vxor.u32 %v4060, 2147483648
        %v4125 = vxor.u32 %v4061, 2147483648
        %v4126 = vxor.u32 %v4062, 2147483648
        %v4127 = vxor.u32 %v4063, 2147483648
        %v4128 = vxor.u32 %v4064, 2147483648
        %v4129 = vxor.u32 %v4065, 2147483648
        %v4130 = vxor.u32 %v4066, 2147483648
        %v4131 = vxor.u32 %v4067, 2147483648
        %v4132 = vxor.u32 %v4068, 2147483648
        %v4133 = vxor.u32 %v4069, 2147483648
        %v4134 = vxor.u32 %v4070, 2147483648
        %v4135 = vxor.u32 %v4071, 2147483648
        %v4136 = vxor.u32 %v4072, 2147483648
        %v4137 = vxor.u32 %v4073, 2147483648
        %v4138 = vxor.u32 %v4074, 2147483648
        %v4139 = vmul.f32 %v4075, 1.442695
        %v4140 = vpow.pop %v4139
        %v4141 = vmul.f32 %v4076, 1.442695
        %v4142 = vpow.pop %v4141
        %v4143 = vmul.f32 %v4077, 1.442695
        %v4144 = vpow.pop %v4143
        %v4145 = vmul.f32 %v4078, 1.442695
        %v4146 = vpow.pop %v4145
        %v4147 = vmul.f32 %v4079, 1.442695
        %v4148 = vpow.pop %v4147
        %v4149 = vmul.f32 %v4080, 1.442695
        %v4150 = vpow.pop %v4149
        %v4151 = vmul.f32 %v4081, 1.442695
        %v4152 = vpow.pop %v4151
        %v4153 = vmul.f32 %v4082, 1.442695
        %v4154 = vpow.pop %v4153
        %v4155 = vmul.f32 %v4083, 1.442695
        %v4156 = vpow.pop %v4155
        %v4157 = vmul.f32 %v4084, 1.442695
        %v4158 = vpow.pop %v4157
        %v4159 = vmul.f32 %v4085, 1.442695
        %v4160 = vpow.pop %v4159
        %v4161 = vmul.f32 %v4086, 1.442695
        %v4162 = vpow.pop %v4161
        %v4163 = vmul.f32 %v4087, 1.442695
        %v4164 = vpow.pop %v4163
        %v4165 = vmul.f32 %v4088, 1.442695
        %v4166 = vpow.pop %v4165
        %v4167 = vmul.f32 %v4089, 1.442695
        %v4168 = vpow.pop %v4167
        %v4169 = vmul.f32 %v4090, 1.442695
        %v4170 = vpow.pop %v4169
        %v4171 = vmul.f32 %v4091, 1.442695
        %v4172 = vpow.pop %v4171
        %v4173 = vmul.f32 %v4092, 1.442695
        %v4174 = vpow.pop %v4173
        %v4175 = vmul.f32 %v4093, 1.442695
        %v4176 = vpow.pop %v4175
        %v4177 = vmul.f32 %v4094, 1.442695
        %v4178 = vpow.pop %v4177
        %v4179 = vmul.f32 %v4095, 1.442695
        %v4180 = vpow.pop %v4179
        %v4181 = vmul.f32 %v4096, 1.442695
        %v4182 = vpow.pop %v4181
        %v4183 = vmul.f32 %v4097, 1.442695
        %v4184 = vpow.pop %v4183
        %v4185 = vmul.f32 %v4098, 1.442695
        %v4186 = vpow.pop %v4185
        %v4187 = vmul.f32 %v4099, 1.442695
        %v4188 = vpow.pop %v4187
        %v4189 = vmul.f32 %v4100, 1.442695
        %v4190 = vpow.pop %v4189
        %v4191 = vmul.f32 %v4101, 1.442695
        %v4192 = vpow.pop %v4191
        %v4193 = vmul.f32 %v4102, 1.442695
        %v4194 = vpow.pop %v4193
        %v4195 = vmul.f32 %v4103, 1.442695
        %v4196 = vpow.pop %v4195
        %v4197 = vmul.f32 %v4104, 1.442695
        %v4198 = vpow.pop %v4197
        %v4199 = vmul.f32 %v4105, 1.442695
        %v4200 = vpow.pop %v4199
        %v4201 = vmul.f32 %v4106, 1.442695
        %v4202 = vpow.pop %v4201
        %v4203 = vmul.f32 %v4107, 1.442695
        %v4204 = vpow.pop %v4203
        %v4205 = vmul.f32 %v4108, 1.442695
        %v4206 = vpow.pop %v4205
        %v4207 = vmul.f32 %v4109, 1.442695
        %v4208 = vpow.pop %v4207
        %v4209 = vmul.f32 %v4110, 1.442695
        %v4210 = vpow.pop %v4209
        %v4211 = vmul.f32 %v4111, 1.442695
        %v4212 = vpow.pop %v4211
        %v4213 = vmul.f32 %v4112, 1.442695
        %v4214 = vpow.pop %v4213
        %v4215 = vmul.f32 %v4113, 1.442695
        %v4216 = vpow.pop %v4215
        %v4217 = vmul.f32 %v4114, 1.442695
        %v4218 = vpow.pop %v4217
        %v4219 = vmul.f32 %v4115, 1.442695
        %v4220 = vpow.pop %v4219
        %v4221 = vmul.f32 %v4116, 1.442695
        %v4222 = vpow.pop %v4221
        %v4223 = vmul.f32 %v4117, 1.442695
        %v4224 = vpow.pop %v4223
        %v4225 = vmul.f32 %v4118, 1.442695
        %v4226 = vpow.pop %v4225
        %v4227 = vmul.f32 %v4119, 1.442695
        %v4228 = vpow.pop %v4227
        %v4229 = vmul.f32 %v4120, 1.442695
        %v4230 = vpow.pop %v4229
        %v4231 = vmul.f32 %v4121, 1.442695
        %v4232 = vpow.pop %v4231
        %v4233 = vmul.f32 %v4122, 1.442695
        %v4234 = vpow.pop %v4233
        %v4235 = vmul.f32 %v4123, 1.442695
        %v4236 = vpow.pop %v4235
        %v4237 = vmul.f32 %v4124, 1.442695
        %v4238 = vpow.pop %v4237
        %v4239 = vmul.f32 %v4125, 1.442695
        %v4240 = vpow.pop %v4239
        %v4241 = vmul.f32 %v4126, 1.442695
        %v4242 = vpow.pop %v4241
        %v4243 = vmul.f32 %v4127, 1.442695
        %v4244 = vpow.pop %v4243
        %v4245 = vmul.f32 %v4128, 1.442695
        %v4246 = vpow.pop %v4245
        %v4247 = vmul.f32 %v4129, 1.442695
        %v4248 = vpow.pop %v4247
        %v4249 = vmul.f32 %v4130, 1.442695
        %v4250 = vpow.pop %v4249
        %v4251 = vmul.f32 %v4131, 1.442695
        %v4252 = vpow.pop %v4251
        %v4253 = vmul.f32 %v4132, 1.442695
        %v4254 = vpow.pop %v4253
        %v4255 = vmul.f32 %v4133, 1.442695
        %v4256 = vpow.pop %v4255
        %v4257 = vmul.f32 %v4134, 1.442695
        %v4258 = vpow.pop %v4257
        %v4259 = vmul.f32 %v4135, 1.442695
        %v4260 = vpow.pop %v4259
        %v4261 = vmul.f32 %v4136, 1.442695
        %v4262 = vpow.pop %v4261
        %v4263 = vmul.f32 %v4137, 1.442695
        %v4264 = vpow.pop %v4263
        %v4265 = vmul.f32 %v4138, 1.442695
        %v4266 = vpow.pop %v4265
        %v4267 = vadd.f32 %v4140, 1.0
        %v4268 = vadd.f32 %v4142, 1.0
        %v4269 = vadd.f32 %v4144, 1.0
        %v4270 = vadd.f32 %v4146, 1.0
        %v4271 = vadd.f32 %v4148, 1.0
        %v4272 = vadd.f32 %v4150, 1.0
        %v4273 = vadd.f32 %v4152, 1.0
        %v4274 = vadd.f32 %v4154, 1.0
        %v4275 = vadd.f32 %v4156, 1.0
        %v4276 = vadd.f32 %v4158, 1.0
        %v4277 = vadd.f32 %v4160, 1.0
        %v4278 = vadd.f32 %v4162, 1.0
        %v4279 = vadd.f32 %v4164, 1.0
        %v4280 = vadd.f32 %v4166, 1.0
        %v4281 = vadd.f32 %v4168, 1.0
        %v4282 = vadd.f32 %v4170, 1.0
        %v4283 = vadd.f32 %v4172, 1.0
        %v4284 = vadd.f32 %v4174, 1.0
        %v4285 = vadd.f32 %v4176, 1.0
        %v4286 = vadd.f32 %v4178, 1.0
        %v4287 = vadd.f32 %v4180, 1.0
        %v4288 = vadd.f32 %v4182, 1.0
        %v4289 = vadd.f32 %v4184, 1.0
        %v4290 = vadd.f32 %v4186, 1.0
        %v4291 = vadd.f32 %v4188, 1.0
        %v4292 = vadd.f32 %v4190, 1.0
        %v4293 = vadd.f32 %v4192, 1.0
        %v4294 = vadd.f32 %v4194, 1.0
        %v4295 = vadd.f32 %v4196, 1.0
        %v4296 = vadd.f32 %v4198, 1.0
        %v4297 = vadd.f32 %v4200, 1.0
        %v4298 = vadd.f32 %v4202, 1.0
        %v4299 = vadd.f32 %v4204, 1.0
        %v4300 = vadd.f32 %v4206, 1.0
        %v4301 = vadd.f32 %v4208, 1.0
        %v4302 = vadd.f32 %v4210, 1.0
        %v4303 = vadd.f32 %v4212, 1.0
        %v4304 = vadd.f32 %v4214, 1.0
        %v4305 = vadd.f32 %v4216, 1.0
        %v4306 = vadd.f32 %v4218, 1.0
        %v4307 = vadd.f32 %v4220, 1.0
        %v4308 = vadd.f32 %v4222, 1.0
        %v4309 = vadd.f32 %v4224, 1.0
        %v4310 = vadd.f32 %v4226, 1.0
        %v4311 = vadd.f32 %v4228, 1.0
        %v4312 = vadd.f32 %v4230, 1.0
        %v4313 = vadd.f32 %v4232, 1.0
        %v4314 = vadd.f32 %v4234, 1.0
        %v4315 = vadd.f32 %v4236, 1.0
        %v4316 = vadd.f32 %v4238, 1.0
        %v4317 = vadd.f32 %v4240, 1.0
        %v4318 = vadd.f32 %v4242, 1.0
        %v4319 = vadd.f32 %v4244, 1.0
        %v4320 = vadd.f32 %v4246, 1.0
        %v4321 = vadd.f32 %v4248, 1.0
        %v4322 = vadd.f32 %v4250, 1.0
        %v4323 = vadd.f32 %v4252, 1.0
        %v4324 = vadd.f32 %v4254, 1.0
        %v4325 = vadd.f32 %v4256, 1.0
        %v4326 = vadd.f32 %v4258, 1.0
        %v4327 = vadd.f32 %v4260, 1.0
        %v4328 = vadd.f32 %v4262, 1.0
        %v4329 = vadd.f32 %v4264, 1.0
        %v4330 = vadd.f32 %v4266, 1.0
        %v4331 = vrcp.pop %v4267
        %v4332 = vmul.f32 1.0, %v4331
        %v4333 = vrcp.pop %v4268
        %v4334 = vmul.f32 1.0, %v4333
        %v4335 = vrcp.pop %v4269
        %v4336 = vmul.f32 1.0, %v4335
        %v4337 = vrcp.pop %v4270
        %v4338 = vmul.f32 1.0, %v4337
        %v4339 = vrcp.pop %v4271
        %v4340 = vmul.f32 1.0, %v4339
        %v4341 = vrcp.pop %v4272
        %v4342 = vmul.f32 1.0, %v4341
        %v4343 = vrcp.pop %v4273
        %v4344 = vmul.f32 1.0, %v4343
        %v4345 = vrcp.pop %v4274
        %v4346 = vmul.f32 1.0, %v4345
        %v4347 = vrcp.pop %v4275
        %v4348 = vmul.f32 1.0, %v4347
        %v4349 = vrcp.pop %v4276
        %v4350 = vmul.f32 1.0, %v4349
        %v4351 = vrcp.pop %v4277
        %v4352 = vmul.f32 1.0, %v4351
        %v4353 = vrcp.pop %v4278
        %v4354 = vmul.f32 1.0, %v4353
        %v4355 = vrcp.pop %v4279
        %v4356 = vmul.f32 1.0, %v4355
        %v4357 = vrcp.pop %v4280
        %v4358 = vmul.f32 1.0, %v4357
        %v4359 = vrcp.pop %v4281
        %v4360 = vmul.f32 1.0, %v4359
        %v4361 = vrcp.pop %v4282
        %v4362 = vmul.f32 1.0, %v4361
        %v4363 = vrcp.pop %v4283
        %v4364 = vmul.f32 1.0, %v4363
        %v4365 = vrcp.pop %v4284
        %v4366 = vmul.f32 1.0, %v4365
        %v4367 = vrcp.pop %v4285
        %v4368 = vmul.f32 1.0, %v4367
        %v4369 = vrcp.pop %v4286
        %v4370 = vmul.f32 1.0, %v4369
        %v4371 = vrcp.pop %v4287
        %v4372 = vmul.f32 1.0, %v4371
        %v4373 = vrcp.pop %v4288
        %v4374 = vmul.f32 1.0, %v4373
        %v4375 = vrcp.pop %v4289
        %v4376 = vmul.f32 1.0, %v4375
        %v4377 = vrcp.pop %v4290
        %v4378 = vmul.f32 1.0, %v4377
        %v4379 = vrcp.pop %v4291
        %v4380 = vmul.f32 1.0, %v4379
        %v4381 = vrcp.pop %v4292
        %v4382 = vmul.f32 1.0, %v4381
        %v4383 = vrcp.pop %v4293
        %v4384 = vmul.f32 1.0, %v4383
        %v4385 = vrcp.pop %v4294
        %v4386 = vmul.f32 1.0, %v4385
        %v4387 = vrcp.pop %v4295
        %v4388 = vmul.f32 1.0, %v4387
        %v4389 = vrcp.pop %v4296
        %v4390 = vmul.f32 1.0, %v4389
        %v4391 = vrcp.pop %v4297
        %v4392 = vmul.f32 1.0, %v4391
        %v4393 = vrcp.pop %v4298
        %v4394 = vmul.f32 1.0, %v4393
        %v4395 = vrcp.pop %v4299
        %v4396 = vmul.f32 1.0, %v4395
        %v4397 = vrcp.pop %v4300
        %v4398 = vmul.f32 1.0, %v4397
        %v4399 = vrcp.pop %v4301
        %v4400 = vmul.f32 1.0, %v4399
        %v4401 = vrcp.pop %v4302
        %v4402 = vmul.f32 1.0, %v4401
        %v4403 = vrcp.pop %v4303
        %v4404 = vmul.f32 1.0, %v4403
        %v4405 = vrcp.pop %v4304
        %v4406 = vmul.f32 1.0, %v4405
        %v4407 = vrcp.pop %v4305
        %v4408 = vmul.f32 1.0, %v4407
        %v4409 = vrcp.pop %v4306
        %v4410 = vmul.f32 1.0, %v4409
        %v4411 = vrcp.pop %v4307
        %v4412 = vmul.f32 1.0, %v4411
        %v4413 = vrcp.pop %v4308
        %v4414 = vmul.f32 1.0, %v4413
        %v4415 = vrcp.pop %v4309
        %v4416 = vmul.f32 1.0, %v4415
        %v4417 = vrcp.pop %v4310
        %v4418 = vmul.f32 1.0, %v4417
        %v4419 = vrcp.pop %v4311
        %v4420 = vmul.f32 1.0, %v4419
        %v4421 = vrcp.pop %v4312
        %v4422 = vmul.f32 1.0, %v4421
        %v4423 = vrcp.pop %v4313
        %v4424 = vmul.f32 1.0, %v4423
        %v4425 = vrcp.pop %v4314
        %v4426 = vmul.f32 1.0, %v4425
        %v4427 = vrcp.pop %v4315
        %v4428 = vmul.f32 1.0, %v4427
        %v4429 = vrcp.pop %v4316
        %v4430 = vmul.f32 1.0, %v4429
        %v4431 = vrcp.pop %v4317
        %v4432 = vmul.f32 1.0, %v4431
        %v4433 = vrcp.pop %v4318
        %v4434 = vmul.f32 1.0, %v4433
        %v4435 = vrcp.pop %v4319
        %v4436 = vmul.f32 1.0, %v4435
        %v4437 = vrcp.pop %v4320
        %v4438 = vmul.f32 1.0, %v4437
        %v4439 = vrcp.pop %v4321
        %v4440 = vmul.f32 1.0, %v4439
        %v4441 = vrcp.pop %v4322
        %v4442 = vmul.f32 1.0, %v4441
        %v4443 = vrcp.pop %v4323
        %v4444 = vmul.f32 1.0, %v4443
        %v4445 = vrcp.pop %v4324
        %v4446 = vmul.f32 1.0, %v4445
        %v4447 = vrcp.pop %v4325
        %v4448 = vmul.f32 1.0, %v4447
        %v4449 = vrcp.pop %v4326
        %v4450 = vmul.f32 1.0, %v4449
        %v4451 = vrcp.pop %v4327
        %v4452 = vmul.f32 1.0, %v4451
        %v4453 = vrcp.pop %v4328
        %v4454 = vmul.f32 1.0, %v4453
        %v4455 = vrcp.pop %v4329
        %v4456 = vmul.f32 1.0, %v4455
        %v4457 = vrcp.pop %v4330
        %v4458 = vmul.f32 1.0, %v4457
        %v4459 = vmul.f32 %v4011, %v4332
        %v4460 = vmul.f32 %v4012, %v4334
        %v4461 = vmul.f32 %v4013, %v4336
        %v4462 = vmul.f32 %v4014, %v4338
        %v4463 = vmul.f32 %v4015, %v4340
        %v4464 = vmul.f32 %v4016, %v4342
        %v4465 = vmul.f32 %v4017, %v4344
        %v4466 = vmul.f32 %v4018, %v4346
        %v4467 = vmul.f32 %v4019, %v4348
        %v4468 = vmul.f32 %v4020, %v4350
        %v4469 = vmul.f32 %v4021, %v4352
        %v4470 = vmul.f32 %v4022, %v4354
        %v4471 = vmul.f32 %v4023, %v4356
        %v4472 = vmul.f32 %v4024, %v4358
        %v4473 = vmul.f32 %v4025, %v4360
        %v4474 = vmul.f32 %v4026, %v4362
        %v4475 = vmul.f32 %v4027, %v4364
        %v4476 = vmul.f32 %v4028, %v4366
        %v4477 = vmul.f32 %v4029, %v4368
        %v4478 = vmul.f32 %v4030, %v4370
        %v4479 = vmul.f32 %v4031, %v4372
        %v4480 = vmul.f32 %v4032, %v4374
        %v4481 = vmul.f32 %v4033, %v4376
        %v4482 = vmul.f32 %v4034, %v4378
        %v4483 = vmul.f32 %v4035, %v4380
        %v4484 = vmul.f32 %v4036, %v4382
        %v4485 = vmul.f32 %v4037, %v4384
        %v4486 = vmul.f32 %v4038, %v4386
        %v4487 = vmul.f32 %v4039, %v4388
        %v4488 = vmul.f32 %v4040, %v4390
        %v4489 = vmul.f32 %v4041, %v4392
        %v4490 = vmul.f32 %v4042, %v4394
        %v4491 = vmul.f32 %v4043, %v4396
        %v4492 = vmul.f32 %v4044, %v4398
        %v4493 = vmul.f32 %v4045, %v4400
        %v4494 = vmul.f32 %v4046, %v4402
        %v4495 = vmul.f32 %v4047, %v4404
        %v4496 = vmul.f32 %v4048, %v4406
        %v4497 = vmul.f32 %v4049, %v4408
        %v4498 = vmul.f32 %v4050, %v4410
        %v4499 = vmul.f32 %v4051, %v4412
        %v4500 = vmul.f32 %v4052, %v4414
        %v4501 = vmul.f32 %v4053, %v4416
        %v4502 = vmul.f32 %v4054, %v4418
        %v4503 = vmul.f32 %v4055, %v4420
        %v4504 = vmul.f32 %v4056, %v4422
        %v4505 = vmul.f32 %v4057, %v4424
        %v4506 = vmul.f32 %v4058, %v4426
        %v4507 = vmul.f32 %v4059, %v4428
        %v4508 = vmul.f32 %v4060, %v4430
        %v4509 = vmul.f32 %v4061, %v4432
        %v4510 = vmul.f32 %v4062, %v4434
        %v4511 = vmul.f32 %v4063, %v4436
        %v4512 = vmul.f32 %v4064, %v4438
        %v4513 = vmul.f32 %v4065, %v4440
        %v4514 = vmul.f32 %v4066, %v4442
        %v4515 = vmul.f32 %v4067, %v4444
        %v4516 = vmul.f32 %v4068, %v4446
        %v4517 = vmul.f32 %v4069, %v4448
        %v4518 = vmul.f32 %v4070, %v4450
        %v4519 = vmul.f32 %v4071, %v4452
        %v4520 = vmul.f32 %v4072, %v4454
        %v4521 = vmul.f32 %v4073, %v4456
        %v4522 = vmul.f32 %v4074, %v4458
        %v4523 = vadd.f32 %v4459, %v4460
        %v4524 = vadd.f32 %v4523, %v4461
        %v4525 = vadd.f32 %v4524, %v4462
        %v4526 = vadd.f32 %v4525, %v4463
        %v4527 = vadd.f32 %v4526, %v4464
        %v4528 = vadd.f32 %v4527, %v4465
        %v4529 = vadd.f32 %v4528, %v4466
        %v4530 = vrot.slane %v4529, 4
        %v4531 = vadd.f32 %v4529, %v4530
        %v4532 = vrot.slane %v4531, 2
        %v4533 = vadd.f32 %v4531, %v4532
        %v4534 = vrot.slane %v4533, 1
        %v4535 = vadd.f32 %v4533, %v4534
        %v4536 = vadd.f32 %v4467, %v4468
        %v4537 = vadd.f32 %v4536, %v4469
        %v4538 = vadd.f32 %v4537, %v4470
        %v4539 = vadd.f32 %v4538, %v4471
        %v4540 = vadd.f32 %v4539, %v4472
        %v4541 = vadd.f32 %v4540, %v4473
        %v4542 = vadd.f32 %v4541, %v4474
        %v4543 = vrot.slane %v4542, 4
        %v4544 = vadd.f32 %v4542, %v4543
        %v4545 = vrot.slane %v4544, 2
        %v4546 = vadd.f32 %v4544, %v4545
        %v4547 = vrot.slane %v4546, 1
        %v4548 = vadd.f32 %v4546, %v4547
        %v4549 = vadd.f32 %v4475, %v4476
        %v4550 = vadd.f32 %v4549, %v4477
        %v4551 = vadd.f32 %v4550, %v4478
        %v4552 = vadd.f32 %v4551, %v4479
        %v4553 = vadd.f32 %v4552, %v4480
        %v4554 = vadd.f32 %v4553, %v4481
        %v4555 = vadd.f32 %v4554, %v4482
        %v4556 = vrot.slane %v4555, 4
        %v4557 = vadd.f32 %v4555, %v4556
        %v4558 = vrot.slane %v4557, 2
        %v4559 = vadd.f32 %v4557, %v4558
        %v4560 = vrot.slane %v4559, 1
        %v4561 = vadd.f32 %v4559, %v4560
        %v4562 = vadd.f32 %v4483, %v4484
        %v4563 = vadd.f32 %v4562, %v4485
        %v4564 = vadd.f32 %v4563, %v4486
        %v4565 = vadd.f32 %v4564, %v4487
        %v4566 = vadd.f32 %v4565, %v4488
        %v4567 = vadd.f32 %v4566, %v4489
        %v4568 = vadd.f32 %v4567, %v4490
        %v4569 = vrot.slane %v4568, 4
        %v4570 = vadd.f32 %v4568, %v4569
        %v4571 = vrot.slane %v4570, 2
        %v4572 = vadd.f32 %v4570, %v4571
        %v4573 = vrot.slane %v4572, 1
        %v4574 = vadd.f32 %v4572, %v4573
        %v4575 = vadd.f32 %v4491, %v4492
        %v4576 = vadd.f32 %v4575, %v4493
        %v4577 = vadd.f32 %v4576, %v4494
        %v4578 = vadd.f32 %v4577, %v4495
        %v4579 = vadd.f32 %v4578, %v4496
        %v4580 = vadd.f32 %v4579, %v4497
        %v4581 = vadd.f32 %v4580, %v4498
        %v4582 = vrot.slane %v4581, 4
        %v4583 = vadd.f32 %v4581, %v4582
        %v4584 = vrot.slane %v4583, 2
        %v4585 = vadd.f32 %v4583, %v4584
        %v4586 = vrot.slane %v4585, 1
        %v4587 = vadd.f32 %v4585, %v4586
        %v4588 = vadd.f32 %v4499, %v4500
        %v4589 = vadd.f32 %v4588, %v4501
        %v4590 = vadd.f32 %v4589, %v4502
        %v4591 = vadd.f32 %v4590, %v4503
        %v4592 = vadd.f32 %v4591, %v4504
        %v4593 = vadd.f32 %v4592, %v4505
        %v4594 = vadd.f32 %v4593, %v4506
        %v4595 = vrot.slane %v4594, 4
        %v4596 = vadd.f32 %v4594, %v4595
        %v4597 = vrot.slane %v4596, 2
        %v4598 = vadd.f32 %v4596, %v4597
        %v4599 = vrot.slane %v4598, 1
        %v4600 = vadd.f32 %v4598, %v4599
        %v4601 = vadd.f32 %v4507, %v4508
        %v4602 = vadd.f32 %v4601, %v4509
        %v4603 = vadd.f32 %v4602, %v4510
        %v4604 = vadd.f32 %v4603, %v4511
        %v4605 = vadd.f32 %v4604, %v4512
        %v4606 = vadd.f32 %v4605, %v4513
        %v4607 = vadd.f32 %v4606, %v4514
        %v4608 = vrot.slane %v4607, 4
        %v4609 = vadd.f32 %v4607, %v4608
        %v4610 = vrot.slane %v4609, 2
        %v4611 = vadd.f32 %v4609, %v4610
        %v4612 = vrot.slane %v4611, 1
        %v4613 = vadd.f32 %v4611, %v4612
        %v4614 = vadd.f32 %v4515, %v4516
        %v4615 = vadd.f32 %v4614, %v4517
        %v4616 = vadd.f32 %v4615, %v4518
        %v4617 = vadd.f32 %v4616, %v4519
        %v4618 = vadd.f32 %v4617, %v4520
        %v4619 = vadd.f32 %v4618, %v4521
        %v4620 = vadd.f32 %v4619, %v4522
        %v4621 = vrot.slane %v4620, 4
        %v4622 = vadd.f32 %v4620, %v4621
        %v4623 = vrot.slane %v4622, 2
        %v4624 = vadd.f32 %v4622, %v4623
        %v4625 = vrot.slane %v4624, 1
        %v4626 = vadd.f32 %v4624, %v4625
        %v4627 = vpack.c.bf16 %v4535, %v4535
        %v4628 = vpack.c.bf16 %v4548, %v4548
        %v4629 = vpack.c.bf16 %v4561, %v4561
        %v4630 = vpack.c.bf16 %v4574, %v4574
        %v4631 = vpack.c.bf16 %v4587, %v4587
        %v4632 = vpack.c.bf16 %v4600, %v4600
        %v4633 = vpack.c.bf16 %v4613, %v4613
        %v4634 = vpack.c.bf16 %v4626, %v4626
        %v4635 = vld [vmem:[%s5] sm:$0xff]
        %v4636 = vld [vmem:[%s5 + $0x8] sm:$0xff]
        %v4637 = vld [vmem:[%s5 + $0x10] sm:$0xff]
        %v4638 = vld [vmem:[%s5 + $0x18] sm:$0xff]
        %v4639 = vld [vmem:[%s5 + $0x20] sm:$0xff]
        %v4640 = vld [vmem:[%s5 + $0x28] sm:$0xff]
        %v4641 = vld [vmem:[%s5 + $0x30] sm:$0xff]
        %v4642 = vld [vmem:[%s5 + $0x38] sm:$0xff]
        %v4643 = vld [vmem:[%s5 + $0x40] sm:$0xff]
        %v4644 = vld [vmem:[%s5 + $0x48] sm:$0xff]
        %v4645 = vld [vmem:[%s5 + $0x50] sm:$0xff]
        %v4646 = vld [vmem:[%s5 + $0x58] sm:$0xff]
        %v4647 = vld [vmem:[%s5 + $0x60] sm:$0xff]
        %v4648 = vld [vmem:[%s5 + $0x68] sm:$0xff]
        %v4649 = vld [vmem:[%s5 + $0x70] sm:$0xff]
        %v4650 = vld [vmem:[%s5 + $0x78] sm:$0xff]
        %v4651 = vld [vmem:[%s6] sm:$0x3]
        %v4653 = vlaneseq
        %v4654 = vshrl.u32 %v4653, 7
        %v4655 = vsub.s32 0, %v4654
        %v4656 = vrot.slane %v4651, %v4655
        %v4657 = vlaneseq
        %v4658 = vshrl.u32 %v4657, 7
        %v4659 = vsub.s32 1, %v4658
        %v4660 = vrot.slane %v4651, %v4659
        %v4671 = vunpack.c.l.b16 %v4627
        %v4672 = vunpack.c.l.b16 %v4628
        %v4673 = vunpack.c.l.b16 %v4629
        %v4674 = vunpack.c.l.b16 %v4630
        %v4675 = vunpack.c.l.b16 %v4631
        %v4676 = vunpack.c.l.b16 %v4632
        %v4677 = vunpack.c.l.b16 %v4633
        %v4678 = vunpack.c.l.b16 %v4634
        %vm4679 = vcmask 1041409
        %v4680 = vsel %vm4679, %v4672, %v4671
        %vm4681 = vcmask 1042434
        %v4682 = vsel %vm4681, %v4673, %v4680
        %vm4683 = vcmask 1043459
        %v4684 = vsel %vm4683, %v4674, %v4682
        %vm4685 = vcmask 1044484
        %v4686 = vsel %vm4685, %v4675, %v4684
        %vm4687 = vcmask 1045509
        %v4688 = vsel %vm4687, %v4676, %v4686
        %vm4689 = vcmask 1046534
        %v4690 = vsel %vm4689, %v4677, %v4688
        %vm4691 = vcmask 1047559
        %v4692 = vsel %vm4691, %v4678, %v4690
        %v4693 = vpack.c.b16 %v4692, %v4692
        %v4711 = vunpack.c.l.b16 %v4635
        %v4712 = vunpack.c.h.b16 %v4635
        %v4713 = vunpack.c.l.b16 %v4636
        %v4714 = vunpack.c.h.b16 %v4636
        %v4715 = vunpack.c.l.b16 %v4637
        %v4716 = vunpack.c.h.b16 %v4637
        %v4717 = vunpack.c.l.b16 %v4638
        %v4718 = vunpack.c.h.b16 %v4638
        %v4719 = vunpack.c.l.b16 %v4639
        %v4720 = vunpack.c.h.b16 %v4639
        %v4721 = vunpack.c.l.b16 %v4640
        %v4722 = vunpack.c.h.b16 %v4640
        %v4723 = vunpack.c.l.b16 %v4641
        %v4724 = vunpack.c.h.b16 %v4641
        %v4725 = vunpack.c.l.b16 %v4642
        %v4726 = vunpack.c.h.b16 %v4642
        %v4727 = vunpack.c.l.b16 %v4643
        %v4728 = vunpack.c.h.b16 %v4643
        %v4729 = vunpack.c.l.b16 %v4644
        %v4730 = vunpack.c.h.b16 %v4644
        %v4731 = vunpack.c.l.b16 %v4645
        %v4732 = vunpack.c.h.b16 %v4645
        %v4733 = vunpack.c.l.b16 %v4646
        %v4734 = vunpack.c.h.b16 %v4646
        %v4735 = vunpack.c.l.b16 %v4647
        %v4736 = vunpack.c.h.b16 %v4647
        %v4737 = vunpack.c.l.b16 %v4648
        %v4738 = vunpack.c.h.b16 %v4648
        %v4739 = vunpack.c.l.b16 %v4649
        %v4740 = vunpack.c.h.b16 %v4649
        %v4741 = vunpack.c.l.b16 %v4650
        %v4742 = vunpack.c.h.b16 %v4650
        %v4743 = vpack.c.b16 %v4713, %v4711
        %v4744 = vpack.c.b16 %v4714, %v4712
        %v4745 = vpack.c.b16 %v4717, %v4715
        %v4746 = vpack.c.b16 %v4718, %v4716
        %v4747 = vpack.c.b16 %v4721, %v4719
        %v4748 = vpack.c.b16 %v4722, %v4720
        %v4749 = vpack.c.b16 %v4725, %v4723
        %v4750 = vpack.c.b16 %v4726, %v4724
        %v4751 = vpack.c.b16 %v4729, %v4727
        %v4752 = vpack.c.b16 %v4730, %v4728
        %v4753 = vpack.c.b16 %v4733, %v4731
        %v4754 = vpack.c.b16 %v4734, %v4732
        %v4755 = vpack.c.b16 %v4737, %v4735
        %v4756 = vpack.c.b16 %v4738, %v4736
        %v4757 = vpack.c.b16 %v4741, %v4739
        %v4758 = vpack.c.b16 %v4742, %v4740
        %4775 = vmatprep.subr.bf16.mxu0 %v4758
        %4776 = vmatpush1.bf16.msra.mxu0 %v4757
        %4777 = vmatprep.subr.bf16.mxu0 %v4756
        %4778 = vmatpush1.bf16.msra.mxu0 %v4755
        %4779 = vmatprep.subr.bf16.mxu0 %v4754
        %4780 = vmatpush1.bf16.msra.mxu0 %v4753
        %4781 = vmatprep.subr.bf16.mxu0 %v4752
        %4782 = vmatpush1.bf16.msra.mxu0 %v4751
        %4783 = vmatprep.subr.bf16.mxu0 %v4750
        %4784 = vmatpush1.bf16.msra.mxu0 %v4749
        %4785 = vmatprep.subr.bf16.mxu0 %v4748
        %4786 = vmatpush1.bf16.msra.mxu0 %v4747
        %4787 = vmatprep.subr.bf16.mxu0 %v4746
        %4788 = vmatpush1.bf16.msra.mxu0 %v4745
        %4789 = vmatprep.subr.bf16.mxu0 %v4744
        %4790 = vmatpush1.bf16.msra.mxu0 %v4743
        %4791 = vmatprep.subr.bf16.mxu0 0
        %4792 = vmatpush2.bf16.msra.mxu0 0
        %4793 = vmatprep.subr.bf16.mxu0 0
        %4794 = vmatpush2.bf16.msra.mxu0 0
        %4795 = vmatprep.subr.bf16.mxu0 0
        %4796 = vmatpush2.bf16.msra.mxu0 0
        %4797 = vmatprep.subr.bf16.mxu0 0
        %4798 = vmatpush2.bf16.msra.mxu0 0
        %4799 = vmatprep.subr.bf16.mxu0 0
        %4800 = vmatpush2.bf16.msra.mxu0 0
        %4801 = vmatprep.subr.bf16.mxu0 0
        %4802 = vmatpush2.bf16.msra.mxu0 0
        %4803 = vmatprep.subr.bf16.mxu0 0
        %4804 = vmatpush2.bf16.msra.mxu0 0
        %4805 = vmatprep.subr.bf16.mxu0 0
        %4806 = vmatpush2.bf16.msra.mxu0 0
        %4807 = vmatprep.mubr.bf16.mxu0 0
        %4808 = vmatmul.mubr.bf16.gmra.mxu0 %v4693
        %v4809 = vpop.f32.mrf.mxu0
        %v4810 = vadd.f32 %v4656, %v4809
        %v4811 = vpop.f32.mrf.mxu0
        %v4812 = vadd.f32 %v4660, %v4811
        %v4813 = vpop.f32.mrf.mxu0
        %v4814 = vpop.f32.mrf.mxu0
        %4815 = vdwg.mxu0
        %v4816 = vxor.u32 %v4810, 2147483648
        %v4817 = vxor.u32 %v4812, 2147483648
        %v4818 = vmul.f32 %v4816, 1.442695
        %v4819 = vpow.pop %v4818
        %v4820 = vmul.f32 %v4817, 1.442695
        %v4821 = vpow.pop %v4820
        %v4822 = vadd.f32 %v4819, 1.0
        %v4823 = vadd.f32 %v4821, 1.0
        %v4824 = vrcp.pop %v4822
        %v4825 = vmul.f32 1.0, %v4824
        %v4826 = vrcp.pop %v4823
        %v4827 = vmul.f32 1.0, %v4826
        %v4828 = vmul.f32 %v4810, %v4825
        %v4829 = vmul.f32 %v4812, %v4827
        %v4830 = vpack.c.bf16 %v4828, %v4828
        %v4831 = vpack.c.bf16 %v4829, %v4829
        %v4832 = vld [vmem:[%s7] sm:$0xf]
        %v4833 = vld [vmem:[%s7 + $0x4] sm:$0xf]
        %v4834 = vld [vmem:[%s7 + $0x8] sm:$0xf]
        %v4835 = vld [vmem:[%s7 + $0xc] sm:$0xf]
        %v4836 = vld [vmem:[%s7 + $0x10] sm:$0xf]
        %v4837 = vld [vmem:[%s7 + $0x14] sm:$0xf]
        %v4838 = vld [vmem:[%s7 + $0x18] sm:$0xf]
        %v4839 = vld [vmem:[%s7 + $0x1c] sm:$0xf]
        %v4840 = vld [vmem:[%s7 + $0x20] sm:$0xf]
        %v4841 = vld [vmem:[%s7 + $0x24] sm:$0xf]
        %v4842 = vld [vmem:[%s7 + $0x28] sm:$0xf]
        %v4843 = vld [vmem:[%s7 + $0x2c] sm:$0xf]
        %v4844 = vld [vmem:[%s7 + $0x30] sm:$0xf]
        %v4845 = vld [vmem:[%s7 + $0x34] sm:$0xf]
        %v4846 = vld [vmem:[%s7 + $0x38] sm:$0xf]
        %v4847 = vld [vmem:[%s7 + $0x3c] sm:$0xf]
        %v4848 = vld [vmem:[%s7 + $0x40] sm:$0xf]
        %v4849 = vld [vmem:[%s7 + $0x44] sm:$0xf]
        %v4850 = vld [vmem:[%s7 + $0x48] sm:$0xf]
        %v4851 = vld [vmem:[%s7 + $0x4c] sm:$0xf]
        %v4852 = vld [vmem:[%s7 + $0x50] sm:$0xf]
        %v4853 = vld [vmem:[%s7 + $0x54] sm:$0xf]
        %v4854 = vld [vmem:[%s7 + $0x58] sm:$0xf]
        %v4855 = vld [vmem:[%s7 + $0x5c] sm:$0xf]
        %v4856 = vld [vmem:[%s7 + $0x60] sm:$0xf]
        %v4857 = vld [vmem:[%s7 + $0x64] sm:$0xf]
        %v4858 = vld [vmem:[%s7 + $0x68] sm:$0xf]
        %v4859 = vld [vmem:[%s7 + $0x6c] sm:$0xf]
        %v4860 = vld [vmem:[%s7 + $0x70] sm:$0xf]
        %v4861 = vld [vmem:[%s7 + $0x74] sm:$0xf]
        %v4862 = vld [vmem:[%s7 + $0x78] sm:$0xf]
        %v4863 = vld [vmem:[%s7 + $0x7c] sm:$0xf]
        %v4864 = vld [vmem:[%s8] sm:$0x1]
        %v4866 = vlaneseq
        %v4867 = vshrl.u32 %v4866, 7
        %v4868 = vsub.s32 0, %v4867
        %v4869 = vrot.slane %v4864, %v4868
        %v4903 = vunpack.c.l.b16 %v4832
        %v4904 = vunpack.c.l.b16 %v4833
        %v4905 = vunpack.c.l.b16 %v4834
        %v4906 = vunpack.c.l.b16 %v4835
        %v4907 = vunpack.c.l.b16 %v4836
        %v4908 = vunpack.c.l.b16 %v4837
        %v4909 = vunpack.c.l.b16 %v4838
        %v4910 = vunpack.c.l.b16 %v4839
        %v4911 = vunpack.c.l.b16 %v4840
        %v4912 = vunpack.c.l.b16 %v4841
        %v4913 = vunpack.c.l.b16 %v4842
        %v4914 = vunpack.c.l.b16 %v4843
        %v4915 = vunpack.c.l.b16 %v4844
        %v4916 = vunpack.c.l.b16 %v4845
        %v4917 = vunpack.c.l.b16 %v4846
        %v4918 = vunpack.c.l.b16 %v4847
        %v4919 = vunpack.c.l.b16 %v4848
        %v4920 = vunpack.c.l.b16 %v4849
        %v4921 = vunpack.c.l.b16 %v4850
        %v4922 = vunpack.c.l.b16 %v4851
        %v4923 = vunpack.c.l.b16 %v4852
        %v4924 = vunpack.c.l.b16 %v4853
        %v4925 = vunpack.c.l.b16 %v4854
        %v4926 = vunpack.c.l.b16 %v4855
        %v4927 = vunpack.c.l.b16 %v4856
        %v4928 = vunpack.c.l.b16 %v4857
        %v4929 = vunpack.c.l.b16 %v4858
        %v4930 = vunpack.c.l.b16 %v4859
        %v4931 = vunpack.c.l.b16 %v4860
        %v4932 = vunpack.c.l.b16 %v4861
        %v4933 = vunpack.c.l.b16 %v4862
        %v4934 = vunpack.c.l.b16 %v4863
        %v4935 = vpack.c.b16 %v4904, %v4903
        %v4936 = vpack.c.b16 %v4906, %v4905
        %v4937 = vpack.c.b16 %v4908, %v4907
        %v4938 = vpack.c.b16 %v4910, %v4909
        %v4939 = vpack.c.b16 %v4912, %v4911
        %v4940 = vpack.c.b16 %v4914, %v4913
        %v4941 = vpack.c.b16 %v4916, %v4915
        %v4942 = vpack.c.b16 %v4918, %v4917
        %v4943 = vpack.c.b16 %v4920, %v4919
        %v4944 = vpack.c.b16 %v4922, %v4921
        %v4945 = vpack.c.b16 %v4924, %v4923
        %v4946 = vpack.c.b16 %v4926, %v4925
        %v4947 = vpack.c.b16 %v4928, %v4927
        %v4948 = vpack.c.b16 %v4930, %v4929
        %v4949 = vpack.c.b16 %v4932, %v4931
        %v4950 = vpack.c.b16 %v4934, %v4933
        %4967 = vmatprep.subr.bf16.mxu0 0
        %4968 = vmatpush1.bf16.msra.mxu0 %v4942
        %4969 = vmatprep.subr.bf16.mxu0 0
        %4970 = vmatpush1.bf16.msra.mxu0 %v4941
        %4971 = vmatprep.subr.bf16.mxu0 0
        %4972 = vmatpush1.bf16.msra.mxu0 %v4940
        %4973 = vmatprep.subr.bf16.mxu0 0
        %4974 = vmatpush1.bf16.msra.mxu0 %v4939
        %4975 = vmatprep.subr.bf16.mxu0 0
        %4976 = vmatpush1.bf16.msra.mxu0 %v4938
        %4977 = vmatprep.subr.bf16.mxu0 0
        %4978 = vmatpush1.bf16.msra.mxu0 %v4937
        %4979 = vmatprep.subr.bf16.mxu0 0
        %4980 = vmatpush1.bf16.msra.mxu0 %v4936
        %4981 = vmatprep.subr.bf16.mxu0 0
        %4982 = vmatpush1.bf16.msra.mxu0 %v4935
        %4983 = vmatprep.subr.bf16.mxu0 0
        %4984 = vmatpush2.bf16.msra.mxu0 %v4950
        %4985 = vmatprep.subr.bf16.mxu0 0
        %4986 = vmatpush2.bf16.msra.mxu0 %v4949
        %4987 = vmatprep.subr.bf16.mxu0 0
        %4988 = vmatpush2.bf16.msra.mxu0 %v4948
        %4989 = vmatprep.subr.bf16.mxu0 0
        %4990 = vmatpush2.bf16.msra.mxu0 %v4947
        %4991 = vmatprep.subr.bf16.mxu0 0
        %4992 = vmatpush2.bf16.msra.mxu0 %v4946
        %4993 = vmatprep.subr.bf16.mxu0 0
        %4994 = vmatpush2.bf16.msra.mxu0 %v4945
        %4995 = vmatprep.subr.bf16.mxu0 0
        %4996 = vmatpush2.bf16.msra.mxu0 %v4944
        %4997 = vmatprep.subr.bf16.mxu0 0
        %4998 = vmatpush2.bf16.msra.mxu0 %v4943
        %4999 = vmatprep.mubr.bf16.mxu0 %v4831
        %5000 = vmatmul.mubr.bf16.gmra.mxu0 %v4830
        %v5001 = vpop.f32.mrf.mxu0
        %v5002 = vadd.f32 %v4869, %v5001
        %v5003 = vpop.f32.mrf.mxu0
        %v5004 = vpop.f32.mrf.mxu0
        %v5005 = vpop.f32.mrf.mxu0
        %5006 = vdwg.mxu0
        %5007 = vst [vmem:[%s328] sm:$0xff] %v5002
        %s5008 = sand.u32 %s225, 1
        %s5009 = scalar_lea.sflag [#allocation3], %s5008
        %s5010 = sand.u32 %s225, 1
        %s5011 = smul.addr %s5010, 8
        %s5012 = scalar_lea.vmem [#allocation2], %s5011
        // Predicated region
        $region57: #{price_cnn_forward.1} parent=55 // pred_check
          %p5013 = pneg %p235
        $region58: #{price_cnn_forward.1} parent=55 // pred_check_branch
          %5015 = sbr.rel (%p5013) target = $region60
        $region59: #{price_cnn_forward.1} parent=55 // pred_region
          %s5017 = ssub.s32 128, 128
          %5018 = vsyncadd %s5009, %s5017
          %s5019 = smul.addr %s23, 128
          %s5020 = scalar_lea.hbm %s9, %s5019
          %s5022 = sshll.u32 %s5012, 4
          %s5023 = int_to_ptr.vmem [resolvable:$true] %s5022
          %5025 = dma.vmem_to_hbm [thread:$0]  %s5023, 128, %s5020, %s5009
        $region60: #{price_cnn_forward.1} parent=55 // pred_fallthru
          _
      $region56: #{price_cnn_forward.1} parent=5 // pred_fallthru
        _
      %p5026 = scmp.le.s32.totalorder 2, %s18
      // Predicated region
      $region61: #{price_cnn_forward.1} parent=5 // pred_check
        %p5027 = pneg %p5026
      $region62: #{price_cnn_forward.1} parent=5 // pred_check_branch
        %5029 = sbr.rel (%p5027) target = $region64
      $region63: #{price_cnn_forward.1} parent=5 // pred_region
        %s5030 = ssub.s32 %s18, 2
        // Predicated region
        $region65: #{price_cnn_forward.1} parent=63 // pred_check
          %p5031 = pneg %p241
        $region66: #{price_cnn_forward.1} parent=63 // pred_check_branch
          %5033 = sbr.rel (%p5031) target = $region68
        $region67: #{price_cnn_forward.1} parent=63 // pred_region
          %s5034 = sand.u32 %s226, 1
          %s5035 = scalar_lea.sflag [#allocation3], %s5034
          %s5036 = sand.u32 %s226, 1
          %s5037 = smul.addr %s5036, 8
          %s5038 = scalar_lea.vmem [#allocation2], %s5037
          %5039 = dma.done %s5035, 128
        $region68: #{price_cnn_forward.1} parent=63 // pred_fallthru
          _
      $region64: #{price_cnn_forward.1} parent=5 // pred_fallthru
        _
    $region6: #{price_cnn_forward.1} parent=1 // loop_footer
      %s22 = sadd.s32 1, %s18
    $region7: #{price_cnn_forward.1} parent=1 // loop_footer_branch
      %17 = sbr.rel target = $region3
    $region8: #{price_cnn_forward.1} parent=1 // loop_exit
      _
    %5040 = vsyncpa [#allocation3], 1
    %s5041 = scalar_lea.sflag [#allocation3], 1
    %5042 = vsyncpa %s5041, 1

</llo_original>
